<compile_context>
chip_gen: v7x
topology: tpu7x:2x2x1
jax: 0.10.0
libtpu: 0.0.40
codegen_flags: <defaults>
</compile_context>

<pallas_src>
import jax
import jax.numpy as jnp
from jax import lax
from jax.experimental import pallas as pl
from jax.experimental.pallas import tpu as pltpu


def _round_up(x, m):
    return (x + m - 1) // m * m


def _sigmoid(x):
    return 1.0 / (1.0 + jnp.exp(-x))


def _interleave_gates(m_r, m_h, H):
    """[*, 4H] x 2 -> [*, 8H] with columns [i_r|i_h|f_r|f_h|g_r|g_h|o_r|o_h]."""
    parts = []
    for k in range(4):
        parts.append(m_r[:, k * H:(k + 1) * H])
        parts.append(m_h[:, k * H:(k + 1) * H])
    return jnp.concatenate(parts, axis=1)


def gating_hybrid_forward(params, r, h, t_idx, s_idx, *,
                          recurrent_matmul_dtype=jnp.float32):
    """Pallas equivalent of GatingHybrid.forward(r, h, t, s) (inference).

    recurrent_matmul_dtype: set to jnp.bfloat16 on v6e/v7x to run the
    recurrent h@W_hh matmul with bf16 inputs (f32 accumulation).
    """
    f32 = jnp.float32
    r2 = (r[..., 0] if r.ndim == 3 else r).astype(f32)          # [B, Tr]
    h2 = (h[..., 0] if h.ndim == 3 else h).astype(f32)          # [B, Th]
    B, Tr = r2.shape
    _, Th = h2.shape
    T_max = max(Tr, Th)

    H = params["whh_r"].shape[0]
    H2, G4, G8 = 2 * H, 4 * H, 8 * H
    rec_dtype = jnp.dtype(recurrent_matmul_dtype)

    # ---------------- parameter repacking (tiny, wrapper-side) ----------------
    z_h4 = jnp.zeros((H, G4), f32)
    z_14 = jnp.zeros((1, G4), f32)
    whh_pack = _interleave_gates(
        jnp.concatenate([params["whh_r"], z_h4], axis=0),
        jnp.concatenate([z_h4, params["whh_h"]], axis=0), H)     # [2H, 8H]
    wih_r_pack = _interleave_gates(params["wih_r"], z_14, H)     # [1, 8H]
    wih_h_pack = _interleave_gates(z_14, params["wih_h"], H)     # [1, 8H]
    bias_pack = _interleave_gates(params["b_lr"], params["b_lh"], H)

    # Pre-scale the sigmoid gates (i, f, o) by 0.5 so one in-kernel tanh yields
    # both sigmoid (0.5*tanh+0.5) and tanh (g columns) activations.
    col = jnp.arange(G8)
    gate_scale = jnp.where((col >= 4 * H) & (col < 6 * H), 1.0, 0.5
                           ).astype(f32)[None, :]
    whh_pack = (whh_pack * gate_scale).astype(rec_dtype)
    wih_r_pack = wih_r_pack * gate_scale
    wih_h_pack = wih_h_pack * gate_scale
    bias_pack = bias_pack * gate_scale

    # fc_r1 / fc_h1 as one block-diagonal [2H, 32] matmul.
    w_rh = jnp.zeros((H2, 32), f32)
    w_rh = w_rh.at[:H, :16].set(params["w_r1"]).at[H:, 16:].set(params["w_h1"])
    b_rh = jnp.concatenate([params["b_r1"], params["b_h1"]], axis=1)   # [1, 32]

    # Embedding tables pre-multiplied by their fc_b1 segment -> lane-dense [*,128].
    hi = jax.lax.Precision.HIGHEST
    st_p = jnp.dot(params["st_tab"], params["w_b1_st"], precision=hi)
    n_st = st_p.shape[0]
    st_pad = _round_up(n_st, 128)
    st_p = jnp.pad(st_p, ((0, st_pad - n_st), (0, 0)))
    small = jnp.concatenate([
        jnp.dot(params["ts_tab"], params["w_b1_ts"], precision=hi),
        jnp.dot(params["dow_tab"], params["w_b1_dow"], precision=hi),
        jnp.dot(params["we_tab"], params["w_b1_we"], precision=hi)], axis=0)
    n_sm = small.shape[0]
    sm_pad = _round_up(n_sm, 8)
    small = jnp.pad(small, ((0, sm_pad - n_sm), (0, 0)))
    off_dow = params["ts_tab"].shape[0]
    off_we = off_dow + params["dow_tab"].shape[0]

    # 2-expert softmax == sigmoid(logit0 - logit1).
    w_gd = params["w_g"][:, 0:1] - params["w_g"][:, 1:2]          # [64, 1]
    b_gd = params["b_g"][:, 0:1] - params["b_g"][:, 1:2]          # [1, 1]

    # Fused index array: (station, timeslot, dow+off, weekend+off).
    idx = jnp.stack([s_idx[:, 0], t_idx[:, 0],
                     t_idx[:, 1] + off_dow, t_idx[:, 2] + off_we],
                    axis=1).astype(jnp.int32)                     # [B, 4]

    # ---------------- batch tiling ----------------
    B8 = _round_up(B, 8)
    if B8 <= 128:
        TB = B8                               # single tile
    elif B8 <= 512:
        TB = _round_up(pl.cdiv(B8, 2), 8)     # two tiles -> both v7x cores busy
    else:
        TB = 256                              # large-batch tile
    XP_BUDGET = 8 * 2**20                     # keep xp scratch v7x-VMEM friendly
    while TB > 8 and T_max * TB * G8 * 4 > XP_BUDGET:
        TB = max(8, _round_up(TB // 2, 8))
    nb = pl.cdiv(B, TB)
    B_total = nb * TB
    xp_bytes = T_max * TB * G8 * 4

    # Time-major, batch-tiled activations: [nb, T_max, TB] (no in-kernel transpose).
    def to_tiles(x2, T):
        xt = jnp.pad(x2, ((0, B_total - B), (0, T_max - T))).T   # [T_max, B_total]
        return xt.reshape(T_max, nb, TB).transpose(1, 0, 2)
    r3 = to_tiles(r2, Tr)
    h3 = to_tiles(h2, Th)
    idx = jnp.pad(idx, ((0, B_total - B), (0, 0)))

    # ---------------- fused kernel ----------------
    def kernel(r_ref, h_ref, idx_ref,
               wih_r_ref, wih_h_ref, bias_ref, whh_ref,
               w_rh_ref, b_rh_ref,
               st_ref, sm_ref, b_b1_ref,
               w_b2_ref, b_b2_ref, w_b3_ref, b_b3_ref,
               w_gd_ref, b_gd_ref,
               w_crt_ref, w_chv_ref, w_cfv_ref, b_c_ref,
               w_top_ref, b_top_ref,
               out_ref, xp_ref):
        relu = lambda x: jnp.maximum(x, 0.0)
        sigm = lambda x: 0.5 * jnp.tanh(0.5 * x) + 0.5            # one EUP op
        mm = lambda a, b: jnp.dot(a, b, preferred_element_type=f32)

        # Input->hidden projection for every timestep, both LSTMs fused
        # (input size is 1): xp[t] = r[t]*W_ih_r + h[t]*W_ih_h + bias.
        rt = r_ref[0]                                             # [T, TB]
        ht = h_ref[0]
        TB_ = rt.shape[1]
        xp_ref[...] = (rt[:, :, None] * wih_r_ref[...][None, :, :]
                       + ht[:, :, None] * wih_h_ref[...][None, :, :]
                       + bias_ref[...][None, :, :])               # [T, TB, 8H]

        whh = whh_ref[...]                                        # [2H, 8H]
        if Tr != Th:
            col_is_r = lax.broadcasted_iota(jnp.int32, (1, H2), 1) < H

        def step(t, carry):
            hs, cs = carry                                        # [TB, 2H] in vregs
            gates = xp_ref[t] + mm(hs.astype(whh.dtype), whh)     # [TB, 8H]
            tg = jnp.tanh(gates)                                  # i/f/o pre-scaled 0.5
            sg = 0.5 * tg + 0.5                                   # == sigmoid(i/f/o)
            i_g = sg[:, 0:H2]
            f_g = sg[:, H2:2 * H2]
            g_g = tg[:, 2 * H2:3 * H2]
            o_g = sg[:, 3 * H2:4 * H2]
            c_new = f_g * cs + i_g * g_g
            h_new = o_g * jnp.tanh(c_new)
            if Tr != Th:                  # freeze the shorter branch past its length
                active = jnp.where(col_is_r, t < Tr, t < Th)
                c_new = jnp.where(active, c_new, cs)
                h_new = jnp.where(active, h_new, hs)
            return h_new, c_new

        zeros = jnp.zeros((TB_, H2), f32)
        h_last, _ = lax.fori_loop(0, T_max, step, (zeros, zeros),
                                  unroll=True if T_max <= 16 else 8)

        # fc_r1 + fc_h1 (block-diagonal) — dropout == identity at inference.
        rh = relu(mm(h_last, w_rh_ref[...]) + b_rh_ref[...])      # [TB, 32]
        rt_vec = rh[:, 0:16]
        hv_vec = rh[:, 16:32]

        # Embeddings + fc_b1 as one-hot / multi-hot matmuls against the
        # pre-multiplied [rows, 128] tables (lane-dense, fully vectorized).
        st_hot = (lax.broadcasted_iota(jnp.int32, (TB_, st_ref.shape[0]), 1)
                  == idx_ref[:, 0:1]).astype(f32)
        sm_iota = lax.broadcasted_iota(jnp.int32, (TB_, sm_ref.shape[0]), 1)
        sm_hot = ((sm_iota == idx_ref[:, 1:2])
                  | (sm_iota == idx_ref[:, 2:3])
                  | (sm_iota == idx_ref[:, 3:4])).astype(f32)
        feat = relu(mm(st_hot, st_ref[...]) + mm(sm_hot, sm_ref[...])
                    + b_b1_ref[...])                              # [TB, 128]
        feat = relu(mm(feat, w_b2_ref[...]) + b_b2_ref[...])      # [TB, 64]
        feat = relu(mm(feat, w_b3_ref[...]) + b_b3_ref[...])      # [TB, 64]

        # 2-expert softmax == sigmoid of the logit difference.
        w0 = sigm(mm(feat, w_gd_ref[...]) + b_gd_ref[...])        # [TB, 1]
        rt_vec = rt_vec * w0
        hv_vec = hv_vec * (1.0 - w0)

        # fc_cat (split weights, no lane concat) + top + sigmoid.
        fc_out = relu(mm(rt_vec, w_crt_ref[...]) + mm(hv_vec, w_chv_ref[...])
                      + mm(feat, w_cfv_ref[...]) + b_c_ref[...])  # [TB, 64]
        out_ref[...] = sigm(mm(fc_out, w_top_ref[...])
                            + b_top_ref[...]).astype(out_ref.dtype)

    def rep(a):
        nd = a.ndim
        return pl.BlockSpec(a.shape, lambda b: (0,) * nd)

    operands = [
        (r3, pl.BlockSpec((1, T_max, TB), lambda b: (b, 0, 0))),
        (h3, pl.BlockSpec((1, T_max, TB), lambda b: (b, 0, 0))),
        (idx, pl.BlockSpec((TB, 4), lambda b: (b, 0))),
        (wih_r_pack, rep(wih_r_pack)),
        (wih_h_pack, rep(wih_h_pack)),
        (bias_pack, rep(bias_pack)),
        (whh_pack, rep(whh_pack)),
        (w_rh, rep(w_rh)),
        (b_rh, rep(b_rh)),
        (st_p, rep(st_p)),
        (small, rep(small)),
        (params["b_b1"], rep(params["b_b1"])),
        (params["w_b2"], rep(params["w_b2"])),
        (params["b_b2"], rep(params["b_b2"])),
        (params["w_b3"], rep(params["w_b3"])),
        (params["b_b3"], rep(params["b_b3"])),
        (w_gd, rep(w_gd)),
        (b_gd, rep(b_gd)),
        (params["w_c_rt"], rep(params["w_c_rt"])),
        (params["w_c_hv"], rep(params["w_c_hv"])),
        (params["w_c_fv"], rep(params["w_c_fv"])),
        (params["b_c"], rep(params["b_c"])),
        (params["w_top"], rep(params["w_top"])),
        (params["b_top"], rep(params["b_top"])),
    ]
    arrays = [a for a, _ in operands]

    flops = int(
        2 * B_total * T_max * H2 * G8
        + 2 * B_total * (st_pad + sm_pad) * 128
        + 2 * B_total * (H2 * 32 + 128 * 64 + 64 * 64 + 64
                         + 2 * 16 * 64 + 64 * 64 + 64))
    transcendentals = int(B_total * T_max * (G8 + H2) + 2 * B_total)
    bytes_accessed = int(sum(a.size * a.dtype.itemsize for a in arrays)
                         + B_total * 4)

    out = pl.pallas_call(
        kernel,
        out_shape=jax.ShapeDtypeStruct((B_total, 1), f32),
        grid_spec=pltpu.PrefetchScalarGridSpec(
            num_scalar_prefetch=0,
            grid=(nb,),
            in_specs=[s for _, s in operands],
            out_specs=pl.BlockSpec((TB, 1), lambda b: (b, 0)),
            scratch_shapes=[pltpu.VMEM((T_max, TB, G8), f32)],
        ),
        compiler_params=pltpu.CompilerParams(
            dimension_semantics=("parallel",),
            vmem_limit_bytes=int(min(56 * 2**20,
                                     max(32 * 2**20, xp_bytes + 24 * 2**20))),
        ),
        cost_estimate=pl.CostEstimate(
            flops=flops, transcendentals=transcendentals,
            bytes_accessed=bytes_accessed),
    )(*arrays)
    return out[:B]


def reference_forward(params, r, h, t_idx, s_idx):
    """Pure-JAX reference implementing the same math (inference mode)."""
    r2 = r[..., 0] if r.ndim == 3 else r
    h2 = h[..., 0] if h.ndim == 3 else h
    H = params["whh_r"].shape[0]

    def lstm_last(x, wih, whh, bias):
        B = x.shape[0]

        def step(carry, x_t):
            hp, cp = carry
            gates = x_t[:, None] * wih + hp @ whh + bias
            i = _sigmoid(gates[:, 0:H])
            f = _sigmoid(gates[:, H:2 * H])
            g = jnp.tanh(gates[:, 2 * H:3 * H])
            o = _sigmoid(gates[:, 3 * H:4 * H])
            c = f * cp + i * g
            return (o * jnp.tanh(c), c), None

        init = (jnp.zeros((B, H), jnp.float32), jnp.zeros((B, H), jnp.float32))
        (hT, _), _ = jax.lax.scan(step, init, x.T)
        return hT

    relu = lambda v: jnp.maximum(v, 0.0)
    realtime = relu(lstm_last(r2, params["wih_r"], params["whh_r"],
                              params["b_lr"]) @ params["w_r1"] + params["b_r1"])
    history = relu(lstm_last(h2, params["wih_h"], params["whh_h"],
                             params["b_lh"]) @ params["w_h1"] + params["b_h1"])

    st = params["st_tab"][s_idx[:, 0]]
    ts = params["ts_tab"][t_idx[:, 0]]
    dw = params["dow_tab"][t_idx[:, 1]]
    we = params["we_tab"][t_idx[:, 2]]
    fc_in = jnp.concatenate([st, ts, dw, we], axis=1)
    w_b1 = jnp.concatenate([params["w_b1_st"], params["w_b1_ts"],
                            params["w_b1_dow"], params["w_b1_we"]], axis=0)
    feat = relu(fc_in @ w_b1 + params["b_b1"])
    feat = relu(feat @ params["w_b2"] + params["b_b2"])
    feat = relu(feat @ params["w_b3"] + params["b_b3"])

    logits = feat @ params["w_g"] + params["b_g"]
    m = jnp.max(logits, axis=1, keepdims=True)
    e = jnp.exp(logits - m)
    wts = e / jnp.sum(e, axis=1, keepdims=True)
    realtime = realtime * wts[:, 0:1]
    history = history * wts[:, 1:2]

    cat = jnp.concatenate([realtime, history, feat], axis=1)
    w_cat = jnp.concatenate([params["w_c_rt"], params["w_c_hv"],
                             params["w_c_fv"]], axis=0)
    fc_out = relu(cat @ w_cat + params["b_c"])
    return _sigmoid(fc_out @ params["w_top"] + params["b_top"])


def init_params(key, hidden_size=32, station_embedding_dim=8, embedding_dim=8):
    H, SED, ED = hidden_size, station_embedding_dim, embedding_dim
    G4 = 4 * H
    keys = iter(jax.random.split(key, 40))

    def nrm(shape, scale=0.1):
        return scale * jax.random.normal(next(keys), shape, dtype=jnp.float32)

    return dict(
        # LSTM weights stored pre-transposed: W_ih as [1, 4H], W_hh as [H, 4H],
        # combined bias (b_ih + b_hh) as [1, 4H]; PyTorch gate order (i, f, g, o).
        wih_r=nrm((1, G4)), whh_r=nrm((H, G4)), b_lr=nrm((1, G4)),
        wih_h=nrm((1, G4)), whh_h=nrm((H, G4)), b_lh=nrm((1, G4)),
        w_r1=nrm((H, 16)), b_r1=nrm((1, 16)),
        w_h1=nrm((H, 16)), b_h1=nrm((1, 16)),
        st_tab=nrm((2000, SED), 1.0), ts_tab=nrm((48, ED), 1.0),
        dow_tab=nrm((7, ED), 1.0), we_tab=nrm((2, ED), 1.0),
        # fc_b1 weight split along its input (= concat of the 4 embeddings).
        w_b1_st=nrm((SED, 128)), w_b1_ts=nrm((ED, 128)),
        w_b1_dow=nrm((ED, 128)), w_b1_we=nrm((ED, 128)), b_b1=nrm((1, 128)),
        w_b2=nrm((128, 64)), b_b2=nrm((1, 64)),
        w_b3=nrm((64, 64)), b_b3=nrm((1, 64)),
        w_g=nrm((64, 2)), b_g=nrm((1, 2)),
        # fc_cat weight split along its input (= [realtime | history | feature]).
        w_c_rt=nrm((16, 64)), w_c_hv=nrm((16, 64)), w_c_fv=nrm((64, 64)),
        b_c=nrm((1, 64)),
        w_top=nrm((64, 1)), b_top=nrm((1, 1)),
    )


if __name__ == "__main__":
    key = jax.random.PRNGKey(0)
    k_param, k_r, k_h, k_ts, k_dow, k_we, k_st = jax.random.split(key, 7)

    B = 4          # batch
    SEQ = 8        # realtime / history sequence length
    HIDDEN = 32    # LSTM hidden size (fused gates: 8*H = 256-wide MXU output)
    SED = 8        # station embedding dim
    ED = 8         # timeslot / dow / weekend embedding dim

    params = init_params(k_param, HIDDEN, SED, ED)

    r = jax.random.normal(k_r, (B, SEQ, 1), dtype=jnp.float32)
    h = jax.random.normal(k_h, (B, SEQ, 1), dtype=jnp.float32)
    t_idx = jnp.concatenate([
        jax.random.randint(k_ts, (B, 1), 0, 48, dtype=jnp.int32),
        jax.random.randint(k_dow, (B, 1), 0, 7, dtype=jnp.int32),
        jax.random.randint(k_we, (B, 1), 0, 2, dtype=jnp.int32),
    ], axis=1)
    s_idx = jax.random.randint(k_st, (B, 1), 0, 2000, dtype=jnp.int32)

    out = gating_hybrid_forward(params, r, h, t_idx, s_idx)
    out = jax.block_until_ready(out)

    with jax.default_matmul_precision("highest"):
        ref = reference_forward(params, r, h, t_idx, s_idx)
    ref = jax.block_until_ready(ref)

    assert out.shape == (B, 1), out.shape
    assert jnp.allclose(out, ref, atol=1e-4, rtol=1e-4), (
        "mismatch vs reference: max abs err "
        f"{float(jnp.max(jnp.abs(out - ref)))}")

    print("KERNEL_OK")
</pallas_src>

<mosaic_0001>
module attributes {stable_mosaic.version = 11 : i64} {
  func.func @kernel(%arg0: i32, %arg1: memref<1x8x8xf32, #tpu.memory_space<vmem>>, %arg2: memref<1x8x8xf32, #tpu.memory_space<vmem>>, %arg3: memref<8x4xi32, #tpu.memory_space<vmem>>, %arg4: memref<1x256xf32, #tpu.memory_space<vmem>>, %arg5: memref<1x256xf32, #tpu.memory_space<vmem>>, %arg6: memref<1x256xf32, #tpu.memory_space<vmem>>, %arg7: memref<64x256xf32, #tpu.memory_space<vmem>>, %arg8: memref<64x32xf32, #tpu.memory_space<vmem>>, %arg9: memref<1x32xf32, #tpu.memory_space<vmem>>, %arg10: memref<2048x128xf32, #tpu.memory_space<vmem>>, %arg11: memref<64x128xf32, #tpu.memory_space<vmem>>, %arg12: memref<1x128xf32, #tpu.memory_space<vmem>>, %arg13: memref<128x64xf32, #tpu.memory_space<vmem>>, %arg14: memref<1x64xf32, #tpu.memory_space<vmem>>, %arg15: memref<64x64xf32, #tpu.memory_space<vmem>>, %arg16: memref<1x64xf32, #tpu.memory_space<vmem>>, %arg17: memref<64x1xf32, #tpu.memory_space<vmem>>, %arg18: memref<1x1xf32, #tpu.memory_space<vmem>>, %arg19: memref<16x64xf32, #tpu.memory_space<vmem>>, %arg20: memref<16x64xf32, #tpu.memory_space<vmem>>, %arg21: memref<64x64xf32, #tpu.memory_space<vmem>>, %arg22: memref<1x64xf32, #tpu.memory_space<vmem>>, %arg23: memref<64x1xf32, #tpu.memory_space<vmem>>, %arg24: memref<1x1xf32, #tpu.memory_space<vmem>>, %arg25: memref<8x1xf32, #tpu.memory_space<vmem>>, %arg26: memref<8x8x256xf32, #tpu.memory_space<vmem>>) attributes {dimension_semantics = [#tpu.dimension_semantics<parallel>], iteration_bounds = array<i64: 1>, scalar_prefetch = 0 : i64, scratch_operands = 1 : i64, tpu.core_type = #tpu.core_type<tc>, window_params = [{transform_indices = @transform_0, window_bounds = array<i64: 1, 8, 8>}, {transform_indices = @transform_1, window_bounds = array<i64: 1, 8, 8>}, {transform_indices = @transform_2, window_bounds = array<i64: 8, 4>}, {pipeline_mode = #tpu.pipeline_mode<synchronous>, transform_indices = @transform_3, window_bounds = array<i64: 1, 256>}, {pipeline_mode = #tpu.pipeline_mode<synchronous>, transform_indices = @transform_4, window_bounds = array<i64: 1, 256>}, {pipeline_mode = #tpu.pipeline_mode<synchronous>, transform_indices = @transform_5, window_bounds = array<i64: 1, 256>}, {pipeline_mode = #tpu.pipeline_mode<synchronous>, transform_indices = @transform_6, window_bounds = array<i64: 64, 256>}, {pipeline_mode = #tpu.pipeline_mode<synchronous>, transform_indices = @transform_7, window_bounds = array<i64: 64, 32>}, {pipeline_mode = #tpu.pipeline_mode<synchronous>, transform_indices = @transform_8, window_bounds = array<i64: 1, 32>}, {pipeline_mode = #tpu.pipeline_mode<synchronous>, transform_indices = @transform_9, window_bounds = array<i64: 2048, 128>}, {pipeline_mode = #tpu.pipeline_mode<synchronous>, transform_indices = @transform_10, window_bounds = array<i64: 64, 128>}, {pipeline_mode = #tpu.pipeline_mode<synchronous>, transform_indices = @transform_11, window_bounds = array<i64: 1, 128>}, {pipeline_mode = #tpu.pipeline_mode<synchronous>, transform_indices = @transform_12, window_bounds = array<i64: 128, 64>}, {pipeline_mode = #tpu.pipeline_mode<synchronous>, transform_indices = @transform_13, window_bounds = array<i64: 1, 64>}, {pipeline_mode = #tpu.pipeline_mode<synchronous>, transform_indices = @transform_14, window_bounds = array<i64: 64, 64>}, {pipeline_mode = #tpu.pipeline_mode<synchronous>, transform_indices = @transform_15, window_bounds = array<i64: 1, 64>}, {pipeline_mode = #tpu.pipeline_mode<synchronous>, transform_indices = @transform_16, window_bounds = array<i64: 64, 1>}, {pipeline_mode = #tpu.pipeline_mode<synchronous>, transform_indices = @transform_17, window_bounds = array<i64: 1, 1>}, {pipeline_mode = #tpu.pipeline_mode<synchronous>, transform_indices = @transform_18, window_bounds = array<i64: 16, 64>}, {pipeline_mode = #tpu.pipeline_mode<synchronous>, transform_indices = @transform_19, window_bounds = array<i64: 16, 64>}, {pipeline_mode = #tpu.pipeline_mode<synchronous>, transform_indices = @transform_20, window_bounds = array<i64: 64, 64>}, {pipeline_mode = #tpu.pipeline_mode<synchronous>, transform_indices = @transform_21, window_bounds = array<i64: 1, 64>}, {pipeline_mode = #tpu.pipeline_mode<synchronous>, transform_indices = @transform_22, window_bounds = array<i64: 64, 1>}, {pipeline_mode = #tpu.pipeline_mode<synchronous>, transform_indices = @transform_23, window_bounds = array<i64: 1, 1>}, {transform_indices = @transform_24, window_bounds = array<i64: 8, 1>}]} {
    %c0 = arith.constant 0 : index
    %c0_0 = arith.constant 0 : index
    %c0_1 = arith.constant 0 : index
    %0 = vector.load %arg1[%c0, %c0_0, %c0_1] : memref<1x8x8xf32, #tpu.memory_space<vmem>>, vector<1x8x8xf32>
    %1 = vector.shape_cast %0 : vector<1x8x8xf32> to vector<8x8xf32>
    %c0_2 = arith.constant 0 : index
    %c0_3 = arith.constant 0 : index
    %c0_4 = arith.constant 0 : index
    %2 = vector.load %arg2[%c0_2, %c0_3, %c0_4] : memref<1x8x8xf32, #tpu.memory_space<vmem>>, vector<1x8x8xf32>
    %3 = vector.shape_cast %2 : vector<1x8x8xf32> to vector<8x8xf32>
    %4 = vector.shape_cast %1 : vector<8x8xf32> to vector<8x8x1xf32>
    %c0_5 = arith.constant 0 : index
    %c0_6 = arith.constant 0 : index
    %5 = vector.load %arg4[%c0_5, %c0_6] : memref<1x256xf32, #tpu.memory_space<vmem>>, vector<1x256xf32>
    %6 = vector.shape_cast %5 : vector<1x256xf32> to vector<1x1x256xf32>
    %7 = vector.broadcast %4 : vector<8x8x1xf32> to vector<8x8x256xf32>
    %8 = vector.broadcast %6 : vector<1x1x256xf32> to vector<8x8x256xf32>
    %9 = arith.mulf %7, %8 : vector<8x8x256xf32>
    %10 = vector.shape_cast %3 : vector<8x8xf32> to vector<8x8x1xf32>
    %c0_7 = arith.constant 0 : index
    %c0_8 = arith.constant 0 : index
    %11 = vector.load %arg5[%c0_7, %c0_8] : memref<1x256xf32, #tpu.memory_space<vmem>>, vector<1x256xf32>
    %12 = vector.shape_cast %11 : vector<1x256xf32> to vector<1x1x256xf32>
    %13 = vector.broadcast %10 : vector<8x8x1xf32> to vector<8x8x256xf32>
    %14 = vector.broadcast %12 : vector<1x1x256xf32> to vector<8x8x256xf32>
    %15 = arith.mulf %13, %14 : vector<8x8x256xf32>
    %16 = arith.addf %9, %15 : vector<8x8x256xf32>
    %c0_9 = arith.constant 0 : index
    %c0_10 = arith.constant 0 : index
    %17 = vector.load %arg6[%c0_9, %c0_10] : memref<1x256xf32, #tpu.memory_space<vmem>>, vector<1x256xf32>
    %18 = vector.shape_cast %17 : vector<1x256xf32> to vector<1x1x256xf32>
    %19 = vector.broadcast %18 : vector<1x1x256xf32> to vector<8x8x256xf32>
    %20 = arith.addf %16, %19 : vector<8x8x256xf32>
    %c0_11 = arith.constant 0 : index
    %c0_12 = arith.constant 0 : index
    %c0_13 = arith.constant 0 : index
    %21 = vector.load %arg26[%c0_11, %c0_12, %c0_13] : memref<8x8x256xf32, #tpu.memory_space<vmem>>, vector<8x8x256xf32>
    tpu.vector_store %arg26[%c0_11, %c0_12, %c0_13], %20 {strides = array<i32>} : memref<8x8x256xf32, #tpu.memory_space<vmem>>, vector<8x8x256xf32>,
    %c0_14 = arith.constant 0 : index
    %c0_15 = arith.constant 0 : index
    %22 = vector.load %arg7[%c0_14, %c0_15] : memref<64x256xf32, #tpu.memory_space<vmem>>, vector<64x256xf32>
    %cst = arith.constant 0.000000e+00 : f32
    %23 = vector.broadcast %cst : f32 to vector<8x64xf32>
    %c0_i32 = arith.constant 0 : i32
    %24 = arith.index_cast %c0_i32 : i32 to index
    %c0_16 = arith.constant 0 : index
    %c0_17 = arith.constant 0 : index
    %25 = vector.load %arg26[%24, %c0_16, %c0_17] : memref<8x8x256xf32, #tpu.memory_space<vmem>>, vector<1x8x256xf32>
    %26 = vector.shape_cast %25 : vector<1x8x256xf32> to vector<8x256xf32>
    %cst_18 = arith.constant dense<0.000000e+00> : vector<8x256xf32>
    %27 = tpu.matmul %23, %22, %cst_18 {dimension_numbers = #tpu.dot_dimension_numbers<[1], [0], [0], [1], [0, 0, 1, 1], [], []>} : vector<8x64xf32>, vector<64x256xf32>, vector<8x256xf32> -> vector<8x256xf32>
    %28 = arith.addf %26, %27 : vector<8x256xf32>
    %29 = math.tanh %28 : vector<8x256xf32>
    %cst_19 = arith.constant 5.000000e-01 : f32
    %30 = vector.broadcast %cst_19 : f32 to vector<8x256xf32>
    %31 = arith.mulf %30, %29 : vector<8x256xf32>
    %cst_20 = arith.constant 5.000000e-01 : f32
    %32 = vector.broadcast %cst_20 : f32 to vector<8x256xf32>
    %33 = arith.addf %31, %32 : vector<8x256xf32>
    %34 = vector.extract_strided_slice %33 {offsets = [0, 0], sizes = [8, 64], strides = [1, 1]} : vector<8x256xf32> to vector<8x64xf32>
    %35 = vector.extract_strided_slice %33 {offsets = [0, 64], sizes = [8, 64], strides = [1, 1]} : vector<8x256xf32> to vector<8x64xf32>
    %36 = vector.extract_strided_slice %29 {offsets = [0, 128], sizes = [8, 64], strides = [1, 1]} : vector<8x256xf32> to vector<8x64xf32>
    %37 = vector.extract_strided_slice %33 {offsets = [0, 192], sizes = [8, 64], strides = [1, 1]} : vector<8x256xf32> to vector<8x64xf32>
    %38 = arith.mulf %35, %23 : vector<8x64xf32>
    %39 = arith.mulf %34, %36 : vector<8x64xf32>
    %40 = arith.addf %38, %39 : vector<8x64xf32>
    %41 = math.tanh %40 : vector<8x64xf32>
    %42 = arith.mulf %37, %41 : vector<8x64xf32>
    %c1_i32 = arith.constant 1 : i32
    %43 = arith.index_cast %c1_i32 : i32 to index
    %c0_21 = arith.constant 0 : index
    %c0_22 = arith.constant 0 : index
    %44 = vector.load %arg26[%43, %c0_21, %c0_22] : memref<8x8x256xf32, #tpu.memory_space<vmem>>, vector<1x8x256xf32>
    %45 = vector.shape_cast %44 : vector<1x8x256xf32> to vector<8x256xf32>
    %cst_23 = arith.constant dense<0.000000e+00> : vector<8x256xf32>
    %46 = tpu.matmul %42, %22, %cst_23 {dimension_numbers = #tpu.dot_dimension_numbers<[1], [0], [0], [1], [0, 0, 1, 1], [], []>} : vector<8x64xf32>, vector<64x256xf32>, vector<8x256xf32> -> vector<8x256xf32>
    %47 = arith.addf %45, %46 : vector<8x256xf32>
    %48 = math.tanh %47 : vector<8x256xf32>
    %cst_24 = arith.constant 5.000000e-01 : f32
    %49 = vector.broadcast %cst_24 : f32 to vector<8x256xf32>
    %50 = arith.mulf %49, %48 : vector<8x256xf32>
    %cst_25 = arith.constant 5.000000e-01 : f32
    %51 = vector.broadcast %cst_25 : f32 to vector<8x256xf32>
    %52 = arith.addf %50, %51 : vector<8x256xf32>
    %53 = vector.extract_strided_slice %52 {offsets = [0, 0], sizes = [8, 64], strides = [1, 1]} : vector<8x256xf32> to vector<8x64xf32>
    %54 = vector.extract_strided_slice %52 {offsets = [0, 64], sizes = [8, 64], strides = [1, 1]} : vector<8x256xf32> to vector<8x64xf32>
    %55 = vector.extract_strided_slice %48 {offsets = [0, 128], sizes = [8, 64], strides = [1, 1]} : vector<8x256xf32> to vector<8x64xf32>
    %56 = vector.extract_strided_slice %52 {offsets = [0, 192], sizes = [8, 64], strides = [1, 1]} : vector<8x256xf32> to vector<8x64xf32>
    %57 = arith.mulf %54, %40 : vector<8x64xf32>
    %58 = arith.mulf %53, %55 : vector<8x64xf32>
    %59 = arith.addf %57, %58 : vector<8x64xf32>
    %60 = math.tanh %59 : vector<8x64xf32>
    %61 = arith.mulf %56, %60 : vector<8x64xf32>
    %c2_i32 = arith.constant 2 : i32
    %62 = arith.index_cast %c2_i32 : i32 to index
    %c0_26 = arith.constant 0 : index
    %c0_27 = arith.constant 0 : index
    %63 = vector.load %arg26[%62, %c0_26, %c0_27] : memref<8x8x256xf32, #tpu.memory_space<vmem>>, vector<1x8x256xf32>
    %64 = vector.shape_cast %63 : vector<1x8x256xf32> to vector<8x256xf32>
    %cst_28 = arith.constant dense<0.000000e+00> : vector<8x256xf32>
    %65 = tpu.matmul %61, %22, %cst_28 {dimension_numbers = #tpu.dot_dimension_numbers<[1], [0], [0], [1], [0, 0, 1, 1], [], []>} : vector<8x64xf32>, vector<64x256xf32>, vector<8x256xf32> -> vector<8x256xf32>
    %66 = arith.addf %64, %65 : vector<8x256xf32>
    %67 = math.tanh %66 : vector<8x256xf32>
    %cst_29 = arith.constant 5.000000e-01 : f32
    %68 = vector.broadcast %cst_29 : f32 to vector<8x256xf32>
    %69 = arith.mulf %68, %67 : vector<8x256xf32>
    %cst_30 = arith.constant 5.000000e-01 : f32
    %70 = vector.broadcast %cst_30 : f32 to vector<8x256xf32>
    %71 = arith.addf %69, %70 : vector<8x256xf32>
    %72 = vector.extract_strided_slice %71 {offsets = [0, 0], sizes = [8, 64], strides = [1, 1]} : vector<8x256xf32> to vector<8x64xf32>
    %73 = vector.extract_strided_slice %71 {offsets = [0, 64], sizes = [8, 64], strides = [1, 1]} : vector<8x256xf32> to vector<8x64xf32>
    %74 = vector.extract_strided_slice %67 {offsets = [0, 128], sizes = [8, 64], strides = [1, 1]} : vector<8x256xf32> to vector<8x64xf32>
    %75 = vector.extract_strided_slice %71 {offsets = [0, 192], sizes = [8, 64], strides = [1, 1]} : vector<8x256xf32> to vector<8x64xf32>
    %76 = arith.mulf %73, %59 : vector<8x64xf32>
    %77 = arith.mulf %72, %74 : vector<8x64xf32>
    %78 = arith.addf %76, %77 : vector<8x64xf32>
    %79 = math.tanh %78 : vector<8x64xf32>
    %80 = arith.mulf %75, %79 : vector<8x64xf32>
    %c3_i32 = arith.constant 3 : i32
    %81 = arith.index_cast %c3_i32 : i32 to index
    %c0_31 = arith.constant 0 : index
    %c0_32 = arith.constant 0 : index
    %82 = vector.load %arg26[%81, %c0_31, %c0_32] : memref<8x8x256xf32, #tpu.memory_space<vmem>>, vector<1x8x256xf32>
    %83 = vector.shape_cast %82 : vector<1x8x256xf32> to vector<8x256xf32>
    %cst_33 = arith.constant dense<0.000000e+00> : vector<8x256xf32>
    %84 = tpu.matmul %80, %22, %cst_33 {dimension_numbers = #tpu.dot_dimension_numbers<[1], [0], [0], [1], [0, 0, 1, 1], [], []>} : vector<8x64xf32>, vector<64x256xf32>, vector<8x256xf32> -> vector<8x256xf32>
    %85 = arith.addf %83, %84 : vector<8x256xf32>
    %86 = math.tanh %85 : vector<8x256xf32>
    %cst_34 = arith.constant 5.000000e-01 : f32
    %87 = vector.broadcast %cst_34 : f32 to vector<8x256xf32>
    %88 = arith.mulf %87, %86 : vector<8x256xf32>
    %cst_35 = arith.constant 5.000000e-01 : f32
    %89 = vector.broadcast %cst_35 : f32 to vector<8x256xf32>
    %90 = arith.addf %88, %89 : vector<8x256xf32>
    %91 = vector.extract_strided_slice %90 {offsets = [0, 0], sizes = [8, 64], strides = [1, 1]} : vector<8x256xf32> to vector<8x64xf32>
    %92 = vector.extract_strided_slice %90 {offsets = [0, 64], sizes = [8, 64], strides = [1, 1]} : vector<8x256xf32> to vector<8x64xf32>
    %93 = vector.extract_strided_slice %86 {offsets = [0, 128], sizes = [8, 64], strides = [1, 1]} : vector<8x256xf32> to vector<8x64xf32>
    %94 = vector.extract_strided_slice %90 {offsets = [0, 192], sizes = [8, 64], strides = [1, 1]} : vector<8x256xf32> to vector<8x64xf32>
    %95 = arith.mulf %92, %78 : vector<8x64xf32>
    %96 = arith.mulf %91, %93 : vector<8x64xf32>
    %97 = arith.addf %95, %96 : vector<8x64xf32>
    %98 = math.tanh %97 : vector<8x64xf32>
    %99 = arith.mulf %94, %98 : vector<8x64xf32>
    %c4_i32 = arith.constant 4 : i32
    %100 = arith.index_cast %c4_i32 : i32 to index
    %c0_36 = arith.constant 0 : index
    %c0_37 = arith.constant 0 : index
    %101 = vector.load %arg26[%100, %c0_36, %c0_37] : memref<8x8x256xf32, #tpu.memory_space<vmem>>, vector<1x8x256xf32>
    %102 = vector.shape_cast %101 : vector<1x8x256xf32> to vector<8x256xf32>
    %cst_38 = arith.constant dense<0.000000e+00> : vector<8x256xf32>
    %103 = tpu.matmul %99, %22, %cst_38 {dimension_numbers = #tpu.dot_dimension_numbers<[1], [0], [0], [1], [0, 0, 1, 1], [], []>} : vector<8x64xf32>, vector<64x256xf32>, vector<8x256xf32> -> vector<8x256xf32>
    %104 = arith.addf %102, %103 : vector<8x256xf32>
    %105 = math.tanh %104 : vector<8x256xf32>
    %cst_39 = arith.constant 5.000000e-01 : f32
    %106 = vector.broadcast %cst_39 : f32 to vector<8x256xf32>
    %107 = arith.mulf %106, %105 : vector<8x256xf32>
    %cst_40 = arith.constant 5.000000e-01 : f32
    %108 = vector.broadcast %cst_40 : f32 to vector<8x256xf32>
    %109 = arith.addf %107, %108 : vector<8x256xf32>
    %110 = vector.extract_strided_slice %109 {offsets = [0, 0], sizes = [8, 64], strides = [1, 1]} : vector<8x256xf32> to vector<8x64xf32>
    %111 = vector.extract_strided_slice %109 {offsets = [0, 64], sizes = [8, 64], strides = [1, 1]} : vector<8x256xf32> to vector<8x64xf32>
    %112 = vector.extract_strided_slice %105 {offsets = [0, 128], sizes = [8, 64], strides = [1, 1]} : vector<8x256xf32> to vector<8x64xf32>
    %113 = vector.extract_strided_slice %109 {offsets = [0, 192], sizes = [8, 64], strides = [1, 1]} : vector<8x256xf32> to vector<8x64xf32>
    %114 = arith.mulf %111, %97 : vector<8x64xf32>
    %115 = arith.mulf %110, %112 : vector<8x64xf32>
    %116 = arith.addf %114, %115 : vector<8x64xf32>
    %117 = math.tanh %116 : vector<8x64xf32>
    %118 = arith.mulf %113, %117 : vector<8x64xf32>
    %c5_i32 = arith.constant 5 : i32
    %119 = arith.index_cast %c5_i32 : i32 to index
    %c0_41 = arith.constant 0 : index
    %c0_42 = arith.constant 0 : index
    %120 = vector.load %arg26[%119, %c0_41, %c0_42] : memref<8x8x256xf32, #tpu.memory_space<vmem>>, vector<1x8x256xf32>
    %121 = vector.shape_cast %120 : vector<1x8x256xf32> to vector<8x256xf32>
    %cst_43 = arith.constant dense<0.000000e+00> : vector<8x256xf32>
    %122 = tpu.matmul %118, %22, %cst_43 {dimension_numbers = #tpu.dot_dimension_numbers<[1], [0], [0], [1], [0, 0, 1, 1], [], []>} : vector<8x64xf32>, vector<64x256xf32>, vector<8x256xf32> -> vector<8x256xf32>
    %123 = arith.addf %121, %122 : vector<8x256xf32>
    %124 = math.tanh %123 : vector<8x256xf32>
    %cst_44 = arith.constant 5.000000e-01 : f32
    %125 = vector.broadcast %cst_44 : f32 to vector<8x256xf32>
    %126 = arith.mulf %125, %124 : vector<8x256xf32>
    %cst_45 = arith.constant 5.000000e-01 : f32
    %127 = vector.broadcast %cst_45 : f32 to vector<8x256xf32>
    %128 = arith.addf %126, %127 : vector<8x256xf32>
    %129 = vector.extract_strided_slice %128 {offsets = [0, 0], sizes = [8, 64], strides = [1, 1]} : vector<8x256xf32> to vector<8x64xf32>
    %130 = vector.extract_strided_slice %128 {offsets = [0, 64], sizes = [8, 64], strides = [1, 1]} : vector<8x256xf32> to vector<8x64xf32>
    %131 = vector.extract_strided_slice %124 {offsets = [0, 128], sizes = [8, 64], strides = [1, 1]} : vector<8x256xf32> to vector<8x64xf32>
    %132 = vector.extract_strided_slice %128 {offsets = [0, 192], sizes = [8, 64], strides = [1, 1]} : vector<8x256xf32> to vector<8x64xf32>
    %133 = arith.mulf %130, %116 : vector<8x64xf32>
    %134 = arith.mulf %129, %131 : vector<8x64xf32>
    %135 = arith.addf %133, %134 : vector<8x64xf32>
    %136 = math.tanh %135 : vector<8x64xf32>
    %137 = arith.mulf %132, %136 : vector<8x64xf32>
    %c6_i32 = arith.constant 6 : i32
    %138 = arith.index_cast %c6_i32 : i32 to index
    %c0_46 = arith.constant 0 : index
    %c0_47 = arith.constant 0 : index
    %139 = vector.load %arg26[%138, %c0_46, %c0_47] : memref<8x8x256xf32, #tpu.memory_space<vmem>>, vector<1x8x256xf32>
    %140 = vector.shape_cast %139 : vector<1x8x256xf32> to vector<8x256xf32>
    %cst_48 = arith.constant dense<0.000000e+00> : vector<8x256xf32>
    %141 = tpu.matmul %137, %22, %cst_48 {dimension_numbers = #tpu.dot_dimension_numbers<[1], [0], [0], [1], [0, 0, 1, 1], [], []>} : vector<8x64xf32>, vector<64x256xf32>, vector<8x256xf32> -> vector<8x256xf32>
    %142 = arith.addf %140, %141 : vector<8x256xf32>
    %143 = math.tanh %142 : vector<8x256xf32>
    %cst_49 = arith.constant 5.000000e-01 : f32
    %144 = vector.broadcast %cst_49 : f32 to vector<8x256xf32>
    %145 = arith.mulf %144, %143 : vector<8x256xf32>
    %cst_50 = arith.constant 5.000000e-01 : f32
    %146 = vector.broadcast %cst_50 : f32 to vector<8x256xf32>
    %147 = arith.addf %145, %146 : vector<8x256xf32>
    %148 = vector.extract_strided_slice %147 {offsets = [0, 0], sizes = [8, 64], strides = [1, 1]} : vector<8x256xf32> to vector<8x64xf32>
    %149 = vector.extract_strided_slice %147 {offsets = [0, 64], sizes = [8, 64], strides = [1, 1]} : vector<8x256xf32> to vector<8x64xf32>
    %150 = vector.extract_strided_slice %143 {offsets = [0, 128], sizes = [8, 64], strides = [1, 1]} : vector<8x256xf32> to vector<8x64xf32>
    %151 = vector.extract_strided_slice %147 {offsets = [0, 192], sizes = [8, 64], strides = [1, 1]} : vector<8x256xf32> to vector<8x64xf32>
    %152 = arith.mulf %149, %135 : vector<8x64xf32>
    %153 = arith.mulf %148, %150 : vector<8x64xf32>
    %154 = arith.addf %152, %153 : vector<8x64xf32>
    %155 = math.tanh %154 : vector<8x64xf32>
    %156 = arith.mulf %151, %155 : vector<8x64xf32>
    %c7_i32 = arith.constant 7 : i32
    %157 = arith.index_cast %c7_i32 : i32 to index
    %c0_51 = arith.constant 0 : index
    %c0_52 = arith.constant 0 : index
    %158 = vector.load %arg26[%157, %c0_51, %c0_52] : memref<8x8x256xf32, #tpu.memory_space<vmem>>, vector<1x8x256xf32>
    %159 = vector.shape_cast %158 : vector<1x8x256xf32> to vector<8x256xf32>
    %cst_53 = arith.constant dense<0.000000e+00> : vector<8x256xf32>
    %160 = tpu.matmul %156, %22, %cst_53 {dimension_numbers = #tpu.dot_dimension_numbers<[1], [0], [0], [1], [0, 0, 1, 1], [], []>} : vector<8x64xf32>, vector<64x256xf32>, vector<8x256xf32> -> vector<8x256xf32>
    %161 = arith.addf %159, %160 : vector<8x256xf32>
    %162 = math.tanh %161 : vector<8x256xf32>
    %cst_54 = arith.constant 5.000000e-01 : f32
    %163 = vector.broadcast %cst_54 : f32 to vector<8x256xf32>
    %164 = arith.mulf %163, %162 : vector<8x256xf32>
    %cst_55 = arith.constant 5.000000e-01 : f32
    %165 = vector.broadcast %cst_55 : f32 to vector<8x256xf32>
    %166 = arith.addf %164, %165 : vector<8x256xf32>
    %167 = vector.extract_strided_slice %166 {offsets = [0, 0], sizes = [8, 64], strides = [1, 1]} : vector<8x256xf32> to vector<8x64xf32>
    %168 = vector.extract_strided_slice %166 {offsets = [0, 64], sizes = [8, 64], strides = [1, 1]} : vector<8x256xf32> to vector<8x64xf32>
    %169 = vector.extract_strided_slice %162 {offsets = [0, 128], sizes = [8, 64], strides = [1, 1]} : vector<8x256xf32> to vector<8x64xf32>
    %170 = vector.extract_strided_slice %166 {offsets = [0, 192], sizes = [8, 64], strides = [1, 1]} : vector<8x256xf32> to vector<8x64xf32>
    %171 = arith.mulf %168, %154 : vector<8x64xf32>
    %172 = arith.mulf %167, %169 : vector<8x64xf32>
    %173 = arith.addf %171, %172 : vector<8x64xf32>
    %174 = math.tanh %173 : vector<8x64xf32>
    %175 = arith.mulf %170, %174 : vector<8x64xf32>
    %c8_i32 = arith.constant 8 : i32
    %c0_56 = arith.constant 0 : index
    %c0_57 = arith.constant 0 : index
    %176 = vector.load %arg8[%c0_56, %c0_57] : memref<64x32xf32, #tpu.memory_space<vmem>>, vector<64x32xf32>
    %cst_58 = arith.constant dense<0.000000e+00> : vector<8x32xf32>
    %177 = tpu.matmul %175, %176, %cst_58 {dimension_numbers = #tpu.dot_dimension_numbers<[1], [0], [0], [1], [0, 0, 1, 1], [], []>} : vector<8x64xf32>, vector<64x32xf32>, vector<8x32xf32> -> vector<8x32xf32>
    %c0_59 = arith.constant 0 : index
    %c0_60 = arith.constant 0 : index
    %178 = vector.load %arg9[%c0_59, %c0_60] : memref<1x32xf32, #tpu.memory_space<vmem>>, vector<1x32xf32>
    %179 = vector.broadcast %178 : vector<1x32xf32> to vector<8x32xf32>
    %180 = arith.addf %177, %179 : vector<8x32xf32>
    %cst_61 = arith.constant 0.000000e+00 : f32
    %181 = vector.broadcast %cst_61 : f32 to vector<8x32xf32>
    %182 = arith.maximumf %180, %181 : vector<8x32xf32>
    %183 = vector.extract_strided_slice %182 {offsets = [0, 0], sizes = [8, 16], strides = [1, 1]} : vector<8x32xf32> to vector<8x16xf32>
    %184 = vector.extract_strided_slice %182 {offsets = [0, 16], sizes = [8, 16], strides = [1, 1]} : vector<8x32xf32> to vector<8x16xf32>
    %185 = tpu.iota {dimensions = array<i32: 1>} : vector<8x2048xi32>
    %c0_62 = arith.constant 0 : index
    %c0_63 = arith.constant 0 : index
    %186 = vector.load %arg3[%c0_62, %c0_63] : memref<8x4xi32, #tpu.memory_space<vmem>>, vector<8x1xi32>
    %187 = vector.broadcast %186 : vector<8x1xi32> to vector<8x2048xi32>
    %188 = arith.cmpi eq, %185, %187 : vector<8x2048xi32>
    %189 = arith.extui %188 : vector<8x2048xi1> to vector<8x2048xi32>
    %190 = arith.sitofp %189 : vector<8x2048xi32> to vector<8x2048xf32>
    %191 = tpu.iota {dimensions = array<i32: 1>} : vector<8x64xi32>
    %c0_64 = arith.constant 0 : index
    %c1 = arith.constant 1 : index
    %192 = vector.load %arg3[%c0_64, %c1] : memref<8x4xi32, #tpu.memory_space<vmem>>, vector<8x1xi32>
    %193 = vector.broadcast %192 : vector<8x1xi32> to vector<8x64xi32>
    %194 = arith.cmpi eq, %191, %193 : vector<8x64xi32>
    %c0_65 = arith.constant 0 : index
    %c2 = arith.constant 2 : index
    %195 = vector.load %arg3[%c0_65, %c2] : memref<8x4xi32, #tpu.memory_space<vmem>>, vector<8x1xi32>
    %196 = vector.broadcast %195 : vector<8x1xi32> to vector<8x64xi32>
    %197 = arith.cmpi eq, %191, %196 : vector<8x64xi32>
    %198 = arith.ori %194, %197 : vector<8x64xi1>
    %c0_66 = arith.constant 0 : index
    %c3 = arith.constant 3 : index
    %199 = vector.load %arg3[%c0_66, %c3] : memref<8x4xi32, #tpu.memory_space<vmem>>, vector<8x1xi32>
    %200 = vector.broadcast %199 : vector<8x1xi32> to vector<8x64xi32>
    %201 = arith.cmpi eq, %191, %200 : vector<8x64xi32>
    %202 = arith.ori %198, %201 : vector<8x64xi1>
    %203 = arith.extui %202 : vector<8x64xi1> to vector<8x64xi32>
    %204 = arith.sitofp %203 : vector<8x64xi32> to vector<8x64xf32>
    %c0_67 = arith.constant 0 : index
    %c0_68 = arith.constant 0 : index
    %205 = vector.load %arg10[%c0_67, %c0_68] : memref<2048x128xf32, #tpu.memory_space<vmem>>, vector<2048x128xf32>
    %cst_69 = arith.constant dense<0.000000e+00> : vector<8x128xf32>
    %206 = tpu.matmul %190, %205, %cst_69 {dimension_numbers = #tpu.dot_dimension_numbers<[1], [0], [0], [1], [0, 0, 1, 1], [], []>} : vector<8x2048xf32>, vector<2048x128xf32>, vector<8x128xf32> -> vector<8x128xf32>
    %c0_70 = arith.constant 0 : index
    %c0_71 = arith.constant 0 : index
    %207 = vector.load %arg11[%c0_70, %c0_71] : memref<64x128xf32, #tpu.memory_space<vmem>>, vector<64x128xf32>
    %cst_72 = arith.constant dense<0.000000e+00> : vector<8x128xf32>
    %208 = tpu.matmul %204, %207, %cst_72 {dimension_numbers = #tpu.dot_dimension_numbers<[1], [0], [0], [1], [0, 0, 1, 1], [], []>} : vector<8x64xf32>, vector<64x128xf32>, vector<8x128xf32> -> vector<8x128xf32>
    %209 = arith.addf %206, %208 : vector<8x128xf32>
    %c0_73 = arith.constant 0 : index
    %c0_74 = arith.constant 0 : index
    %210 = vector.load %arg12[%c0_73, %c0_74] : memref<1x128xf32, #tpu.memory_space<vmem>>, vector<1x128xf32>
    %211 = vector.broadcast %210 : vector<1x128xf32> to vector<8x128xf32>
    %212 = arith.addf %209, %211 : vector<8x128xf32>
    %cst_75 = arith.constant 0.000000e+00 : f32
    %213 = vector.broadcast %cst_75 : f32 to vector<8x128xf32>
    %214 = arith.maximumf %212, %213 : vector<8x128xf32>
    %c0_76 = arith.constant 0 : index
    %c0_77 = arith.constant 0 : index
    %215 = vector.load %arg13[%c0_76, %c0_77] : memref<128x64xf32, #tpu.memory_space<vmem>>, vector<128x64xf32>
    %cst_78 = arith.constant dense<0.000000e+00> : vector<8x64xf32>
    %216 = tpu.matmul %214, %215, %cst_78 {dimension_numbers = #tpu.dot_dimension_numbers<[1], [0], [0], [1], [0, 0, 1, 1], [], []>} : vector<8x128xf32>, vector<128x64xf32>, vector<8x64xf32> -> vector<8x64xf32>
    %c0_79 = arith.constant 0 : index
    %c0_80 = arith.constant 0 : index
    %217 = vector.load %arg14[%c0_79, %c0_80] : memref<1x64xf32, #tpu.memory_space<vmem>>, vector<1x64xf32>
    %218 = vector.broadcast %217 : vector<1x64xf32> to vector<8x64xf32>
    %219 = arith.addf %216, %218 : vector<8x64xf32>
    %cst_81 = arith.constant 0.000000e+00 : f32
    %220 = vector.broadcast %cst_81 : f32 to vector<8x64xf32>
    %221 = arith.maximumf %219, %220 : vector<8x64xf32>
    %c0_82 = arith.constant 0 : index
    %c0_83 = arith.constant 0 : index
    %222 = vector.load %arg15[%c0_82, %c0_83] : memref<64x64xf32, #tpu.memory_space<vmem>>, vector<64x64xf32>
    %cst_84 = arith.constant dense<0.000000e+00> : vector<8x64xf32>
    %223 = tpu.matmul %221, %222, %cst_84 {dimension_numbers = #tpu.dot_dimension_numbers<[1], [0], [0], [1], [0, 0, 1, 1], [], []>} : vector<8x64xf32>, vector<64x64xf32>, vector<8x64xf32> -> vector<8x64xf32>
    %c0_85 = arith.constant 0 : index
    %c0_86 = arith.constant 0 : index
    %224 = vector.load %arg16[%c0_85, %c0_86] : memref<1x64xf32, #tpu.memory_space<vmem>>, vector<1x64xf32>
    %225 = vector.broadcast %224 : vector<1x64xf32> to vector<8x64xf32>
    %226 = arith.addf %223, %225 : vector<8x64xf32>
    %cst_87 = arith.constant 0.000000e+00 : f32
    %227 = vector.broadcast %cst_87 : f32 to vector<8x64xf32>
    %228 = arith.maximumf %226, %227 : vector<8x64xf32>
    %c0_88 = arith.constant 0 : index
    %c0_89 = arith.constant 0 : index
    %229 = vector.load %arg17[%c0_88, %c0_89] : memref<64x1xf32, #tpu.memory_space<vmem>>, vector<64x1xf32>
    %cst_90 = arith.constant dense<0.000000e+00> : vector<8x1xf32>
    %230 = tpu.matmul %228, %229, %cst_90 {dimension_numbers = #tpu.dot_dimension_numbers<[1], [0], [0], [1], [0, 0, 1, 1], [], []>} : vector<8x64xf32>, vector<64x1xf32>, vector<8x1xf32> -> vector<8x1xf32>
    %c0_91 = arith.constant 0 : index
    %c0_92 = arith.constant 0 : index
    %231 = vector.load %arg18[%c0_91, %c0_92] : memref<1x1xf32, #tpu.memory_space<vmem>>, vector<1x1xf32>
    %232 = vector.broadcast %231 : vector<1x1xf32> to vector<8x1xf32>
    %233 = arith.addf %230, %232 : vector<8x1xf32>
    %cst_93 = arith.constant 5.000000e-01 : f32
    %234 = vector.broadcast %cst_93 : f32 to vector<8x1xf32>
    %235 = arith.mulf %234, %233 : vector<8x1xf32>
    %236 = math.tanh %235 : vector<8x1xf32>
    %cst_94 = arith.constant 5.000000e-01 : f32
    %237 = vector.broadcast %cst_94 : f32 to vector<8x1xf32>
    %238 = arith.mulf %237, %236 : vector<8x1xf32>
    %cst_95 = arith.constant 5.000000e-01 : f32
    %239 = vector.broadcast %cst_95 : f32 to vector<8x1xf32>
    %240 = arith.addf %238, %239 : vector<8x1xf32>
    %241 = vector.broadcast %240 : vector<8x1xf32> to vector<8x16xf32>
    %242 = arith.mulf %183, %241 : vector<8x16xf32>
    %cst_96 = arith.constant 1.000000e+00 : f32
    %243 = vector.broadcast %cst_96 : f32 to vector<8x1xf32>
    %244 = arith.subf %243, %240 : vector<8x1xf32>
    %245 = vector.broadcast %244 : vector<8x1xf32> to vector<8x16xf32>
    %246 = arith.mulf %184, %245 : vector<8x16xf32>
    %c0_97 = arith.constant 0 : index
    %c0_98 = arith.constant 0 : index
    %247 = vector.load %arg19[%c0_97, %c0_98] : memref<16x64xf32, #tpu.memory_space<vmem>>, vector<16x64xf32>
    %cst_99 = arith.constant dense<0.000000e+00> : vector<8x64xf32>
    %248 = tpu.matmul %242, %247, %cst_99 {dimension_numbers = #tpu.dot_dimension_numbers<[1], [0], [0], [1], [0, 0, 1, 1], [], []>} : vector<8x16xf32>, vector<16x64xf32>, vector<8x64xf32> -> vector<8x64xf32>
    %c0_100 = arith.constant 0 : index
    %c0_101 = arith.constant 0 : index
    %249 = vector.load %arg20[%c0_100, %c0_101] : memref<16x64xf32, #tpu.memory_space<vmem>>, vector<16x64xf32>
    %cst_102 = arith.constant dense<0.000000e+00> : vector<8x64xf32>
    %250 = tpu.matmul %246, %249, %cst_102 {dimension_numbers = #tpu.dot_dimension_numbers<[1], [0], [0], [1], [0, 0, 1, 1], [], []>} : vector<8x16xf32>, vector<16x64xf32>, vector<8x64xf32> -> vector<8x64xf32>
    %251 = arith.addf %248, %250 : vector<8x64xf32>
    %c0_103 = arith.constant 0 : index
    %c0_104 = arith.constant 0 : index
    %252 = vector.load %arg21[%c0_103, %c0_104] : memref<64x64xf32, #tpu.memory_space<vmem>>, vector<64x64xf32>
    %cst_105 = arith.constant dense<0.000000e+00> : vector<8x64xf32>
    %253 = tpu.matmul %228, %252, %cst_105 {dimension_numbers = #tpu.dot_dimension_numbers<[1], [0], [0], [1], [0, 0, 1, 1], [], []>} : vector<8x64xf32>, vector<64x64xf32>, vector<8x64xf32> -> vector<8x64xf32>
    %254 = arith.addf %251, %253 : vector<8x64xf32>
    %c0_106 = arith.constant 0 : index
    %c0_107 = arith.constant 0 : index
    %255 = vector.load %arg22[%c0_106, %c0_107] : memref<1x64xf32, #tpu.memory_space<vmem>>, vector<1x64xf32>
    %256 = vector.broadcast %255 : vector<1x64xf32> to vector<8x64xf32>
    %257 = arith.addf %254, %256 : vector<8x64xf32>
    %cst_108 = arith.constant 0.000000e+00 : f32
    %258 = vector.broadcast %cst_108 : f32 to vector<8x64xf32>
    %259 = arith.maximumf %257, %258 : vector<8x64xf32>
    %c0_109 = arith.constant 0 : index
    %c0_110 = arith.constant 0 : index
    %260 = vector.load %arg23[%c0_109, %c0_110] : memref<64x1xf32, #tpu.memory_space<vmem>>, vector<64x1xf32>
    %cst_111 = arith.constant dense<0.000000e+00> : vector<8x1xf32>
    %261 = tpu.matmul %259, %260, %cst_111 {dimension_numbers = #tpu.dot_dimension_numbers<[1], [0], [0], [1], [0, 0, 1, 1], [], []>} : vector<8x64xf32>, vector<64x1xf32>, vector<8x1xf32> -> vector<8x1xf32>
    %c0_112 = arith.constant 0 : index
    %c0_113 = arith.constant 0 : index
    %262 = vector.load %arg24[%c0_112, %c0_113] : memref<1x1xf32, #tpu.memory_space<vmem>>, vector<1x1xf32>
    %263 = vector.broadcast %262 : vector<1x1xf32> to vector<8x1xf32>
    %264 = arith.addf %261, %263 : vector<8x1xf32>
    %cst_114 = arith.constant 5.000000e-01 : f32
    %265 = vector.broadcast %cst_114 : f32 to vector<8x1xf32>
    %266 = arith.mulf %265, %264 : vector<8x1xf32>
    %267 = math.tanh %266 : vector<8x1xf32>
    %cst_115 = arith.constant 5.000000e-01 : f32
    %268 = vector.broadcast %cst_115 : f32 to vector<8x1xf32>
    %269 = arith.mulf %268, %267 : vector<8x1xf32>
    %cst_116 = arith.constant 5.000000e-01 : f32
    %270 = vector.broadcast %cst_116 : f32 to vector<8x1xf32>
    %271 = arith.addf %269, %270 : vector<8x1xf32>
    %c0_117 = arith.constant 0 : index
    %c0_118 = arith.constant 0 : index
    %272 = vector.load %arg25[%c0_117, %c0_118] : memref<8x1xf32, #tpu.memory_space<vmem>>, vector<8x1xf32>
    tpu.vector_store %arg25[%c0_117, %c0_118], %271 {strides = array<i32>} : memref<8x1xf32, #tpu.memory_space<vmem>>, vector<8x1xf32>,
    return
  }
  func.func @transform_0(%arg0: i32) -> (i32, i32, i32) {
    %c0_i32 = arith.constant 0 : i32
    %c0_i32_0 = arith.constant 0 : i32
    %c0_i32_1 = arith.constant 0 : i32
    return %arg0, %c0_i32, %c0_i32_0 : i32, i32, i32
  }
  func.func @transform_1(%arg0: i32) -> (i32, i32, i32) {
    %c0_i32 = arith.constant 0 : i32
    %c0_i32_0 = arith.constant 0 : i32
    %c0_i32_1 = arith.constant 0 : i32
    return %arg0, %c0_i32, %c0_i32_0 : i32, i32, i32
  }
  func.func @transform_2(%arg0: i32) -> (i32, i32) {
    %c0_i32 = arith.constant 0 : i32
    %c0_i32_0 = arith.constant 0 : i32
    return %arg0, %c0_i32 : i32, i32
  }
  func.func @transform_3(%arg0: i32) -> (i32, i32) {
    %c0_i32 = arith.constant 0 : i32
    %c0_i32_0 = arith.constant 0 : i32
    %c0_i32_1 = arith.constant 0 : i32
    return %c0_i32, %c0_i32_0 : i32, i32
  }
  func.func @transform_4(%arg0: i32) -> (i32, i32) {
    %c0_i32 = arith.constant 0 : i32
    %c0_i32_0 = arith.constant 0 : i32
    %c0_i32_1 = arith.constant 0 : i32
    return %c0_i32, %c0_i32_0 : i32, i32
  }
  func.func @transform_5(%arg0: i32) -> (i32, i32) {
    %c0_i32 = arith.constant 0 : i32
    %c0_i32_0 = arith.constant 0 : i32
    %c0_i32_1 = arith.constant 0 : i32
    return %c0_i32, %c0_i32_0 : i32, i32
  }
  func.func @transform_6(%arg0: i32) -> (i32, i32) {
    %c0_i32 = arith.constant 0 : i32
    %c0_i32_0 = arith.constant 0 : i32
    %c0_i32_1 = arith.constant 0 : i32
    return %c0_i32, %c0_i32_0 : i32, i32
  }
  func.func @transform_7(%arg0: i32) -> (i32, i32) {
    %c0_i32 = arith.constant 0 : i32
    %c0_i32_0 = arith.constant 0 : i32
    %c0_i32_1 = arith.constant 0 : i32
    return %c0_i32, %c0_i32_0 : i32, i32
  }
  func.func @transform_8(%arg0: i32) -> (i32, i32) {
    %c0_i32 = arith.constant 0 : i32
    %c0_i32_0 = arith.constant 0 : i32
    %c0_i32_1 = arith.constant 0 : i32
    return %c0_i32, %c0_i32_0 : i32, i32
  }
  func.func @transform_9(%arg0: i32) -> (i32, i32) {
    %c0_i32 = arith.constant 0 : i32
    %c0_i32_0 = arith.constant 0 : i32
    %c0_i32_1 = arith.constant 0 : i32
    return %c0_i32, %c0_i32_0 : i32, i32
  }
  func.func @transform_10(%arg0: i32) -> (i32, i32) {
    %c0_i32 = arith.constant 0 : i32
    %c0_i32_0 = arith.constant 0 : i32
    %c0_i32_1 = arith.constant 0 : i32
    return %c0_i32, %c0_i32_0 : i32, i32
  }
  func.func @transform_11(%arg0: i32) -> (i32, i32) {
    %c0_i32 = arith.constant 0 : i32
    %c0_i32_0 = arith.constant 0 : i32
    %c0_i32_1 = arith.constant 0 : i32
    return %c0_i32, %c0_i32_0 : i32, i32
  }
  func.func @transform_12(%arg0: i32) -> (i32, i32) {
    %c0_i32 = arith.constant 0 : i32
    %c0_i32_0 = arith.constant 0 : i32
    %c0_i32_1 = arith.constant 0 : i32
    return %c0_i32, %c0_i32_0 : i32, i32
  }
  func.func @transform_13(%arg0: i32) -> (i32, i32) {
    %c0_i32 = arith.constant 0 : i32
    %c0_i32_0 = arith.constant 0 : i32
    %c0_i32_1 = arith.constant 0 : i32
    return %c0_i32, %c0_i32_0 : i32, i32
  }
  func.func @transform_14(%arg0: i32) -> (i32, i32) {
    %c0_i32 = arith.constant 0 : i32
    %c0_i32_0 = arith.constant 0 : i32
    %c0_i32_1 = arith.constant 0 : i32
    return %c0_i32, %c0_i32_0 : i32, i32
  }
  func.func @transform_15(%arg0: i32) -> (i32, i32) {
    %c0_i32 = arith.constant 0 : i32
    %c0_i32_0 = arith.constant 0 : i32
    %c0_i32_1 = arith.constant 0 : i32
    return %c0_i32, %c0_i32_0 : i32, i32
  }
  func.func @transform_16(%arg0: i32) -> (i32, i32) {
    %c0_i32 = arith.constant 0 : i32
    %c0_i32_0 = arith.constant 0 : i32
    %c0_i32_1 = arith.constant 0 : i32
    return %c0_i32, %c0_i32_0 : i32, i32
  }
  func.func @transform_17(%arg0: i32) -> (i32, i32) {
    %c0_i32 = arith.constant 0 : i32
    %c0_i32_0 = arith.constant 0 : i32
    %c0_i32_1 = arith.constant 0 : i32
    return %c0_i32, %c0_i32_0 : i32, i32
  }
  func.func @transform_18(%arg0: i32) -> (i32, i32) {
    %c0_i32 = arith.constant 0 : i32
    %c0_i32_0 = arith.constant 0 : i32
    %c0_i32_1 = arith.constant 0 : i32
    return %c0_i32, %c0_i32_0 : i32, i32
  }
  func.func @transform_19(%arg0: i32) -> (i32, i32) {
    %c0_i32 = arith.constant 0 : i32
    %c0_i32_0 = arith.constant 0 : i32
    %c0_i32_1 = arith.constant 0 : i32
    return %c0_i32, %c0_i32_0 : i32, i32
  }
  func.func @transform_20(%arg0: i32) -> (i32, i32) {
    %c0_i32 = arith.constant 0 : i32
    %c0_i32_0 = arith.constant 0 : i32
    %c0_i32_1 = arith.constant 0 : i32
    return %c0_i32, %c0_i32_0 : i32, i32
  }
  func.func @transform_21(%arg0: i32) -> (i32, i32) {
    %c0_i32 = arith.constant 0 : i32
    %c0_i32_0 = arith.constant 0 : i32
    %c0_i32_1 = arith.constant 0 : i32
    return %c0_i32, %c0_i32_0 : i32, i32
  }
  func.func @transform_22(%arg0: i32) -> (i32, i32) {
    %c0_i32 = arith.constant 0 : i32
    %c0_i32_0 = arith.constant 0 : i32
    %c0_i32_1 = arith.constant 0 : i32
    return %c0_i32, %c0_i32_0 : i32, i32
  }
  func.func @transform_23(%arg0: i32) -> (i32, i32) {
    %c0_i32 = arith.constant 0 : i32
    %c0_i32_0 = arith.constant 0 : i32
    %c0_i32_1 = arith.constant 0 : i32
    return %c0_i32, %c0_i32_0 : i32, i32
  }
  func.func @transform_24(%arg0: i32) -> (i32, i32) {
    %c0_i32 = arith.constant 0 : i32
    %c0_i32_0 = arith.constant 0 : i32
    return %arg0, %c0_i32 : i32, i32
  }
}

</mosaic_0001>

<llo_original>
// kernel: tpu_custom_call.1
$region0: #{tpu_custom_call.1}
  #allocation0 [shape = 'u32[]', space=smem, size = 0x4, offset = 0x4, fixed_abs, tag = 'smem constant byte address 0x4 - core index']
  #allocation1 [shape = 'u32[144,128]{1,0:T(1,128)}', space=vmem, size = 0x12000, scoped, tag = 'internal scratch']
  #allocation2 [shape = 'f32[8,8,256]{2,1,0:T(8,128)}', space=vmem, size = 0x10000, scoped, tag = 'scratch operand']
  #allocation3 [shape = 'f32[1,1]{1,0:T(1,128)S(1)}', space=vmem, size = 0x200, scoped, tag = 'scoped memory for tpu_custom_call.1']
  #allocation4 [shape = 'f32[1,1]{1,0:T(1,128)S(1)}', space=vmem, size = 0x200, scoped, tag = 'scoped memory for tpu_custom_call.1']
  %s0 = inlined_call_operand.vmem [shape: f32[1,8,8], index: 0, kind: input, shape index: {}]
  %s1 = inlined_call_operand.vmem [shape: f32[1,8,8], index: 1, kind: input, shape index: {}]
  %s2 = inlined_call_operand.vmem [shape: s32[8,4], index: 2, kind: input, shape index: {}]
  %s3 = inlined_call_operand.hbm [shape: f32[1,256], index: 3, kind: input, shape index: {}]
  %s4 = inlined_call_operand.hbm [shape: f32[1,256], index: 4, kind: input, shape index: {}]
  %s5 = inlined_call_operand.hbm [shape: f32[1,256], index: 5, kind: input, shape index: {}]
  %s6 = inlined_call_operand.vmem [shape: f32[64,256], index: 6, kind: input, shape index: {}]
  %s7 = inlined_call_operand.vmem [shape: f32[64,32], index: 7, kind: input, shape index: {}]
  %s8 = inlined_call_operand.vmem [shape: f32[1,32], index: 8, kind: input, shape index: {}]
  %s9 = inlined_call_operand.hbm [shape: f32[2048,128], index: 9, kind: input, shape index: {}]
  %s10 = inlined_call_operand.vmem [shape: f32[64,128], index: 10, kind: input, shape index: {}]
  %s11 = inlined_call_operand.vmem [shape: f32[1,128], index: 11, kind: input, shape index: {}]
  %s12 = inlined_call_operand.vmem [shape: f32[128,64], index: 12, kind: input, shape index: {}]
  %s13 = inlined_call_operand.vmem [shape: f32[1,64], index: 13, kind: input, shape index: {}]
  %s14 = inlined_call_operand.vmem [shape: f32[64,64], index: 14, kind: input, shape index: {}]
  %s15 = inlined_call_operand.vmem [shape: f32[1,64], index: 15, kind: input, shape index: {}]
  %s16 = inlined_call_operand.vmem [shape: f32[64,1], index: 16, kind: input, shape index: {}]
  %s17 = inlined_call_operand.<no memory space> [shape: f32[1,1], index: 17, kind: input, shape index: {}]
  %s18 = inlined_call_operand.vmem [shape: f32[16,64], index: 18, kind: input, shape index: {}]
  %s19 = inlined_call_operand.vmem [shape: f32[16,64], index: 19, kind: input, shape index: {}]
  %s20 = inlined_call_operand.vmem [shape: f32[64,64], index: 20, kind: input, shape index: {}]
  %s21 = inlined_call_operand.vmem [shape: f32[1,64], index: 21, kind: input, shape index: {}]
  %s22 = inlined_call_operand.vmem [shape: f32[64,1], index: 22, kind: input, shape index: {}]
  %s23 = inlined_call_operand.<no memory space> [shape: f32[1,1], index: 23, kind: input, shape index: {}]
  %s24 = inlined_call_operand.vmem [shape: f32[8,1], index: 24, kind: output, shape index: {}]
  %s25 = sld [smem:[#allocation0]]
  $region122: #{tpu_custom_call.1} parent=0
    _
  %s27 = ssub.s32 1, %s25
  %s28 = scalar_select 0, %s27, %s25
  %v29 = vstv %s17
  %30 = vst [vmem:[#allocation3] sm:$0x1] %v29
  %v31 = vstv %s23
  %32 = vst [vmem:[#allocation4] sm:$0x1] %v31
  $region1: #{tpu_custom_call.1} parent=0
    #allocation5 [shape = 'u8[1024]{0}', space=vmem, size = 0x400, scoped, tag = 'input window, operand 3, single buffered']
    #allocation6 [shape = 's32[1]{0}', space=sflag, size = 0x4, scoped, tag = 'scoped memory for tpu_custom_call.1']
    #allocation7 [shape = 'u8[1024]{0}', space=vmem, size = 0x400, scoped, tag = 'input window, operand 4, single buffered']
    #allocation8 [shape = 's32[1]{0}', space=sflag, size = 0x4, scoped, tag = 'scoped memory for tpu_custom_call.1']
    #allocation9 [shape = 'u8[1024]{0}', space=vmem, size = 0x400, scoped, tag = 'input window, operand 5, single buffered']
    #allocation10 [shape = 'u8[1048576]{0}', space=vmem, size = 0x100000, scoped, tag = 'input window, operand 9, single buffered']
    #allocation11 [shape = 's32[1]{0}', space=sflag, size = 0x4, scoped, tag = 'scoped memory for tpu_custom_call.1']
    %33 = vsyncpa [#allocation6], 0
    %34 = vsyncpa [#allocation8], 0
    %35 = vsyncpa [#allocation11], 0
    // Predicated region
    $region2: #{tpu_custom_call.1} parent=1 // pred_check
      _
    $region3: #{tpu_custom_call.1} parent=1 // pred_check_branch
      %37 = sbr.rel (0) target = $region5
    $region4: #{tpu_custom_call.1} parent=1 // pred_region
      _
    $region5: #{tpu_custom_call.1} parent=1 // pred_fallthru
      _
    // Predicated region
    $region6: #{tpu_custom_call.1} parent=1 // pred_check
      _
    $region7: #{tpu_custom_call.1} parent=1 // pred_check_branch
      %39 = sbr.rel (0) target = $region9
    $region8: #{tpu_custom_call.1} parent=1 // pred_region
      _
    $region9: #{tpu_custom_call.1} parent=1 // pred_fallthru
      _
    // Predicated region
    $region10: #{tpu_custom_call.1} parent=1 // pred_check
      _
    $region11: #{tpu_custom_call.1} parent=1 // pred_check_branch
      %41 = sbr.rel (0) target = $region13
    $region12: #{tpu_custom_call.1} parent=1 // pred_region
      _
    $region13: #{tpu_custom_call.1} parent=1 // pred_fallthru
      _
    // Predicated region
    $region14: #{tpu_custom_call.1} parent=1 // pred_check
      _
    $region15: #{tpu_custom_call.1} parent=1 // pred_check_branch
      %43 = sbr.rel (0) target = $region17
    $region16: #{tpu_custom_call.1} parent=1 // pred_region
      %s45 = ssub.s32 32, 32
      %46 = vsyncadd [#allocation6], %s45
      %s48 = sshll.u32 [#allocation5], 4
      %s49 = int_to_ptr.vmem [resolvable:$true] %s48
      %51 = dma.hbm_to_vmem [thread:$0]  %s3, 32, %s49, [#allocation6]
    $region17: #{tpu_custom_call.1} parent=1 // pred_fallthru
      _
    // Predicated region
    $region18: #{tpu_custom_call.1} parent=1 // pred_check
      _
    $region19: #{tpu_custom_call.1} parent=1 // pred_check_branch
      %53 = sbr.rel (0) target = $region21
    $region20: #{tpu_custom_call.1} parent=1 // pred_region
      %s55 = ssub.s32 32, 32
      %56 = vsyncadd [#allocation8], %s55
      %s58 = sshll.u32 [#allocation7], 4
      %s59 = int_to_ptr.vmem [resolvable:$true] %s58
      %61 = dma.hbm_to_vmem [thread:$0]  %s4, 32, %s59, [#allocation8]
    $region21: #{tpu_custom_call.1} parent=1 // pred_fallthru
      _
    // Predicated region
    $region22: #{tpu_custom_call.1} parent=1 // pred_check
      _
    $region23: #{tpu_custom_call.1} parent=1 // pred_check_branch
      %63 = sbr.rel (0) target = $region25
    $region24: #{tpu_custom_call.1} parent=1 // pred_region
      %s65 = ssub.s32 32, 32
      %66 = vsyncadd [#allocation8], %s65
      %s68 = sshll.u32 [#allocation9], 4
      %s69 = int_to_ptr.vmem [resolvable:$true] %s68
      %71 = dma.hbm_to_vmem [thread:$0]  %s5, 32, %s69, [#allocation8]
    $region25: #{tpu_custom_call.1} parent=1 // pred_fallthru
      _
    // Predicated region
    $region26: #{tpu_custom_call.1} parent=1 // pred_check
      _
    $region27: #{tpu_custom_call.1} parent=1 // pred_check_branch
      %73 = sbr.rel (0) target = $region29
    $region28: #{tpu_custom_call.1} parent=1 // pred_region
      _
    $region29: #{tpu_custom_call.1} parent=1 // pred_fallthru
      _
    // Predicated region
    $region30: #{tpu_custom_call.1} parent=1 // pred_check
      _
    $region31: #{tpu_custom_call.1} parent=1 // pred_check_branch
      %75 = sbr.rel (0) target = $region33
    $region32: #{tpu_custom_call.1} parent=1 // pred_region
      _
    $region33: #{tpu_custom_call.1} parent=1 // pred_fallthru
      _
    // Predicated region
    $region34: #{tpu_custom_call.1} parent=1 // pred_check
      _
    $region35: #{tpu_custom_call.1} parent=1 // pred_check_branch
      %77 = sbr.rel (0) target = $region37
    $region36: #{tpu_custom_call.1} parent=1 // pred_region
      _
    $region37: #{tpu_custom_call.1} parent=1 // pred_fallthru
      _
    // Predicated region
    $region38: #{tpu_custom_call.1} parent=1 // pred_check
      _
    $region39: #{tpu_custom_call.1} parent=1 // pred_check_branch
      %79 = sbr.rel (0) target = $region41
    $region40: #{tpu_custom_call.1} parent=1 // pred_region
      %s81 = ssub.s32 32768, 32768
      %82 = vsyncadd [#allocation11], %s81
      %s83 = sshll.u32 [#allocation10], 4
      %s84 = int_to_ptr.vmem [resolvable:$true] %s83
      %89 = dma.hbm_to_vmem [thread:$0]  %s9, 32768, %s84, [#allocation11], 128, 128, 8
    $region41: #{tpu_custom_call.1} parent=1 // pred_fallthru
      _
    // Predicated region
    $region42: #{tpu_custom_call.1} parent=1 // pred_check
      _
    $region43: #{tpu_custom_call.1} parent=1 // pred_check_branch
      %91 = sbr.rel (0) target = $region45
    $region44: #{tpu_custom_call.1} parent=1 // pred_region
      _
    $region45: #{tpu_custom_call.1} parent=1 // pred_fallthru
      _
    // Predicated region
    $region46: #{tpu_custom_call.1} parent=1 // pred_check
      _
    $region47: #{tpu_custom_call.1} parent=1 // pred_check_branch
      %93 = sbr.rel (0) target = $region49
    $region48: #{tpu_custom_call.1} parent=1 // pred_region
      _
    $region49: #{tpu_custom_call.1} parent=1 // pred_fallthru
      _
    // Predicated region
    $region50: #{tpu_custom_call.1} parent=1 // pred_check
      _
    $region51: #{tpu_custom_call.1} parent=1 // pred_check_branch
      %95 = sbr.rel (0) target = $region53
    $region52: #{tpu_custom_call.1} parent=1 // pred_region
      _
    $region53: #{tpu_custom_call.1} parent=1 // pred_fallthru
      _
    // Predicated region
    $region54: #{tpu_custom_call.1} parent=1 // pred_check
      _
    $region55: #{tpu_custom_call.1} parent=1 // pred_check_branch
      %97 = sbr.rel (0) target = $region57
    $region56: #{tpu_custom_call.1} parent=1 // pred_region
      _
    $region57: #{tpu_custom_call.1} parent=1 // pred_fallthru
      _
    // Predicated region
    $region58: #{tpu_custom_call.1} parent=1 // pred_check
      _
    $region59: #{tpu_custom_call.1} parent=1 // pred_check_branch
      %99 = sbr.rel (0) target = $region61
    $region60: #{tpu_custom_call.1} parent=1 // pred_region
      _
    $region61: #{tpu_custom_call.1} parent=1 // pred_fallthru
      _
    // Predicated region
    $region62: #{tpu_custom_call.1} parent=1 // pred_check
      _
    $region63: #{tpu_custom_call.1} parent=1 // pred_check_branch
      %101 = sbr.rel (0) target = $region65
    $region64: #{tpu_custom_call.1} parent=1 // pred_region
      _
    $region65: #{tpu_custom_call.1} parent=1 // pred_fallthru
      _
    // Predicated region
    $region66: #{tpu_custom_call.1} parent=1 // pred_check
      _
    $region67: #{tpu_custom_call.1} parent=1 // pred_check_branch
      %103 = sbr.rel (0) target = $region69
    $region68: #{tpu_custom_call.1} parent=1 // pred_region
      _
    $region69: #{tpu_custom_call.1} parent=1 // pred_fallthru
      _
    // Predicated region
    $region70: #{tpu_custom_call.1} parent=1 // pred_check
      _
    $region71: #{tpu_custom_call.1} parent=1 // pred_check_branch
      %105 = sbr.rel (0) target = $region73
    $region72: #{tpu_custom_call.1} parent=1 // pred_region
      _
    $region73: #{tpu_custom_call.1} parent=1 // pred_fallthru
      _
    // Predicated region
    $region74: #{tpu_custom_call.1} parent=1 // pred_check
      _
    $region75: #{tpu_custom_call.1} parent=1 // pred_check_branch
      %107 = sbr.rel (0) target = $region77
    $region76: #{tpu_custom_call.1} parent=1 // pred_region
      _
    $region77: #{tpu_custom_call.1} parent=1 // pred_fallthru
      _
    // Predicated region
    $region78: #{tpu_custom_call.1} parent=1 // pred_check
      _
    $region79: #{tpu_custom_call.1} parent=1 // pred_check_branch
      %109 = sbr.rel (0) target = $region81
    $region80: #{tpu_custom_call.1} parent=1 // pred_region
      _
    $region81: #{tpu_custom_call.1} parent=1 // pred_fallthru
      _
    // Predicated region
    $region82: #{tpu_custom_call.1} parent=1 // pred_check
      _
    $region83: #{tpu_custom_call.1} parent=1 // pred_check_branch
      %111 = sbr.rel (0) target = $region85
    $region84: #{tpu_custom_call.1} parent=1 // pred_region
      _
    $region85: #{tpu_custom_call.1} parent=1 // pred_fallthru
      _
    // Predicated region
    $region86: #{tpu_custom_call.1} parent=1 // pred_check
      _
    $region87: #{tpu_custom_call.1} parent=1 // pred_check_branch
      %113 = sbr.rel (0) target = $region89
    $region88: #{tpu_custom_call.1} parent=1 // pred_region
      _
    $region89: #{tpu_custom_call.1} parent=1 // pred_fallthru
      _
    // Predicated region
    $region90: #{tpu_custom_call.1} parent=1 // pred_check
      _
    $region91: #{tpu_custom_call.1} parent=1 // pred_check_branch
      %115 = sbr.rel (0) target = $region93
    $region92: #{tpu_custom_call.1} parent=1 // pred_region
      _
    $region93: #{tpu_custom_call.1} parent=1 // pred_fallthru
      _
    // Predicated region
    $region94: #{tpu_custom_call.1} parent=1 // pred_check
      _
    $region95: #{tpu_custom_call.1} parent=1 // pred_check_branch
      %117 = sbr.rel (0) target = $region97
    $region96: #{tpu_custom_call.1} parent=1 // pred_region
      _
    $region97: #{tpu_custom_call.1} parent=1 // pred_fallthru
      _
    // Predicated region
    $region98: #{tpu_custom_call.1} parent=1 // pred_check
      _
    $region99: #{tpu_custom_call.1} parent=1 // pred_check_branch
      %119 = sbr.rel (0) target = $region101
    $region100: #{tpu_custom_call.1} parent=1 // pred_region
      %120 = dma.done [#allocation6], 32
    $region101: #{tpu_custom_call.1} parent=1 // pred_fallthru
      _
    // Predicated region
    $region102: #{tpu_custom_call.1} parent=1 // pred_check
      _
    $region103: #{tpu_custom_call.1} parent=1 // pred_check_branch
      %122 = sbr.rel (0) target = $region105
    $region104: #{tpu_custom_call.1} parent=1 // pred_region
      %123 = dma.done [#allocation8], 32
    $region105: #{tpu_custom_call.1} parent=1 // pred_fallthru
      _
    // Predicated region
    $region106: #{tpu_custom_call.1} parent=1 // pred_check
      _
    $region107: #{tpu_custom_call.1} parent=1 // pred_check_branch
      %125 = sbr.rel (0) target = $region109
    $region108: #{tpu_custom_call.1} parent=1 // pred_region
      %126 = dma.done [#allocation8], 32
    $region109: #{tpu_custom_call.1} parent=1 // pred_fallthru
      _
    // Predicated region
    $region110: #{tpu_custom_call.1} parent=1 // pred_check
      _
    $region111: #{tpu_custom_call.1} parent=1 // pred_check_branch
      %128 = sbr.rel (0) target = $region113
    $region112: #{tpu_custom_call.1} parent=1 // pred_region
      %129 = dma.done [#allocation11], 32768
    $region113: #{tpu_custom_call.1} parent=1 // pred_fallthru
      _
    %v130 = vld [vmem:[%s0] sm:$0xff]
    %v131 = vld [vmem:[%s1] sm:$0xff]
    %v132 = vlaneseq
    %v133 = vshrl.u32 %v132, 7
    %v134 = vsub.s32 0, %v133
    %v135 = vrot.slane %v130, %v134
    %137 = vbcast.lane.b32.xlu0 %v135, 256
    %v138 = vpop.permute.xlu0 %137
    %v139 = vlaneseq
    %v140 = vshrl.u32 %v139, 7
    %v141 = vsub.s32 1, %v140
    %v142 = vrot.slane %v130, %v141
    %144 = vbcast.lane.b32.xlu0 %v142, 256
    %v145 = vpop.permute.xlu0 %144
    %v146 = vlaneseq
    %v147 = vshrl.u32 %v146, 7
    %v148 = vsub.s32 2, %v147
    %v149 = vrot.slane %v130, %v148
    %151 = vbcast.lane.b32.xlu0 %v149, 256
    %v152 = vpop.permute.xlu0 %151
    %v153 = vlaneseq
    %v154 = vshrl.u32 %v153, 7
    %v155 = vsub.s32 3, %v154
    %v156 = vrot.slane %v130, %v155
    %158 = vbcast.lane.b32.xlu0 %v156, 256
    %v159 = vpop.permute.xlu0 %158
    %v160 = vlaneseq
    %v161 = vshrl.u32 %v160, 7
    %v162 = vsub.s32 4, %v161
    %v163 = vrot.slane %v130, %v162
    %165 = vbcast.lane.b32.xlu0 %v163, 256
    %v166 = vpop.permute.xlu0 %165
    %v167 = vlaneseq
    %v168 = vshrl.u32 %v167, 7
    %v169 = vsub.s32 5, %v168
    %v170 = vrot.slane %v130, %v169
    %172 = vbcast.lane.b32.xlu0 %v170, 256
    %v173 = vpop.permute.xlu0 %172
    %v174 = vlaneseq
    %v175 = vshrl.u32 %v174, 7
    %v176 = vsub.s32 6, %v175
    %v177 = vrot.slane %v130, %v176
    %179 = vbcast.lane.b32.xlu0 %v177, 256
    %v180 = vpop.permute.xlu0 %179
    %v181 = vlaneseq
    %v182 = vshrl.u32 %v181, 7
    %v183 = vsub.s32 7, %v182
    %v184 = vrot.slane %v130, %v183
    %186 = vbcast.lane.b32.xlu0 %v184, 256
    %v187 = vpop.permute.xlu0 %186
    %v188 = vld [vmem:[#allocation5] sm:$0x3]
    %v190 = vlaneseq
    %v191 = vshrl.u32 %v190, 7
    %v192 = vsub.s32 0, %v191
    %v193 = vrot.slane %v188, %v192
    %v194 = vlaneseq
    %v195 = vshrl.u32 %v194, 7
    %v196 = vsub.s32 1, %v195
    %v197 = vrot.slane %v188, %v196
    %v200 = vmul.f32 %v138, %v193
    %v201 = vmul.f32 %v138, %v197
    %v202 = vmul.f32 %v145, %v193
    %v203 = vmul.f32 %v145, %v197
    %v204 = vmul.f32 %v152, %v193
    %v205 = vmul.f32 %v152, %v197
    %v206 = vmul.f32 %v159, %v193
    %v207 = vmul.f32 %v159, %v197
    %v208 = vmul.f32 %v166, %v193
    %v209 = vmul.f32 %v166, %v197
    %v210 = vmul.f32 %v173, %v193
    %v211 = vmul.f32 %v173, %v197
    %v212 = vmul.f32 %v180, %v193
    %v213 = vmul.f32 %v180, %v197
    %v214 = vmul.f32 %v187, %v193
    %v215 = vmul.f32 %v187, %v197
    %v216 = vlaneseq
    %v217 = vshrl.u32 %v216, 7
    %v218 = vsub.s32 0, %v217
    %v219 = vrot.slane %v131, %v218
    %221 = vbcast.lane.b32.xlu0 %v219, 256
    %v222 = vpop.permute.xlu0 %221
    %v223 = vlaneseq
    %v224 = vshrl.u32 %v223, 7
    %v225 = vsub.s32 1, %v224
    %v226 = vrot.slane %v131, %v225
    %228 = vbcast.lane.b32.xlu0 %v226, 256
    %v229 = vpop.permute.xlu0 %228
    %v230 = vlaneseq
    %v231 = vshrl.u32 %v230, 7
    %v232 = vsub.s32 2, %v231
    %v233 = vrot.slane %v131, %v232
    %235 = vbcast.lane.b32.xlu0 %v233, 256
    %v236 = vpop.permute.xlu0 %235
    %v237 = vlaneseq
    %v238 = vshrl.u32 %v237, 7
    %v239 = vsub.s32 3, %v238
    %v240 = vrot.slane %v131, %v239
    %242 = vbcast.lane.b32.xlu0 %v240, 256
    %v243 = vpop.permute.xlu0 %242
    %v244 = vlaneseq
    %v245 = vshrl.u32 %v244, 7
    %v246 = vsub.s32 4, %v245
    %v247 = vrot.slane %v131, %v246
    %249 = vbcast.lane.b32.xlu0 %v247, 256
    %v250 = vpop.permute.xlu0 %249
    %v251 = vlaneseq
    %v252 = vshrl.u32 %v251, 7
    %v253 = vsub.s32 5, %v252
    %v254 = vrot.slane %v131, %v253
    %256 = vbcast.lane.b32.xlu0 %v254, 256
    %v257 = vpop.permute.xlu0 %256
    %v258 = vlaneseq
    %v259 = vshrl.u32 %v258, 7
    %v260 = vsub.s32 6, %v259
    %v261 = vrot.slane %v131, %v260
    %263 = vbcast.lane.b32.xlu0 %v261, 256
    %v264 = vpop.permute.xlu0 %263
    %v265 = vlaneseq
    %v266 = vshrl.u32 %v265, 7
    %v267 = vsub.s32 7, %v266
    %v268 = vrot.slane %v131, %v267
    %270 = vbcast.lane.b32.xlu0 %v268, 256
    %v271 = vpop.permute.xlu0 %270
    %v272 = vld [vmem:[#allocation7] sm:$0x3]
    %v274 = vlaneseq
    %v275 = vshrl.u32 %v274, 7
    %v276 = vsub.s32 0, %v275
    %v277 = vrot.slane %v272, %v276
    %v278 = vlaneseq
    %v279 = vshrl.u32 %v278, 7
    %v280 = vsub.s32 1, %v279
    %v281 = vrot.slane %v272, %v280
    %v284 = vmul.f32 %v222, %v277
    %v285 = vmul.f32 %v222, %v281
    %v286 = vmul.f32 %v229, %v277
    %v287 = vmul.f32 %v229, %v281
    %v288 = vmul.f32 %v236, %v277
    %v289 = vmul.f32 %v236, %v281
    %v290 = vmul.f32 %v243, %v277
    %v291 = vmul.f32 %v243, %v281
    %v292 = vmul.f32 %v250, %v277
    %v293 = vmul.f32 %v250, %v281
    %v294 = vmul.f32 %v257, %v277
    %v295 = vmul.f32 %v257, %v281
    %v296 = vmul.f32 %v264, %v277
    %v297 = vmul.f32 %v264, %v281
    %v298 = vmul.f32 %v271, %v277
    %v299 = vmul.f32 %v271, %v281
    %v300 = vadd.f32 %v200, %v284
    %v301 = vadd.f32 %v201, %v285
    %v302 = vadd.f32 %v202, %v286
    %v303 = vadd.f32 %v203, %v287
    %v304 = vadd.f32 %v204, %v288
    %v305 = vadd.f32 %v205, %v289
    %v306 = vadd.f32 %v206, %v290
    %v307 = vadd.f32 %v207, %v291
    %v308 = vadd.f32 %v208, %v292
    %v309 = vadd.f32 %v209, %v293
    %v310 = vadd.f32 %v210, %v294
    %v311 = vadd.f32 %v211, %v295
    %v312 = vadd.f32 %v212, %v296
    %v313 = vadd.f32 %v213, %v297
    %v314 = vadd.f32 %v214, %v298
    %v315 = vadd.f32 %v215, %v299
    %v316 = vld [vmem:[#allocation9] sm:$0x3]
    %v318 = vlaneseq
    %v319 = vshrl.u32 %v318, 7
    %v320 = vsub.s32 0, %v319
    %v321 = vrot.slane %v316, %v320
    %v322 = vlaneseq
    %v323 = vshrl.u32 %v322, 7
    %v324 = vsub.s32 1, %v323
    %v325 = vrot.slane %v316, %v324
    %v328 = vadd.f32 %v300, %v321
    %v329 = vadd.f32 %v301, %v325
    %v330 = vadd.f32 %v302, %v321
    %v331 = vadd.f32 %v303, %v325
    %v332 = vadd.f32 %v304, %v321
    %v333 = vadd.f32 %v305, %v325
    %v334 = vadd.f32 %v306, %v321
    %v335 = vadd.f32 %v307, %v325
    %v336 = vadd.f32 %v308, %v321
    %v337 = vadd.f32 %v309, %v325
    %v338 = vadd.f32 %v310, %v321
    %v339 = vadd.f32 %v311, %v325
    %v340 = vadd.f32 %v312, %v321
    %v341 = vadd.f32 %v313, %v325
    %v342 = vadd.f32 %v314, %v321
    %v343 = vadd.f32 %v315, %v325
    %344 = vst [vmem:[#allocation2] sm:$0xff] %v328
    %345 = vst [vmem:[#allocation2 + $0x8] sm:$0xff] %v329
    %346 = vst [vmem:[#allocation2 + $0x10] sm:$0xff] %v330
    %347 = vst [vmem:[#allocation2 + $0x18] sm:$0xff] %v331
    %348 = vst [vmem:[#allocation2 + $0x20] sm:$0xff] %v332
    %349 = vst [vmem:[#allocation2 + $0x28] sm:$0xff] %v333
    %350 = vst [vmem:[#allocation2 + $0x30] sm:$0xff] %v334
    %351 = vst [vmem:[#allocation2 + $0x38] sm:$0xff] %v335
    %352 = vst [vmem:[#allocation2 + $0x40] sm:$0xff] %v336
    %353 = vst [vmem:[#allocation2 + $0x48] sm:$0xff] %v337
    %354 = vst [vmem:[#allocation2 + $0x50] sm:$0xff] %v338
    %355 = vst [vmem:[#allocation2 + $0x58] sm:$0xff] %v339
    %356 = vst [vmem:[#allocation2 + $0x60] sm:$0xff] %v340
    %357 = vst [vmem:[#allocation2 + $0x68] sm:$0xff] %v341
    %358 = vst [vmem:[#allocation2 + $0x70] sm:$0xff] %v342
    %359 = vst [vmem:[#allocation2 + $0x78] sm:$0xff] %v343
    %v360 = vld [vmem:[%s6] sm:$0xff]
    %v361 = vld [vmem:[%s6 + $0x8] sm:$0xff]
    %v362 = vld [vmem:[%s6 + $0x10] sm:$0xff]
    %v363 = vld [vmem:[%s6 + $0x18] sm:$0xff]
    %v364 = vld [vmem:[%s6 + $0x20] sm:$0xff]
    %v365 = vld [vmem:[%s6 + $0x28] sm:$0xff]
    %v366 = vld [vmem:[%s6 + $0x30] sm:$0xff]
    %v367 = vld [vmem:[%s6 + $0x38] sm:$0xff]
    %v368 = vld [vmem:[%s6 + $0x40] sm:$0xff]
    %v369 = vld [vmem:[%s6 + $0x48] sm:$0xff]
    %v370 = vld [vmem:[%s6 + $0x50] sm:$0xff]
    %v371 = vld [vmem:[%s6 + $0x58] sm:$0xff]
    %v372 = vld [vmem:[%s6 + $0x60] sm:$0xff]
    %v373 = vld [vmem:[%s6 + $0x68] sm:$0xff]
    %v374 = vld [vmem:[%s6 + $0x70] sm:$0xff]
    %v375 = vld [vmem:[%s6 + $0x78] sm:$0xff]
    %v376 = vld [vmem:[#allocation2] sm:$0xff]
    %v377 = vld [vmem:[#allocation2 + $0x8] sm:$0xff]
    %vm378 = vcmask 523264
    %v380 = vsel %vm378, 0.0, 0
    %382 = vmatprep.subr.mxu0 %v361
    %383 = vmatpush1.msra.mxu0 %v360
    %384 = vmatprep.subr.mxu0 %v363
    %385 = vmatpush1.msra.mxu0 %v362
    %386 = vmatprep.subr.mxu0 %v365
    %387 = vmatpush1.msra.mxu0 %v364
    %388 = vmatprep.subr.mxu0 %v367
    %389 = vmatpush1.msra.mxu0 %v366
    %390 = vmatprep.subr.mxu0 %v369
    %391 = vmatpush1.msra.mxu0 %v368
    %392 = vmatprep.subr.mxu0 %v371
    %393 = vmatpush1.msra.mxu0 %v370
    %394 = vmatprep.subr.mxu0 %v373
    %395 = vmatpush1.msra.mxu0 %v372
    %396 = vmatprep.subr.mxu0 %v375
    %397 = vmatpush1.msra.mxu0 %v374
    %398 = vmatprep.subr.mxu0 0.0
    %399 = vmatpush1.msra.mxu0 0.0
    %400 = vmatprep.subr.mxu0 0.0
    %401 = vmatpush1.msra.mxu0 0.0
    %402 = vmatprep.subr.mxu0 0.0
    %403 = vmatpush1.msra.mxu0 0.0
    %404 = vmatprep.subr.mxu0 0.0
    %405 = vmatpush1.msra.mxu0 0.0
    %406 = vmatprep.subr.mxu0 0.0
    %407 = vmatpush1.msra.mxu0 0.0
    %408 = vmatprep.subr.mxu0 0.0
    %409 = vmatpush1.msra.mxu0 0.0
    %410 = vmatprep.subr.mxu0 0.0
    %411 = vmatpush1.msra.mxu0 0.0
    %412 = vmatprep.subr.mxu0 0.0
    %413 = vmatpush1.msra.mxu0 0.0
    %414 = vmatprep.subr.mxu0 0.0
    %415 = vmatpush1.msra.mxu0 0.0
    %416 = vmatprep.subr.mxu0 0.0
    %417 = vmatpush1.msra.mxu0 0.0
    %418 = vmatprep.subr.mxu0 0.0
    %419 = vmatpush1.msra.mxu0 0.0
    %420 = vmatprep.subr.mxu0 0.0
    %421 = vmatpush1.msra.mxu0 0.0
    %422 = vmatprep.subr.mxu0 0.0
    %423 = vmatpush1.msra.mxu0 0.0
    %424 = vmatprep.subr.mxu0 0.0
    %425 = vmatpush1.msra.mxu0 0.0
    %426 = vmatprep.subr.mxu0 0.0
    %427 = vmatpush1.msra.mxu0 0.0
    %428 = vmatprep.subr.mxu0 0.0
    %429 = vmatpush1.msra.mxu0 0.0
    %430 = vmatprep.subr.mxu0 0.0
    %431 = vmatpush1.msra.mxu0 0.0
    %432 = vmatprep.subr.mxu0 0.0
    %433 = vmatpush1.msra.mxu0 0.0
    %434 = vmatprep.subr.mxu0 0.0
    %435 = vmatpush1.msra.mxu0 0.0
    %436 = vmatprep.subr.mxu0 0.0
    %437 = vmatpush1.msra.mxu0 0.0
    %438 = vmatprep.subr.mxu0 0.0
    %439 = vmatpush1.msra.mxu0 0.0
    %440 = vmatprep.subr.mxu0 0.0
    %441 = vmatpush1.msra.mxu0 0.0
    %442 = vmatprep.subr.mxu0 0.0
    %443 = vmatpush1.msra.mxu0 0.0
    %444 = vmatprep.subr.mxu0 0.0
    %445 = vmatpush1.msra.mxu0 0.0
    %446 = vmatprep.mubr.f32.mxu0 0.0
    %447 = vmatmul.mubr.f32.gmra.mrb[0].mxu0 %v380
    %v448 = vpop.f32.mrb[0].mxu0
    %v449 = vadd.f32 0.0, %v448
    %v450 = vpop.f32.mrb[0].mxu0
    %v451 = vadd.f32 0.0, %v450
    %452 = vdwg.mxu0
    %v453 = vadd.f32 %v376, %v449
    %v454 = vadd.f32 %v377, %v451
    %v455 = vtanh.pop %v453
    %v456 = vtanh.pop %v454
    %v457 = vmul.f32 %v455, 0.5
    %v458 = vmul.f32 %v456, 0.5
    %v459 = vadd.f32 %v457, 0.5
    %v460 = vadd.f32 %v458, 0.5
    %v461 = vmul.f32 %v459, 0.0
    %v462 = vmul.f32 %v459, %v456
    %464 = vrot.lane.b32.xlu0 %v462, 64
    %v465 = vpop.permute.xlu0 %464
    %v467 = vadd.f32 %v461, %v465
    %v468 = vtanh.pop %v467
    %v469 = vmul.f32 %v460, %v468
    %s470 = scalar_lea.vmem [#allocation2], 16
    %v471 = vld [vmem:[%s470] sm:$0xff]
    %v472 = vld [vmem:[%s470 + $0x8] sm:$0xff]
    %474 = vrot.lane.b32.xlu0 %v469, 64
    %v475 = vpop.permute.xlu0 %474
    %v476 = vsel %vm378, %v475, 0
    %478 = vmatprep.subr.mxu0 %v361
    %479 = vmatpush1.msra.mxu0 %v360
    %480 = vmatprep.subr.mxu0 %v363
    %481 = vmatpush1.msra.mxu0 %v362
    %482 = vmatprep.subr.mxu0 %v365
    %483 = vmatpush1.msra.mxu0 %v364
    %484 = vmatprep.subr.mxu0 %v367
    %485 = vmatpush1.msra.mxu0 %v366
    %486 = vmatprep.subr.mxu0 %v369
    %487 = vmatpush1.msra.mxu0 %v368
    %488 = vmatprep.subr.mxu0 %v371
    %489 = vmatpush1.msra.mxu0 %v370
    %490 = vmatprep.subr.mxu0 %v373
    %491 = vmatpush1.msra.mxu0 %v372
    %492 = vmatprep.subr.mxu0 %v375
    %493 = vmatpush1.msra.mxu0 %v374
    %494 = vmatprep.subr.mxu0 0.0
    %495 = vmatpush1.msra.mxu0 0.0
    %496 = vmatprep.subr.mxu0 0.0
    %497 = vmatpush1.msra.mxu0 0.0
    %498 = vmatprep.subr.mxu0 0.0
    %499 = vmatpush1.msra.mxu0 0.0
    %500 = vmatprep.subr.mxu0 0.0
    %501 = vmatpush1.msra.mxu0 0.0
    %502 = vmatprep.subr.mxu0 0.0
    %503 = vmatpush1.msra.mxu0 0.0
    %504 = vmatprep.subr.mxu0 0.0
    %505 = vmatpush1.msra.mxu0 0.0
    %506 = vmatprep.subr.mxu0 0.0
    %507 = vmatpush1.msra.mxu0 0.0
    %508 = vmatprep.subr.mxu0 0.0
    %509 = vmatpush1.msra.mxu0 0.0
    %510 = vmatprep.subr.mxu0 0.0
    %511 = vmatpush1.msra.mxu0 0.0
    %512 = vmatprep.subr.mxu0 0.0
    %513 = vmatpush1.msra.mxu0 0.0
    %514 = vmatprep.subr.mxu0 0.0
    %515 = vmatpush1.msra.mxu0 0.0
    %516 = vmatprep.subr.mxu0 0.0
    %517 = vmatpush1.msra.mxu0 0.0
    %518 = vmatprep.subr.mxu0 0.0
    %519 = vmatpush1.msra.mxu0 0.0
    %520 = vmatprep.subr.mxu0 0.0
    %521 = vmatpush1.msra.mxu0 0.0
    %522 = vmatprep.subr.mxu0 0.0
    %523 = vmatpush1.msra.mxu0 0.0
    %524 = vmatprep.subr.mxu0 0.0
    %525 = vmatpush1.msra.mxu0 0.0
    %526 = vmatprep.subr.mxu0 0.0
    %527 = vmatpush1.msra.mxu0 0.0
    %528 = vmatprep.subr.mxu0 0.0
    %529 = vmatpush1.msra.mxu0 0.0
    %530 = vmatprep.subr.mxu0 0.0
    %531 = vmatpush1.msra.mxu0 0.0
    %532 = vmatprep.subr.mxu0 0.0
    %533 = vmatpush1.msra.mxu0 0.0
    %534 = vmatprep.subr.mxu0 0.0
    %535 = vmatpush1.msra.mxu0 0.0
    %536 = vmatprep.subr.mxu0 0.0
    %537 = vmatpush1.msra.mxu0 0.0
    %538 = vmatprep.subr.mxu0 0.0
    %539 = vmatpush1.msra.mxu0 0.0
    %540 = vmatprep.subr.mxu0 0.0
    %541 = vmatpush1.msra.mxu0 0.0
    %542 = vmatprep.mubr.f32.mxu0 0.0
    %543 = vmatmul.mubr.f32.gmra.mrb[0].mxu0 %v476
    %v544 = vpop.f32.mrb[0].mxu0
    %v545 = vadd.f32 0.0, %v544
    %v546 = vpop.f32.mrb[0].mxu0
    %v547 = vadd.f32 0.0, %v546
    %548 = vdwg.mxu0
    %v549 = vadd.f32 %v471, %v545
    %v550 = vadd.f32 %v472, %v547
    %v551 = vtanh.pop %v549
    %v552 = vtanh.pop %v550
    %v553 = vmul.f32 %v551, 0.5
    %v554 = vmul.f32 %v552, 0.5
    %v555 = vadd.f32 %v553, 0.5
    %v556 = vadd.f32 %v554, 0.5
    %v557 = vmul.f32 %v555, %v467
    %v558 = vmul.f32 %v555, %v552
    %560 = vrot.lane.b32.xlu0 %v558, 64
    %v561 = vpop.permute.xlu0 %560
    %v563 = vadd.f32 %v557, %v561
    %v564 = vtanh.pop %v563
    %v565 = vmul.f32 %v556, %v564
    %s566 = scalar_lea.vmem [#allocation2], 32
    %v567 = vld [vmem:[%s566] sm:$0xff]
    %v568 = vld [vmem:[%s566 + $0x8] sm:$0xff]
    %570 = vrot.lane.b32.xlu0 %v565, 64
    %v571 = vpop.permute.xlu0 %570
    %v572 = vsel %vm378, %v571, 0
    %574 = vmatprep.subr.mxu0 %v361
    %575 = vmatpush1.msra.mxu0 %v360
    %576 = vmatprep.subr.mxu0 %v363
    %577 = vmatpush1.msra.mxu0 %v362
    %578 = vmatprep.subr.mxu0 %v365
    %579 = vmatpush1.msra.mxu0 %v364
    %580 = vmatprep.subr.mxu0 %v367
    %581 = vmatpush1.msra.mxu0 %v366
    %582 = vmatprep.subr.mxu0 %v369
    %583 = vmatpush1.msra.mxu0 %v368
    %584 = vmatprep.subr.mxu0 %v371
    %585 = vmatpush1.msra.mxu0 %v370
    %586 = vmatprep.subr.mxu0 %v373
    %587 = vmatpush1.msra.mxu0 %v372
    %588 = vmatprep.subr.mxu0 %v375
    %589 = vmatpush1.msra.mxu0 %v374
    %590 = vmatprep.subr.mxu0 0.0
    %591 = vmatpush1.msra.mxu0 0.0
    %592 = vmatprep.subr.mxu0 0.0
    %593 = vmatpush1.msra.mxu0 0.0
    %594 = vmatprep.subr.mxu0 0.0
    %595 = vmatpush1.msra.mxu0 0.0
    %596 = vmatprep.subr.mxu0 0.0
    %597 = vmatpush1.msra.mxu0 0.0
    %598 = vmatprep.subr.mxu0 0.0
    %599 = vmatpush1.msra.mxu0 0.0
    %600 = vmatprep.subr.mxu0 0.0
    %601 = vmatpush1.msra.mxu0 0.0
    %602 = vmatprep.subr.mxu0 0.0
    %603 = vmatpush1.msra.mxu0 0.0
    %604 = vmatprep.subr.mxu0 0.0
    %605 = vmatpush1.msra.mxu0 0.0
    %606 = vmatprep.subr.mxu0 0.0
    %607 = vmatpush1.msra.mxu0 0.0
    %608 = vmatprep.subr.mxu0 0.0
    %609 = vmatpush1.msra.mxu0 0.0
    %610 = vmatprep.subr.mxu0 0.0
    %611 = vmatpush1.msra.mxu0 0.0
    %612 = vmatprep.subr.mxu0 0.0
    %613 = vmatpush1.msra.mxu0 0.0
    %614 = vmatprep.subr.mxu0 0.0
    %615 = vmatpush1.msra.mxu0 0.0
    %616 = vmatprep.subr.mxu0 0.0
    %617 = vmatpush1.msra.mxu0 0.0
    %618 = vmatprep.subr.mxu0 0.0
    %619 = vmatpush1.msra.mxu0 0.0
    %620 = vmatprep.subr.mxu0 0.0
    %621 = vmatpush1.msra.mxu0 0.0
    %622 = vmatprep.subr.mxu0 0.0
    %623 = vmatpush1.msra.mxu0 0.0
    %624 = vmatprep.subr.mxu0 0.0
    %625 = vmatpush1.msra.mxu0 0.0
    %626 = vmatprep.subr.mxu0 0.0
    %627 = vmatpush1.msra.mxu0 0.0
    %628 = vmatprep.subr.mxu0 0.0
    %629 = vmatpush1.msra.mxu0 0.0
    %630 = vmatprep.subr.mxu0 0.0
    %631 = vmatpush1.msra.mxu0 0.0
    %632 = vmatprep.subr.mxu0 0.0
    %633 = vmatpush1.msra.mxu0 0.0
    %634 = vmatprep.subr.mxu0 0.0
    %635 = vmatpush1.msra.mxu0 0.0
    %636 = vmatprep.subr.mxu0 0.0
    %637 = vmatpush1.msra.mxu0 0.0
    %638 = vmatprep.mubr.f32.mxu0 0.0
    %639 = vmatmul.mubr.f32.gmra.mrb[0].mxu0 %v572
    %v640 = vpop.f32.mrb[0].mxu0
    %v641 = vadd.f32 0.0, %v640
    %v642 = vpop.f32.mrb[0].mxu0
    %v643 = vadd.f32 0.0, %v642
    %644 = vdwg.mxu0
    %v645 = vadd.f32 %v567, %v641
    %v646 = vadd.f32 %v568, %v643
    %v647 = vtanh.pop %v645
    %v648 = vtanh.pop %v646
    %v649 = vmul.f32 %v647, 0.5
    %v650 = vmul.f32 %v648, 0.5
    %v651 = vadd.f32 %v649, 0.5
    %v652 = vadd.f32 %v650, 0.5
    %v653 = vmul.f32 %v651, %v563
    %v654 = vmul.f32 %v651, %v648
    %656 = vrot.lane.b32.xlu0 %v654, 64
    %v657 = vpop.permute.xlu0 %656
    %v659 = vadd.f32 %v653, %v657
    %v660 = vtanh.pop %v659
    %v661 = vmul.f32 %v652, %v660
    %s662 = scalar_lea.vmem [#allocation2], 48
    %v663 = vld [vmem:[%s662] sm:$0xff]
    %v664 = vld [vmem:[%s662 + $0x8] sm:$0xff]
    %666 = vrot.lane.b32.xlu0 %v661, 64
    %v667 = vpop.permute.xlu0 %666
    %v668 = vsel %vm378, %v667, 0
    %670 = vmatprep.subr.mxu0 %v361
    %671 = vmatpush1.msra.mxu0 %v360
    %672 = vmatprep.subr.mxu0 %v363
    %673 = vmatpush1.msra.mxu0 %v362
    %674 = vmatprep.subr.mxu0 %v365
    %675 = vmatpush1.msra.mxu0 %v364
    %676 = vmatprep.subr.mxu0 %v367
    %677 = vmatpush1.msra.mxu0 %v366
    %678 = vmatprep.subr.mxu0 %v369
    %679 = vmatpush1.msra.mxu0 %v368
    %680 = vmatprep.subr.mxu0 %v371
    %681 = vmatpush1.msra.mxu0 %v370
    %682 = vmatprep.subr.mxu0 %v373
    %683 = vmatpush1.msra.mxu0 %v372
    %684 = vmatprep.subr.mxu0 %v375
    %685 = vmatpush1.msra.mxu0 %v374
    %686 = vmatprep.subr.mxu0 0.0
    %687 = vmatpush1.msra.mxu0 0.0
    %688 = vmatprep.subr.mxu0 0.0
    %689 = vmatpush1.msra.mxu0 0.0
    %690 = vmatprep.subr.mxu0 0.0
    %691 = vmatpush1.msra.mxu0 0.0
    %692 = vmatprep.subr.mxu0 0.0
    %693 = vmatpush1.msra.mxu0 0.0
    %694 = vmatprep.subr.mxu0 0.0
    %695 = vmatpush1.msra.mxu0 0.0
    %696 = vmatprep.subr.mxu0 0.0
    %697 = vmatpush1.msra.mxu0 0.0
    %698 = vmatprep.subr.mxu0 0.0
    %699 = vmatpush1.msra.mxu0 0.0
    %700 = vmatprep.subr.mxu0 0.0
    %701 = vmatpush1.msra.mxu0 0.0
    %702 = vmatprep.subr.mxu0 0.0
    %703 = vmatpush1.msra.mxu0 0.0
    %704 = vmatprep.subr.mxu0 0.0
    %705 = vmatpush1.msra.mxu0 0.0
    %706 = vmatprep.subr.mxu0 0.0
    %707 = vmatpush1.msra.mxu0 0.0
    %708 = vmatprep.subr.mxu0 0.0
    %709 = vmatpush1.msra.mxu0 0.0
    %710 = vmatprep.subr.mxu0 0.0
    %711 = vmatpush1.msra.mxu0 0.0
    %712 = vmatprep.subr.mxu0 0.0
    %713 = vmatpush1.msra.mxu0 0.0
    %714 = vmatprep.subr.mxu0 0.0
    %715 = vmatpush1.msra.mxu0 0.0
    %716 = vmatprep.subr.mxu0 0.0
    %717 = vmatpush1.msra.mxu0 0.0
    %718 = vmatprep.subr.mxu0 0.0
    %719 = vmatpush1.msra.mxu0 0.0
    %720 = vmatprep.subr.mxu0 0.0
    %721 = vmatpush1.msra.mxu0 0.0
    %722 = vmatprep.subr.mxu0 0.0
    %723 = vmatpush1.msra.mxu0 0.0
    %724 = vmatprep.subr.mxu0 0.0
    %725 = vmatpush1.msra.mxu0 0.0
    %726 = vmatprep.subr.mxu0 0.0
    %727 = vmatpush1.msra.mxu0 0.0
    %728 = vmatprep.subr.mxu0 0.0
    %729 = vmatpush1.msra.mxu0 0.0
    %730 = vmatprep.subr.mxu0 0.0
    %731 = vmatpush1.msra.mxu0 0.0
    %732 = vmatprep.subr.mxu0 0.0
    %733 = vmatpush1.msra.mxu0 0.0
    %734 = vmatprep.mubr.f32.mxu0 0.0
    %735 = vmatmul.mubr.f32.gmra.mrb[0].mxu0 %v668
    %v736 = vpop.f32.mrb[0].mxu0
    %v737 = vadd.f32 0.0, %v736
    %v738 = vpop.f32.mrb[0].mxu0
    %v739 = vadd.f32 0.0, %v738
    %740 = vdwg.mxu0
    %v741 = vadd.f32 %v663, %v737
    %v742 = vadd.f32 %v664, %v739
    %v743 = vtanh.pop %v741
    %v744 = vtanh.pop %v742
    %v745 = vmul.f32 %v743, 0.5
    %v746 = vmul.f32 %v744, 0.5
    %v747 = vadd.f32 %v745, 0.5
    %v748 = vadd.f32 %v746, 0.5
    %v749 = vmul.f32 %v747, %v659
    %v750 = vmul.f32 %v747, %v744
    %752 = vrot.lane.b32.xlu0 %v750, 64
    %v753 = vpop.permute.xlu0 %752
    %v755 = vadd.f32 %v749, %v753
    %v756 = vtanh.pop %v755
    %v757 = vmul.f32 %v748, %v756
    %s758 = scalar_lea.vmem [#allocation2], 64
    %v759 = vld [vmem:[%s758] sm:$0xff]
    %v760 = vld [vmem:[%s758 + $0x8] sm:$0xff]
    %762 = vrot.lane.b32.xlu0 %v757, 64
    %v763 = vpop.permute.xlu0 %762
    %v764 = vsel %vm378, %v763, 0
    %766 = vmatprep.subr.mxu0 %v361
    %767 = vmatpush1.msra.mxu0 %v360
    %768 = vmatprep.subr.mxu0 %v363
    %769 = vmatpush1.msra.mxu0 %v362
    %770 = vmatprep.subr.mxu0 %v365
    %771 = vmatpush1.msra.mxu0 %v364
    %772 = vmatprep.subr.mxu0 %v367
    %773 = vmatpush1.msra.mxu0 %v366
    %774 = vmatprep.subr.mxu0 %v369
    %775 = vmatpush1.msra.mxu0 %v368
    %776 = vmatprep.subr.mxu0 %v371
    %777 = vmatpush1.msra.mxu0 %v370
    %778 = vmatprep.subr.mxu0 %v373
    %779 = vmatpush1.msra.mxu0 %v372
    %780 = vmatprep.subr.mxu0 %v375
    %781 = vmatpush1.msra.mxu0 %v374
    %782 = vmatprep.subr.mxu0 0.0
    %783 = vmatpush1.msra.mxu0 0.0
    %784 = vmatprep.subr.mxu0 0.0
    %785 = vmatpush1.msra.mxu0 0.0
    %786 = vmatprep.subr.mxu0 0.0
    %787 = vmatpush1.msra.mxu0 0.0
    %788 = vmatprep.subr.mxu0 0.0
    %789 = vmatpush1.msra.mxu0 0.0
    %790 = vmatprep.subr.mxu0 0.0
    %791 = vmatpush1.msra.mxu0 0.0
    %792 = vmatprep.subr.mxu0 0.0
    %793 = vmatpush1.msra.mxu0 0.0
    %794 = vmatprep.subr.mxu0 0.0
    %795 = vmatpush1.msra.mxu0 0.0
    %796 = vmatprep.subr.mxu0 0.0
    %797 = vmatpush1.msra.mxu0 0.0
    %798 = vmatprep.subr.mxu0 0.0
    %799 = vmatpush1.msra.mxu0 0.0
    %800 = vmatprep.subr.mxu0 0.0
    %801 = vmatpush1.msra.mxu0 0.0
    %802 = vmatprep.subr.mxu0 0.0
    %803 = vmatpush1.msra.mxu0 0.0
    %804 = vmatprep.subr.mxu0 0.0
    %805 = vmatpush1.msra.mxu0 0.0
    %806 = vmatprep.subr.mxu0 0.0
    %807 = vmatpush1.msra.mxu0 0.0
    %808 = vmatprep.subr.mxu0 0.0
    %809 = vmatpush1.msra.mxu0 0.0
    %810 = vmatprep.subr.mxu0 0.0
    %811 = vmatpush1.msra.mxu0 0.0
    %812 = vmatprep.subr.mxu0 0.0
    %813 = vmatpush1.msra.mxu0 0.0
    %814 = vmatprep.subr.mxu0 0.0
    %815 = vmatpush1.msra.mxu0 0.0
    %816 = vmatprep.subr.mxu0 0.0
    %817 = vmatpush1.msra.mxu0 0.0
    %818 = vmatprep.subr.mxu0 0.0
    %819 = vmatpush1.msra.mxu0 0.0
    %820 = vmatprep.subr.mxu0 0.0
    %821 = vmatpush1.msra.mxu0 0.0
    %822 = vmatprep.subr.mxu0 0.0
    %823 = vmatpush1.msra.mxu0 0.0
    %824 = vmatprep.subr.mxu0 0.0
    %825 = vmatpush1.msra.mxu0 0.0
    %826 = vmatprep.subr.mxu0 0.0
    %827 = vmatpush1.msra.mxu0 0.0
    %828 = vmatprep.subr.mxu0 0.0
    %829 = vmatpush1.msra.mxu0 0.0
    %830 = vmatprep.mubr.f32.mxu0 0.0
    %831 = vmatmul.mubr.f32.gmra.mrb[0].mxu0 %v764
    %v832 = vpop.f32.mrb[0].mxu0
    %v833 = vadd.f32 0.0, %v832
    %v834 = vpop.f32.mrb[0].mxu0
    %v835 = vadd.f32 0.0, %v834
    %836 = vdwg.mxu0
    %v837 = vadd.f32 %v759, %v833
    %v838 = vadd.f32 %v760, %v835
    %v839 = vtanh.pop %v837
    %v840 = vtanh.pop %v838
    %v841 = vmul.f32 %v839, 0.5
    %v842 = vmul.f32 %v840, 0.5
    %v843 = vadd.f32 %v841, 0.5
    %v844 = vadd.f32 %v842, 0.5
    %v845 = vmul.f32 %v843, %v755
    %v846 = vmul.f32 %v843, %v840
    %848 = vrot.lane.b32.xlu0 %v846, 64
    %v849 = vpop.permute.xlu0 %848
    %v851 = vadd.f32 %v845, %v849
    %v852 = vtanh.pop %v851
    %v853 = vmul.f32 %v844, %v852
    %s854 = scalar_lea.vmem [#allocation2], 80
    %v855 = vld [vmem:[%s854] sm:$0xff]
    %v856 = vld [vmem:[%s854 + $0x8] sm:$0xff]
    %858 = vrot.lane.b32.xlu0 %v853, 64
    %v859 = vpop.permute.xlu0 %858
    %v860 = vsel %vm378, %v859, 0
    %862 = vmatprep.subr.mxu0 %v361
    %863 = vmatpush1.msra.mxu0 %v360
    %864 = vmatprep.subr.mxu0 %v363
    %865 = vmatpush1.msra.mxu0 %v362
    %866 = vmatprep.subr.mxu0 %v365
    %867 = vmatpush1.msra.mxu0 %v364
    %868 = vmatprep.subr.mxu0 %v367
    %869 = vmatpush1.msra.mxu0 %v366
    %870 = vmatprep.subr.mxu0 %v369
    %871 = vmatpush1.msra.mxu0 %v368
    %872 = vmatprep.subr.mxu0 %v371
    %873 = vmatpush1.msra.mxu0 %v370
    %874 = vmatprep.subr.mxu0 %v373
    %875 = vmatpush1.msra.mxu0 %v372
    %876 = vmatprep.subr.mxu0 %v375
    %877 = vmatpush1.msra.mxu0 %v374
    %878 = vmatprep.subr.mxu0 0.0
    %879 = vmatpush1.msra.mxu0 0.0
    %880 = vmatprep.subr.mxu0 0.0
    %881 = vmatpush1.msra.mxu0 0.0
    %882 = vmatprep.subr.mxu0 0.0
    %883 = vmatpush1.msra.mxu0 0.0
    %884 = vmatprep.subr.mxu0 0.0
    %885 = vmatpush1.msra.mxu0 0.0
    %886 = vmatprep.subr.mxu0 0.0
    %887 = vmatpush1.msra.mxu0 0.0
    %888 = vmatprep.subr.mxu0 0.0
    %889 = vmatpush1.msra.mxu0 0.0
    %890 = vmatprep.subr.mxu0 0.0
    %891 = vmatpush1.msra.mxu0 0.0
    %892 = vmatprep.subr.mxu0 0.0
    %893 = vmatpush1.msra.mxu0 0.0
    %894 = vmatprep.subr.mxu0 0.0
    %895 = vmatpush1.msra.mxu0 0.0
    %896 = vmatprep.subr.mxu0 0.0
    %897 = vmatpush1.msra.mxu0 0.0
    %898 = vmatprep.subr.mxu0 0.0
    %899 = vmatpush1.msra.mxu0 0.0
    %900 = vmatprep.subr.mxu0 0.0
    %901 = vmatpush1.msra.mxu0 0.0
    %902 = vmatprep.subr.mxu0 0.0
    %903 = vmatpush1.msra.mxu0 0.0
    %904 = vmatprep.subr.mxu0 0.0
    %905 = vmatpush1.msra.mxu0 0.0
    %906 = vmatprep.subr.mxu0 0.0
    %907 = vmatpush1.msra.mxu0 0.0
    %908 = vmatprep.subr.mxu0 0.0
    %909 = vmatpush1.msra.mxu0 0.0
    %910 = vmatprep.subr.mxu0 0.0
    %911 = vmatpush1.msra.mxu0 0.0
    %912 = vmatprep.subr.mxu0 0.0
    %913 = vmatpush1.msra.mxu0 0.0
    %914 = vmatprep.subr.mxu0 0.0
    %915 = vmatpush1.msra.mxu0 0.0
    %916 = vmatprep.subr.mxu0 0.0
    %917 = vmatpush1.msra.mxu0 0.0
    %918 = vmatprep.subr.mxu0 0.0
    %919 = vmatpush1.msra.mxu0 0.0
    %920 = vmatprep.subr.mxu0 0.0
    %921 = vmatpush1.msra.mxu0 0.0
    %922 = vmatprep.subr.mxu0 0.0
    %923 = vmatpush1.msra.mxu0 0.0
    %924 = vmatprep.subr.mxu0 0.0
    %925 = vmatpush1.msra.mxu0 0.0
    %926 = vmatprep.mubr.f32.mxu0 0.0
    %927 = vmatmul.mubr.f32.gmra.mrb[0].mxu0 %v860
    %v928 = vpop.f32.mrb[0].mxu0
    %v929 = vadd.f32 0.0, %v928
    %v930 = vpop.f32.mrb[0].mxu0
    %v931 = vadd.f32 0.0, %v930
    %932 = vdwg.mxu0
    %v933 = vadd.f32 %v855, %v929
    %v934 = vadd.f32 %v856, %v931
    %v935 = vtanh.pop %v933
    %v936 = vtanh.pop %v934
    %v937 = vmul.f32 %v935, 0.5
    %v938 = vmul.f32 %v936, 0.5
    %v939 = vadd.f32 %v937, 0.5
    %v940 = vadd.f32 %v938, 0.5
    %v941 = vmul.f32 %v939, %v851
    %v942 = vmul.f32 %v939, %v936
    %944 = vrot.lane.b32.xlu0 %v942, 64
    %v945 = vpop.permute.xlu0 %944
    %v947 = vadd.f32 %v941, %v945
    %v948 = vtanh.pop %v947
    %v949 = vmul.f32 %v940, %v948
    %s950 = scalar_lea.vmem [#allocation2], 96
    %v951 = vld [vmem:[%s950] sm:$0xff]
    %v952 = vld [vmem:[%s950 + $0x8] sm:$0xff]
    %954 = vrot.lane.b32.xlu0 %v949, 64
    %v955 = vpop.permute.xlu0 %954
    %v956 = vsel %vm378, %v955, 0
    %958 = vmatprep.subr.mxu0 %v361
    %959 = vmatpush1.msra.mxu0 %v360
    %960 = vmatprep.subr.mxu0 %v363
    %961 = vmatpush1.msra.mxu0 %v362
    %962 = vmatprep.subr.mxu0 %v365
    %963 = vmatpush1.msra.mxu0 %v364
    %964 = vmatprep.subr.mxu0 %v367
    %965 = vmatpush1.msra.mxu0 %v366
    %966 = vmatprep.subr.mxu0 %v369
    %967 = vmatpush1.msra.mxu0 %v368
    %968 = vmatprep.subr.mxu0 %v371
    %969 = vmatpush1.msra.mxu0 %v370
    %970 = vmatprep.subr.mxu0 %v373
    %971 = vmatpush1.msra.mxu0 %v372
    %972 = vmatprep.subr.mxu0 %v375
    %973 = vmatpush1.msra.mxu0 %v374
    %974 = vmatprep.subr.mxu0 0.0
    %975 = vmatpush1.msra.mxu0 0.0
    %976 = vmatprep.subr.mxu0 0.0
    %977 = vmatpush1.msra.mxu0 0.0
    %978 = vmatprep.subr.mxu0 0.0
    %979 = vmatpush1.msra.mxu0 0.0
    %980 = vmatprep.subr.mxu0 0.0
    %981 = vmatpush1.msra.mxu0 0.0
    %982 = vmatprep.subr.mxu0 0.0
    %983 = vmatpush1.msra.mxu0 0.0
    %984 = vmatprep.subr.mxu0 0.0
    %985 = vmatpush1.msra.mxu0 0.0
    %986 = vmatprep.subr.mxu0 0.0
    %987 = vmatpush1.msra.mxu0 0.0
    %988 = vmatprep.subr.mxu0 0.0
    %989 = vmatpush1.msra.mxu0 0.0
    %990 = vmatprep.subr.mxu0 0.0
    %991 = vmatpush1.msra.mxu0 0.0
    %992 = vmatprep.subr.mxu0 0.0
    %993 = vmatpush1.msra.mxu0 0.0
    %994 = vmatprep.subr.mxu0 0.0
    %995 = vmatpush1.msra.mxu0 0.0
    %996 = vmatprep.subr.mxu0 0.0
    %997 = vmatpush1.msra.mxu0 0.0
    %998 = vmatprep.subr.mxu0 0.0
    %999 = vmatpush1.msra.mxu0 0.0
    %1000 = vmatprep.subr.mxu0 0.0
    %1001 = vmatpush1.msra.mxu0 0.0
    %1002 = vmatprep.subr.mxu0 0.0
    %1003 = vmatpush1.msra.mxu0 0.0
    %1004 = vmatprep.subr.mxu0 0.0
    %1005 = vmatpush1.msra.mxu0 0.0
    %1006 = vmatprep.subr.mxu0 0.0
    %1007 = vmatpush1.msra.mxu0 0.0
    %1008 = vmatprep.subr.mxu0 0.0
    %1009 = vmatpush1.msra.mxu0 0.0
    %1010 = vmatprep.subr.mxu0 0.0
    %1011 = vmatpush1.msra.mxu0 0.0
    %1012 = vmatprep.subr.mxu0 0.0
    %1013 = vmatpush1.msra.mxu0 0.0
    %1014 = vmatprep.subr.mxu0 0.0
    %1015 = vmatpush1.msra.mxu0 0.0
    %1016 = vmatprep.subr.mxu0 0.0
    %1017 = vmatpush1.msra.mxu0 0.0
    %1018 = vmatprep.subr.mxu0 0.0
    %1019 = vmatpush1.msra.mxu0 0.0
    %1020 = vmatprep.subr.mxu0 0.0
    %1021 = vmatpush1.msra.mxu0 0.0
    %1022 = vmatprep.mubr.f32.mxu0 0.0
    %1023 = vmatmul.mubr.f32.gmra.mrb[0].mxu0 %v956
    %v1024 = vpop.f32.mrb[0].mxu0
    %v1025 = vadd.f32 0.0, %v1024
    %v1026 = vpop.f32.mrb[0].mxu0
    %v1027 = vadd.f32 0.0, %v1026
    %1028 = vdwg.mxu0
    %v1029 = vadd.f32 %v951, %v1025
    %v1030 = vadd.f32 %v952, %v1027
    %v1031 = vtanh.pop %v1029
    %v1032 = vtanh.pop %v1030
    %v1033 = vmul.f32 %v1031, 0.5
    %v1034 = vmul.f32 %v1032, 0.5
    %v1035 = vadd.f32 %v1033, 0.5
    %v1036 = vadd.f32 %v1034, 0.5
    %v1037 = vmul.f32 %v1035, %v947
    %v1038 = vmul.f32 %v1035, %v1032
    %1040 = vrot.lane.b32.xlu0 %v1038, 64
    %v1041 = vpop.permute.xlu0 %1040
    %v1043 = vadd.f32 %v1037, %v1041
    %v1044 = vtanh.pop %v1043
    %v1045 = vmul.f32 %v1036, %v1044
    %s1046 = scalar_lea.vmem [#allocation2], 112
    %v1047 = vld [vmem:[%s1046] sm:$0xff]
    %v1048 = vld [vmem:[%s1046 + $0x8] sm:$0xff]
    %1050 = vrot.lane.b32.xlu0 %v1045, 64
    %v1051 = vpop.permute.xlu0 %1050
    %v1052 = vsel %vm378, %v1051, 0
    %1054 = vmatprep.subr.mxu0 %v361
    %1055 = vmatpush1.msra.mxu0 %v360
    %1056 = vmatprep.subr.mxu0 %v363
    %1057 = vmatpush1.msra.mxu0 %v362
    %1058 = vmatprep.subr.mxu0 %v365
    %1059 = vmatpush1.msra.mxu0 %v364
    %1060 = vmatprep.subr.mxu0 %v367
    %1061 = vmatpush1.msra.mxu0 %v366
    %1062 = vmatprep.subr.mxu0 %v369
    %1063 = vmatpush1.msra.mxu0 %v368
    %1064 = vmatprep.subr.mxu0 %v371
    %1065 = vmatpush1.msra.mxu0 %v370
    %1066 = vmatprep.subr.mxu0 %v373
    %1067 = vmatpush1.msra.mxu0 %v372
    %1068 = vmatprep.subr.mxu0 %v375
    %1069 = vmatpush1.msra.mxu0 %v374
    %1070 = vmatprep.subr.mxu0 0.0
    %1071 = vmatpush1.msra.mxu0 0.0
    %1072 = vmatprep.subr.mxu0 0.0
    %1073 = vmatpush1.msra.mxu0 0.0
    %1074 = vmatprep.subr.mxu0 0.0
    %1075 = vmatpush1.msra.mxu0 0.0
    %1076 = vmatprep.subr.mxu0 0.0
    %1077 = vmatpush1.msra.mxu0 0.0
    %1078 = vmatprep.subr.mxu0 0.0
    %1079 = vmatpush1.msra.mxu0 0.0
    %1080 = vmatprep.subr.mxu0 0.0
    %1081 = vmatpush1.msra.mxu0 0.0
    %1082 = vmatprep.subr.mxu0 0.0
    %1083 = vmatpush1.msra.mxu0 0.0
    %1084 = vmatprep.subr.mxu0 0.0
    %1085 = vmatpush1.msra.mxu0 0.0
    %1086 = vmatprep.subr.mxu0 0.0
    %1087 = vmatpush1.msra.mxu0 0.0
    %1088 = vmatprep.subr.mxu0 0.0
    %1089 = vmatpush1.msra.mxu0 0.0
    %1090 = vmatprep.subr.mxu0 0.0
    %1091 = vmatpush1.msra.mxu0 0.0
    %1092 = vmatprep.subr.mxu0 0.0
    %1093 = vmatpush1.msra.mxu0 0.0
    %1094 = vmatprep.subr.mxu0 0.0
    %1095 = vmatpush1.msra.mxu0 0.0
    %1096 = vmatprep.subr.mxu0 0.0
    %1097 = vmatpush1.msra.mxu0 0.0
    %1098 = vmatprep.subr.mxu0 0.0
    %1099 = vmatpush1.msra.mxu0 0.0
    %1100 = vmatprep.subr.mxu0 0.0
    %1101 = vmatpush1.msra.mxu0 0.0
    %1102 = vmatprep.subr.mxu0 0.0
    %1103 = vmatpush1.msra.mxu0 0.0
    %1104 = vmatprep.subr.mxu0 0.0
    %1105 = vmatpush1.msra.mxu0 0.0
    %1106 = vmatprep.subr.mxu0 0.0
    %1107 = vmatpush1.msra.mxu0 0.0
    %1108 = vmatprep.subr.mxu0 0.0
    %1109 = vmatpush1.msra.mxu0 0.0
    %1110 = vmatprep.subr.mxu0 0.0
    %1111 = vmatpush1.msra.mxu0 0.0
    %1112 = vmatprep.subr.mxu0 0.0
    %1113 = vmatpush1.msra.mxu0 0.0
    %1114 = vmatprep.subr.mxu0 0.0
    %1115 = vmatpush1.msra.mxu0 0.0
    %1116 = vmatprep.subr.mxu0 0.0
    %1117 = vmatpush1.msra.mxu0 0.0
    %1118 = vmatprep.mubr.f32.mxu0 0.0
    %1119 = vmatmul.mubr.f32.gmra.mrb[0].mxu0 %v1052
    %v1120 = vpop.f32.mrb[0].mxu0
    %v1121 = vadd.f32 0.0, %v1120
    %v1122 = vpop.f32.mrb[0].mxu0
    %v1123 = vadd.f32 0.0, %v1122
    %1124 = vdwg.mxu0
    %v1125 = vadd.f32 %v1047, %v1121
    %v1126 = vadd.f32 %v1048, %v1123
    %v1127 = vtanh.pop %v1125
    %v1128 = vtanh.pop %v1126
    %v1129 = vmul.f32 %v1127, 0.5
    %v1130 = vmul.f32 %v1128, 0.5
    %v1131 = vadd.f32 %v1129, 0.5
    %v1132 = vadd.f32 %v1130, 0.5
    %v1133 = vmul.f32 %v1131, %v1043
    %v1134 = vmul.f32 %v1131, %v1128
    %1136 = vrot.lane.b32.xlu0 %v1134, 64
    %v1137 = vpop.permute.xlu0 %1136
    %v1139 = vadd.f32 %v1133, %v1137
    %v1140 = vtanh.pop %v1139
    %v1141 = vmul.f32 %v1132, %v1140
    %v1142 = vld [vmem:[%s7] sm:$0xff]
    %v1143 = vld [vmem:[%s7 + $0x8] sm:$0xff]
    %v1144 = vld [vmem:[%s7 + $0x10] sm:$0xff]
    %v1145 = vld [vmem:[%s7 + $0x18] sm:$0xff]
    %v1146 = vld [vmem:[%s7 + $0x20] sm:$0xff]
    %v1147 = vld [vmem:[%s7 + $0x28] sm:$0xff]
    %v1148 = vld [vmem:[%s7 + $0x30] sm:$0xff]
    %v1149 = vld [vmem:[%s7 + $0x38] sm:$0xff]
    %v1150 = vld [vmem:[%s8] sm:$0x1]
    %v1152 = vlaneseq
    %v1153 = vshrl.u32 %v1152, 7
    %v1154 = vsub.s32 0, %v1153
    %v1155 = vrot.slane %v1150, %v1154
    %1158 = vrot.lane.b32.xlu0 %v1141, 64
    %v1159 = vpop.permute.xlu0 %1158
    %v1160 = vsel %vm378, %v1159, 0
    %1162 = vmatprep.subr.mxu0 0.0
    %1163 = vmatpush1.msra.mxu0 %v1142
    %1164 = vmatprep.subr.mxu0 0.0
    %1165 = vmatpush1.msra.mxu0 %v1143
    %1166 = vmatprep.subr.mxu0 0.0
    %1167 = vmatpush1.msra.mxu0 %v1144
    %1168 = vmatprep.subr.mxu0 0.0
    %1169 = vmatpush1.msra.mxu0 %v1145
    %1170 = vmatprep.subr.mxu0 0.0
    %1171 = vmatpush1.msra.mxu0 %v1146
    %1172 = vmatprep.subr.mxu0 0.0
    %1173 = vmatpush1.msra.mxu0 %v1147
    %1174 = vmatprep.subr.mxu0 0.0
    %1175 = vmatpush1.msra.mxu0 %v1148
    %1176 = vmatprep.subr.mxu0 0.0
    %1177 = vmatpush1.msra.mxu0 %v1149
    %1178 = vmatprep.subr.mxu0 0.0
    %1179 = vmatpush1.msra.mxu0 0.0
    %1180 = vmatprep.subr.mxu0 0.0
    %1181 = vmatpush1.msra.mxu0 0.0
    %1182 = vmatprep.subr.mxu0 0.0
    %1183 = vmatpush1.msra.mxu0 0.0
    %1184 = vmatprep.subr.mxu0 0.0
    %1185 = vmatpush1.msra.mxu0 0.0
    %1186 = vmatprep.subr.mxu0 0.0
    %1187 = vmatpush1.msra.mxu0 0.0
    %1188 = vmatprep.subr.mxu0 0.0
    %1189 = vmatpush1.msra.mxu0 0.0
    %1190 = vmatprep.subr.mxu0 0.0
    %1191 = vmatpush1.msra.mxu0 0.0
    %1192 = vmatprep.subr.mxu0 0.0
    %1193 = vmatpush1.msra.mxu0 0.0
    %1194 = vmatprep.subr.mxu0 0.0
    %1195 = vmatpush1.msra.mxu0 0.0
    %1196 = vmatprep.subr.mxu0 0.0
    %1197 = vmatpush1.msra.mxu0 0.0
    %1198 = vmatprep.subr.mxu0 0.0
    %1199 = vmatpush1.msra.mxu0 0.0
    %1200 = vmatprep.subr.mxu0 0.0
    %1201 = vmatpush1.msra.mxu0 0.0
    %1202 = vmatprep.subr.mxu0 0.0
    %1203 = vmatpush1.msra.mxu0 0.0
    %1204 = vmatprep.subr.mxu0 0.0
    %1205 = vmatpush1.msra.mxu0 0.0
    %1206 = vmatprep.subr.mxu0 0.0
    %1207 = vmatpush1.msra.mxu0 0.0
    %1208 = vmatprep.subr.mxu0 0.0
    %1209 = vmatpush1.msra.mxu0 0.0
    %1210 = vmatprep.subr.mxu0 0.0
    %1211 = vmatpush1.msra.mxu0 0.0
    %1212 = vmatprep.subr.mxu0 0.0
    %1213 = vmatpush1.msra.mxu0 0.0
    %1214 = vmatprep.subr.mxu0 0.0
    %1215 = vmatpush1.msra.mxu0 0.0
    %1216 = vmatprep.subr.mxu0 0.0
    %1217 = vmatpush1.msra.mxu0 0.0
    %1218 = vmatprep.subr.mxu0 0.0
    %1219 = vmatpush1.msra.mxu0 0.0
    %1220 = vmatprep.subr.mxu0 0.0
    %1221 = vmatpush1.msra.mxu0 0.0
    %1222 = vmatprep.subr.mxu0 0.0
    %1223 = vmatpush1.msra.mxu0 0.0
    %1224 = vmatprep.subr.mxu0 0.0
    %1225 = vmatpush1.msra.mxu0 0.0
    %1226 = vmatprep.mubr.f32.mxu0 0.0
    %1227 = vmatmul.mubr.f32.gmra.mrb[0].mxu0 %v1160
    %v1228 = vpop.f32.mrb[0].mxu0
    %v1229 = vadd.f32 %v1155, %v1228
    %v1230 = vpop.f32.mrb[0].mxu0
    %1231 = vdwg.mxu0
    %v1232 = vmax.f32 %v1229, 0.0
    %v1233 = vlaneseq
    %v1234 = vand.u32 %v1233, 127
    %v1235 = vadd.s32 %v1234, 128
    %v1236 = vadd.s32 %v1234, 256
    %v1237 = vadd.s32 %v1234, 384
    %v1238 = vadd.s32 %v1234, 512
    %v1239 = vadd.s32 %v1234, 640
    %v1240 = vadd.s32 %v1234, 768
    %v1241 = vadd.s32 %v1234, 896
    %v1242 = vadd.s32 %v1234, 1024
    %v1243 = vadd.s32 %v1234, 1152
    %v1244 = vadd.s32 %v1234, 1280
    %v1245 = vadd.s32 %v1234, 1408
    %v1246 = vadd.s32 %v1234, 1536
    %v1247 = vadd.s32 %v1234, 1664
    %v1248 = vadd.s32 %v1234, 1792
    %v1249 = vadd.s32 %v1234, 1920
    %v1250 = vld [vmem:[%s2] sm:$0xff]
    %1251 = vset.pattern.permute.xlu0 0
    %1252 = vperm.xlu0 %1251, %v1250
    %v1253 = vpop.permute.xlu0 %1252
    %vm1254 = vcmp.eq.s32.totalorder %v1234, %v1253
    %vm1255 = vcmp.eq.s32.totalorder %v1235, %v1253
    %vm1256 = vcmp.eq.s32.totalorder %v1236, %v1253
    %vm1257 = vcmp.eq.s32.totalorder %v1237, %v1253
    %vm1258 = vcmp.eq.s32.totalorder %v1238, %v1253
    %vm1259 = vcmp.eq.s32.totalorder %v1239, %v1253
    %vm1260 = vcmp.eq.s32.totalorder %v1240, %v1253
    %vm1261 = vcmp.eq.s32.totalorder %v1241, %v1253
    %vm1262 = vcmp.eq.s32.totalorder %v1242, %v1253
    %vm1263 = vcmp.eq.s32.totalorder %v1243, %v1253
    %vm1264 = vcmp.eq.s32.totalorder %v1244, %v1253
    %vm1265 = vcmp.eq.s32.totalorder %v1245, %v1253
    %vm1266 = vcmp.eq.s32.totalorder %v1246, %v1253
    %vm1267 = vcmp.eq.s32.totalorder %v1247, %v1253
    %vm1268 = vcmp.eq.s32.totalorder %v1248, %v1253
    %vm1269 = vcmp.eq.s32.totalorder %v1249, %v1253
    %v1270 = vsel %vm1254, 1, 0
    %v1271 = vsel %vm1255, 1, 0
    %v1272 = vsel %vm1256, 1, 0
    %v1273 = vsel %vm1257, 1, 0
    %v1274 = vsel %vm1258, 1, 0
    %v1275 = vsel %vm1259, 1, 0
    %v1276 = vsel %vm1260, 1, 0
    %v1277 = vsel %vm1261, 1, 0
    %v1278 = vsel %vm1262, 1, 0
    %v1279 = vsel %vm1263, 1, 0
    %v1280 = vsel %vm1264, 1, 0
    %v1281 = vsel %vm1265, 1, 0
    %v1282 = vsel %vm1266, 1, 0
    %v1283 = vsel %vm1267, 1, 0
    %v1284 = vsel %vm1268, 1, 0
    %v1285 = vsel %vm1269, 1, 0
    %v1286 = vcvt.s32.f32 %v1270
    %v1287 = vcvt.s32.f32 %v1271
    %v1288 = vcvt.s32.f32 %v1272
    %v1289 = vcvt.s32.f32 %v1273
    %v1290 = vcvt.s32.f32 %v1274
    %v1291 = vcvt.s32.f32 %v1275
    %v1292 = vcvt.s32.f32 %v1276
    %v1293 = vcvt.s32.f32 %v1277
    %v1294 = vcvt.s32.f32 %v1278
    %v1295 = vcvt.s32.f32 %v1279
    %v1296 = vcvt.s32.f32 %v1280
    %v1297 = vcvt.s32.f32 %v1281
    %v1298 = vcvt.s32.f32 %v1282
    %v1299 = vcvt.s32.f32 %v1283
    %v1300 = vcvt.s32.f32 %v1284
    %v1301 = vcvt.s32.f32 %v1285
    %1302 = vset.pattern.permute.xlu0 1
    %1303 = vperm.xlu0 %1302, %v1250
    %v1304 = vpop.permute.xlu0 %1303
    %vm1305 = vcmp.eq.s32.totalorder %v1234, %v1304
    %1306 = vset.pattern.permute.xlu0 2
    %1307 = vperm.xlu0 %1306, %v1250
    %v1308 = vpop.permute.xlu0 %1307
    %vm1309 = vcmp.eq.s32.totalorder %v1234, %v1308
    %vm1310 = vmor %vm1305, %vm1309
    %1311 = vset.pattern.permute.xlu0 3
    %1312 = vperm.xlu0 %1311, %v1250
    %v1313 = vpop.permute.xlu0 %1312
    %vm1314 = vcmp.eq.s32.totalorder %v1234, %v1313
    %vm1315 = vmor %vm1310, %vm1314
    %v1316 = vsel %vm1315, 1, 0
    %v1317 = vcvt.s32.f32 %v1316
    %v1318 = vld [vmem:[#allocation10] sm:$0xff]
    %v1319 = vld [vmem:[#allocation10 + $0x8] sm:$0xff]
    %v1320 = vld [vmem:[#allocation10 + $0x10] sm:$0xff]
    %v1321 = vld [vmem:[#allocation10 + $0x18] sm:$0xff]
    %v1322 = vld [vmem:[#allocation10 + $0x20] sm:$0xff]
    %v1323 = vld [vmem:[#allocation10 + $0x28] sm:$0xff]
    %v1324 = vld [vmem:[#allocation10 + $0x30] sm:$0xff]
    %v1325 = vld [vmem:[#allocation10 + $0x38] sm:$0xff]
    %v1326 = vld [vmem:[#allocation10 + $0x40] sm:$0xff]
    %v1327 = vld [vmem:[#allocation10 + $0x48] sm:$0xff]
    %v1328 = vld [vmem:[#allocation10 + $0x50] sm:$0xff]
    %v1329 = vld [vmem:[#allocation10 + $0x58] sm:$0xff]
    %v1330 = vld [vmem:[#allocation10 + $0x60] sm:$0xff]
    %v1331 = vld [vmem:[#allocation10 + $0x68] sm:$0xff]
    %v1332 = vld [vmem:[#allocation10 + $0x70] sm:$0xff]
    %v1333 = vld [vmem:[#allocation10 + $0x78] sm:$0xff]
    %v1334 = vld [vmem:[#allocation10 + $0x80] sm:$0xff]
    %v1335 = vld [vmem:[#allocation10 + $0x88] sm:$0xff]
    %v1336 = vld [vmem:[#allocation10 + $0x90] sm:$0xff]
    %v1337 = vld [vmem:[#allocation10 + $0x98] sm:$0xff]
    %v1338 = vld [vmem:[#allocation10 + $0xa0] sm:$0xff]
    %v1339 = vld [vmem:[#allocation10 + $0xa8] sm:$0xff]
    %v1340 = vld [vmem:[#allocation10 + $0xb0] sm:$0xff]
    %v1341 = vld [vmem:[#allocation10 + $0xb8] sm:$0xff]
    %v1342 = vld [vmem:[#allocation10 + $0xc0] sm:$0xff]
    %v1343 = vld [vmem:[#allocation10 + $0xc8] sm:$0xff]
    %v1344 = vld [vmem:[#allocation10 + $0xd0] sm:$0xff]
    %v1345 = vld [vmem:[#allocation10 + $0xd8] sm:$0xff]
    %v1346 = vld [vmem:[#allocation10 + $0xe0] sm:$0xff]
    %v1347 = vld [vmem:[#allocation10 + $0xe8] sm:$0xff]
    %v1348 = vld [vmem:[#allocation10 + $0xf0] sm:$0xff]
    %v1349 = vld [vmem:[#allocation10 + $0xf8] sm:$0xff]
    %v1350 = vld [vmem:[#allocation10 + $0x100] sm:$0xff]
    %v1351 = vld [vmem:[#allocation10 + $0x108] sm:$0xff]
    %v1352 = vld [vmem:[#allocation10 + $0x110] sm:$0xff]
    %v1353 = vld [vmem:[#allocation10 + $0x118] sm:$0xff]
    %v1354 = vld [vmem:[#allocation10 + $0x120] sm:$0xff]
    %v1355 = vld [vmem:[#allocation10 + $0x128] sm:$0xff]
    %v1356 = vld [vmem:[#allocation10 + $0x130] sm:$0xff]
    %v1357 = vld [vmem:[#allocation10 + $0x138] sm:$0xff]
    %v1358 = vld [vmem:[#allocation10 + $0x140] sm:$0xff]
    %v1359 = vld [vmem:[#allocation10 + $0x148] sm:$0xff]
    %v1360 = vld [vmem:[#allocation10 + $0x150] sm:$0xff]
    %v1361 = vld [vmem:[#allocation10 + $0x158] sm:$0xff]
    %v1362 = vld [vmem:[#allocation10 + $0x160] sm:$0xff]
    %v1363 = vld [vmem:[#allocation10 + $0x168] sm:$0xff]
    %v1364 = vld [vmem:[#allocation10 + $0x170] sm:$0xff]
    %v1365 = vld [vmem:[#allocation10 + $0x178] sm:$0xff]
    %v1366 = vld [vmem:[#allocation10 + $0x180] sm:$0xff]
    %v1367 = vld [vmem:[#allocation10 + $0x188] sm:$0xff]
    %v1368 = vld [vmem:[#allocation10 + $0x190] sm:$0xff]
    %v1369 = vld [vmem:[#allocation10 + $0x198] sm:$0xff]
    %v1370 = vld [vmem:[#allocation10 + $0x1a0] sm:$0xff]
    %v1371 = vld [vmem:[#allocation10 + $0x1a8] sm:$0xff]
    %v1372 = vld [vmem:[#allocation10 + $0x1b0] sm:$0xff]
    %v1373 = vld [vmem:[#allocation10 + $0x1b8] sm:$0xff]
    %v1374 = vld [vmem:[#allocation10 + $0x1c0] sm:$0xff]
    %v1375 = vld [vmem:[#allocation10 + $0x1c8] sm:$0xff]
    %v1376 = vld [vmem:[#allocation10 + $0x1d0] sm:$0xff]
    %v1377 = vld [vmem:[#allocation10 + $0x1d8] sm:$0xff]
    %v1378 = vld [vmem:[#allocation10 + $0x1e0] sm:$0xff]
    %v1379 = vld [vmem:[#allocation10 + $0x1e8] sm:$0xff]
    %v1380 = vld [vmem:[#allocation10 + $0x1f0] sm:$0xff]
    %v1381 = vld [vmem:[#allocation10 + $0x1f8] sm:$0xff]
    %v1382 = vld [vmem:[#allocation10 + $0x200] sm:$0xff]
    %v1383 = vld [vmem:[#allocation10 + $0x208] sm:$0xff]
    %v1384 = vld [vmem:[#allocation10 + $0x210] sm:$0xff]
    %v1385 = vld [vmem:[#allocation10 + $0x218] sm:$0xff]
    %v1386 = vld [vmem:[#allocation10 + $0x220] sm:$0xff]
    %v1387 = vld [vmem:[#allocation10 + $0x228] sm:$0xff]
    %v1388 = vld [vmem:[#allocation10 + $0x230] sm:$0xff]
    %v1389 = vld [vmem:[#allocation10 + $0x238] sm:$0xff]
    %v1390 = vld [vmem:[#allocation10 + $0x240] sm:$0xff]
    %v1391 = vld [vmem:[#allocation10 + $0x248] sm:$0xff]
    %v1392 = vld [vmem:[#allocation10 + $0x250] sm:$0xff]
    %v1393 = vld [vmem:[#allocation10 + $0x258] sm:$0xff]
    %v1394 = vld [vmem:[#allocation10 + $0x260] sm:$0xff]
    %v1395 = vld [vmem:[#allocation10 + $0x268] sm:$0xff]
    %v1396 = vld [vmem:[#allocation10 + $0x270] sm:$0xff]
    %v1397 = vld [vmem:[#allocation10 + $0x278] sm:$0xff]
    %v1398 = vld [vmem:[#allocation10 + $0x280] sm:$0xff]
    %v1399 = vld [vmem:[#allocation10 + $0x288] sm:$0xff]
    %v1400 = vld [vmem:[#allocation10 + $0x290] sm:$0xff]
    %v1401 = vld [vmem:[#allocation10 + $0x298] sm:$0xff]
    %v1402 = vld [vmem:[#allocation10 + $0x2a0] sm:$0xff]
    %v1403 = vld [vmem:[#allocation10 + $0x2a8] sm:$0xff]
    %v1404 = vld [vmem:[#allocation10 + $0x2b0] sm:$0xff]
    %v1405 = vld [vmem:[#allocation10 + $0x2b8] sm:$0xff]
    %v1406 = vld [vmem:[#allocation10 + $0x2c0] sm:$0xff]
    %v1407 = vld [vmem:[#allocation10 + $0x2c8] sm:$0xff]
    %v1408 = vld [vmem:[#allocation10 + $0x2d0] sm:$0xff]
    %v1409 = vld [vmem:[#allocation10 + $0x2d8] sm:$0xff]
    %v1410 = vld [vmem:[#allocation10 + $0x2e0] sm:$0xff]
    %v1411 = vld [vmem:[#allocation10 + $0x2e8] sm:$0xff]
    %v1412 = vld [vmem:[#allocation10 + $0x2f0] sm:$0xff]
    %v1413 = vld [vmem:[#allocation10 + $0x2f8] sm:$0xff]
    %v1414 = vld [vmem:[#allocation10 + $0x300] sm:$0xff]
    %v1415 = vld [vmem:[#allocation10 + $0x308] sm:$0xff]
    %v1416 = vld [vmem:[#allocation10 + $0x310] sm:$0xff]
    %v1417 = vld [vmem:[#allocation10 + $0x318] sm:$0xff]
    %v1418 = vld [vmem:[#allocation10 + $0x320] sm:$0xff]
    %v1419 = vld [vmem:[#allocation10 + $0x328] sm:$0xff]
    %v1420 = vld [vmem:[#allocation10 + $0x330] sm:$0xff]
    %v1421 = vld [vmem:[#allocation10 + $0x338] sm:$0xff]
    %v1422 = vld [vmem:[#allocation10 + $0x340] sm:$0xff]
    %v1423 = vld [vmem:[#allocation10 + $0x348] sm:$0xff]
    %v1424 = vld [vmem:[#allocation10 + $0x350] sm:$0xff]
    %v1425 = vld [vmem:[#allocation10 + $0x358] sm:$0xff]
    %v1426 = vld [vmem:[#allocation10 + $0x360] sm:$0xff]
    %v1427 = vld [vmem:[#allocation10 + $0x368] sm:$0xff]
    %v1428 = vld [vmem:[#allocation10 + $0x370] sm:$0xff]
    %v1429 = vld [vmem:[#allocation10 + $0x378] sm:$0xff]
    %v1430 = vld [vmem:[#allocation10 + $0x380] sm:$0xff]
    %v1431 = vld [vmem:[#allocation10 + $0x388] sm:$0xff]
    %v1432 = vld [vmem:[#allocation10 + $0x390] sm:$0xff]
    %v1433 = vld [vmem:[#allocation10 + $0x398] sm:$0xff]
    %v1434 = vld [vmem:[#allocation10 + $0x3a0] sm:$0xff]
    %v1435 = vld [vmem:[#allocation10 + $0x3a8] sm:$0xff]
    %v1436 = vld [vmem:[#allocation10 + $0x3b0] sm:$0xff]
    %v1437 = vld [vmem:[#allocation10 + $0x3b8] sm:$0xff]
    %v1438 = vld [vmem:[#allocation10 + $0x3c0] sm:$0xff]
    %v1439 = vld [vmem:[#allocation10 + $0x3c8] sm:$0xff]
    %v1440 = vld [vmem:[#allocation10 + $0x3d0] sm:$0xff]
    %v1441 = vld [vmem:[#allocation10 + $0x3d8] sm:$0xff]
    %v1442 = vld [vmem:[#allocation10 + $0x3e0] sm:$0xff]
    %v1443 = vld [vmem:[#allocation10 + $0x3e8] sm:$0xff]
    %v1444 = vld [vmem:[#allocation10 + $0x3f0] sm:$0xff]
    %v1445 = vld [vmem:[#allocation10 + $0x3f8] sm:$0xff]
    %v1446 = vld [vmem:[#allocation10 + $0x400] sm:$0xff]
    %v1447 = vld [vmem:[#allocation10 + $0x408] sm:$0xff]
    %v1448 = vld [vmem:[#allocation10 + $0x410] sm:$0xff]
    %v1449 = vld [vmem:[#allocation10 + $0x418] sm:$0xff]
    %v1450 = vld [vmem:[#allocation10 + $0x420] sm:$0xff]
    %v1451 = vld [vmem:[#allocation10 + $0x428] sm:$0xff]
    %v1452 = vld [vmem:[#allocation10 + $0x430] sm:$0xff]
    %v1453 = vld [vmem:[#allocation10 + $0x438] sm:$0xff]
    %v1454 = vld [vmem:[#allocation10 + $0x440] sm:$0xff]
    %v1455 = vld [vmem:[#allocation10 + $0x448] sm:$0xff]
    %v1456 = vld [vmem:[#allocation10 + $0x450] sm:$0xff]
    %v1457 = vld [vmem:[#allocation10 + $0x458] sm:$0xff]
    %v1458 = vld [vmem:[#allocation10 + $0x460] sm:$0xff]
    %v1459 = vld [vmem:[#allocation10 + $0x468] sm:$0xff]
    %v1460 = vld [vmem:[#allocation10 + $0x470] sm:$0xff]
    %v1461 = vld [vmem:[#allocation10 + $0x478] sm:$0xff]
    %v1462 = vld [vmem:[#allocation10 + $0x480] sm:$0xff]
    %v1463 = vld [vmem:[#allocation10 + $0x488] sm:$0xff]
    %v1464 = vld [vmem:[#allocation10 + $0x490] sm:$0xff]
    %v1465 = vld [vmem:[#allocation10 + $0x498] sm:$0xff]
    %v1466 = vld [vmem:[#allocation10 + $0x4a0] sm:$0xff]
    %v1467 = vld [vmem:[#allocation10 + $0x4a8] sm:$0xff]
    %v1468 = vld [vmem:[#allocation10 + $0x4b0] sm:$0xff]
    %v1469 = vld [vmem:[#allocation10 + $0x4b8] sm:$0xff]
    %v1470 = vld [vmem:[#allocation10 + $0x4c0] sm:$0xff]
    %v1471 = vld [vmem:[#allocation10 + $0x4c8] sm:$0xff]
    %v1472 = vld [vmem:[#allocation10 + $0x4d0] sm:$0xff]
    %v1473 = vld [vmem:[#allocation10 + $0x4d8] sm:$0xff]
    %v1474 = vld [vmem:[#allocation10 + $0x4e0] sm:$0xff]
    %v1475 = vld [vmem:[#allocation10 + $0x4e8] sm:$0xff]
    %v1476 = vld [vmem:[#allocation10 + $0x4f0] sm:$0xff]
    %v1477 = vld [vmem:[#allocation10 + $0x4f8] sm:$0xff]
    %v1478 = vld [vmem:[#allocation10 + $0x500] sm:$0xff]
    %v1479 = vld [vmem:[#allocation10 + $0x508] sm:$0xff]
    %v1480 = vld [vmem:[#allocation10 + $0x510] sm:$0xff]
    %v1481 = vld [vmem:[#allocation10 + $0x518] sm:$0xff]
    %v1482 = vld [vmem:[#allocation10 + $0x520] sm:$0xff]
    %v1483 = vld [vmem:[#allocation10 + $0x528] sm:$0xff]
    %v1484 = vld [vmem:[#allocation10 + $0x530] sm:$0xff]
    %v1485 = vld [vmem:[#allocation10 + $0x538] sm:$0xff]
    %v1486 = vld [vmem:[#allocation10 + $0x540] sm:$0xff]
    %v1487 = vld [vmem:[#allocation10 + $0x548] sm:$0xff]
    %v1488 = vld [vmem:[#allocation10 + $0x550] sm:$0xff]
    %v1489 = vld [vmem:[#allocation10 + $0x558] sm:$0xff]
    %v1490 = vld [vmem:[#allocation10 + $0x560] sm:$0xff]
    %v1491 = vld [vmem:[#allocation10 + $0x568] sm:$0xff]
    %v1492 = vld [vmem:[#allocation10 + $0x570] sm:$0xff]
    %v1493 = vld [vmem:[#allocation10 + $0x578] sm:$0xff]
    %v1494 = vld [vmem:[#allocation10 + $0x580] sm:$0xff]
    %v1495 = vld [vmem:[#allocation10 + $0x588] sm:$0xff]
    %v1496 = vld [vmem:[#allocation10 + $0x590] sm:$0xff]
    %v1497 = vld [vmem:[#allocation10 + $0x598] sm:$0xff]
    %v1498 = vld [vmem:[#allocation10 + $0x5a0] sm:$0xff]
    %v1499 = vld [vmem:[#allocation10 + $0x5a8] sm:$0xff]
    %v1500 = vld [vmem:[#allocation10 + $0x5b0] sm:$0xff]
    %v1501 = vld [vmem:[#allocation10 + $0x5b8] sm:$0xff]
    %v1502 = vld [vmem:[#allocation10 + $0x5c0] sm:$0xff]
    %v1503 = vld [vmem:[#allocation10 + $0x5c8] sm:$0xff]
    %v1504 = vld [vmem:[#allocation10 + $0x5d0] sm:$0xff]
    %v1505 = vld [vmem:[#allocation10 + $0x5d8] sm:$0xff]
    %v1506 = vld [vmem:[#allocation10 + $0x5e0] sm:$0xff]
    %v1507 = vld [vmem:[#allocation10 + $0x5e8] sm:$0xff]
    %v1508 = vld [vmem:[#allocation10 + $0x5f0] sm:$0xff]
    %v1509 = vld [vmem:[#allocation10 + $0x5f8] sm:$0xff]
    %v1510 = vld [vmem:[#allocation10 + $0x600] sm:$0xff]
    %v1511 = vld [vmem:[#allocation10 + $0x608] sm:$0xff]
    %v1512 = vld [vmem:[#allocation10 + $0x610] sm:$0xff]
    %v1513 = vld [vmem:[#allocation10 + $0x618] sm:$0xff]
    %v1514 = vld [vmem:[#allocation10 + $0x620] sm:$0xff]
    %v1515 = vld [vmem:[#allocation10 + $0x628] sm:$0xff]
    %v1516 = vld [vmem:[#allocation10 + $0x630] sm:$0xff]
    %v1517 = vld [vmem:[#allocation10 + $0x638] sm:$0xff]
    %v1518 = vld [vmem:[#allocation10 + $0x640] sm:$0xff]
    %v1519 = vld [vmem:[#allocation10 + $0x648] sm:$0xff]
    %v1520 = vld [vmem:[#allocation10 + $0x650] sm:$0xff]
    %v1521 = vld [vmem:[#allocation10 + $0x658] sm:$0xff]
    %v1522 = vld [vmem:[#allocation10 + $0x660] sm:$0xff]
    %v1523 = vld [vmem:[#allocation10 + $0x668] sm:$0xff]
    %v1524 = vld [vmem:[#allocation10 + $0x670] sm:$0xff]
    %v1525 = vld [vmem:[#allocation10 + $0x678] sm:$0xff]
    %v1526 = vld [vmem:[#allocation10 + $0x680] sm:$0xff]
    %v1527 = vld [vmem:[#allocation10 + $0x688] sm:$0xff]
    %v1528 = vld [vmem:[#allocation10 + $0x690] sm:$0xff]
    %v1529 = vld [vmem:[#allocation10 + $0x698] sm:$0xff]
    %v1530 = vld [vmem:[#allocation10 + $0x6a0] sm:$0xff]
    %v1531 = vld [vmem:[#allocation10 + $0x6a8] sm:$0xff]
    %v1532 = vld [vmem:[#allocation10 + $0x6b0] sm:$0xff]
    %v1533 = vld [vmem:[#allocation10 + $0x6b8] sm:$0xff]
    %v1534 = vld [vmem:[#allocation10 + $0x6c0] sm:$0xff]
    %v1535 = vld [vmem:[#allocation10 + $0x6c8] sm:$0xff]
    %v1536 = vld [vmem:[#allocation10 + $0x6d0] sm:$0xff]
    %v1537 = vld [vmem:[#allocation10 + $0x6d8] sm:$0xff]
    %v1538 = vld [vmem:[#allocation10 + $0x6e0] sm:$0xff]
    %v1539 = vld [vmem:[#allocation10 + $0x6e8] sm:$0xff]
    %v1540 = vld [vmem:[#allocation10 + $0x6f0] sm:$0xff]
    %v1541 = vld [vmem:[#allocation10 + $0x6f8] sm:$0xff]
    %v1542 = vld [vmem:[#allocation10 + $0x700] sm:$0xff]
    %v1543 = vld [vmem:[#allocation10 + $0x708] sm:$0xff]
    %v1544 = vld [vmem:[#allocation10 + $0x710] sm:$0xff]
    %v1545 = vld [vmem:[#allocation10 + $0x718] sm:$0xff]
    %v1546 = vld [vmem:[#allocation10 + $0x720] sm:$0xff]
    %v1547 = vld [vmem:[#allocation10 + $0x728] sm:$0xff]
    %v1548 = vld [vmem:[#allocation10 + $0x730] sm:$0xff]
    %v1549 = vld [vmem:[#allocation10 + $0x738] sm:$0xff]
    %v1550 = vld [vmem:[#allocation10 + $0x740] sm:$0xff]
    %v1551 = vld [vmem:[#allocation10 + $0x748] sm:$0xff]
    %v1552 = vld [vmem:[#allocation10 + $0x750] sm:$0xff]
    %v1553 = vld [vmem:[#allocation10 + $0x758] sm:$0xff]
    %v1554 = vld [vmem:[#allocation10 + $0x760] sm:$0xff]
    %v1555 = vld [vmem:[#allocation10 + $0x768] sm:$0xff]
    %v1556 = vld [vmem:[#allocation10 + $0x770] sm:$0xff]
    %v1557 = vld [vmem:[#allocation10 + $0x778] sm:$0xff]
    %v1558 = vld [vmem:[#allocation10 + $0x780] sm:$0xff]
    %v1559 = vld [vmem:[#allocation10 + $0x788] sm:$0xff]
    %v1560 = vld [vmem:[#allocation10 + $0x790] sm:$0xff]
    %v1561 = vld [vmem:[#allocation10 + $0x798] sm:$0xff]
    %v1562 = vld [vmem:[#allocation10 + $0x7a0] sm:$0xff]
    %v1563 = vld [vmem:[#allocation10 + $0x7a8] sm:$0xff]
    %v1564 = vld [vmem:[#allocation10 + $0x7b0] sm:$0xff]
    %v1565 = vld [vmem:[#allocation10 + $0x7b8] sm:$0xff]
    %v1566 = vld [vmem:[#allocation10 + $0x7c0] sm:$0xff]
    %v1567 = vld [vmem:[#allocation10 + $0x7c8] sm:$0xff]
    %v1568 = vld [vmem:[#allocation10 + $0x7d0] sm:$0xff]
    %v1569 = vld [vmem:[#allocation10 + $0x7d8] sm:$0xff]
    %v1570 = vld [vmem:[#allocation10 + $0x7e0] sm:$0xff]
    %v1571 = vld [vmem:[#allocation10 + $0x7e8] sm:$0xff]
    %v1572 = vld [vmem:[#allocation10 + $0x7f0] sm:$0xff]
    %v1573 = vld [vmem:[#allocation10 + $0x7f8] sm:$0xff]
    %v1574 = vld [vmem:[%s10] sm:$0xff]
    %v1575 = vld [vmem:[%s10 + $0x8] sm:$0xff]
    %v1576 = vld [vmem:[%s10 + $0x10] sm:$0xff]
    %v1577 = vld [vmem:[%s10 + $0x18] sm:$0xff]
    %v1578 = vld [vmem:[%s10 + $0x20] sm:$0xff]
    %v1579 = vld [vmem:[%s10 + $0x28] sm:$0xff]
    %v1580 = vld [vmem:[%s10 + $0x30] sm:$0xff]
    %v1581 = vld [vmem:[%s10 + $0x38] sm:$0xff]
    %v1583 = vsel %vm378, %v1317, 0
    %1585 = vmatprep.subr.mxu0 0.0
    %1586 = vmatpush1.msra.mxu0 %v1574
    %1587 = vmatprep.subr.mxu0 0.0
    %1588 = vmatpush1.msra.mxu0 %v1575
    %1589 = vmatprep.subr.mxu0 0.0
    %1590 = vmatpush1.msra.mxu0 %v1576
    %1591 = vmatprep.subr.mxu0 0.0
    %1592 = vmatpush1.msra.mxu0 %v1577
    %1593 = vmatprep.subr.mxu0 0.0
    %1594 = vmatpush1.msra.mxu0 %v1578
    %1595 = vmatprep.subr.mxu0 0.0
    %1596 = vmatpush1.msra.mxu0 %v1579
    %1597 = vmatprep.subr.mxu0 0.0
    %1598 = vmatpush1.msra.mxu0 %v1580
    %1599 = vmatprep.subr.mxu0 0.0
    %1600 = vmatpush1.msra.mxu0 %v1581
    %1601 = vmatprep.subr.mxu0 0.0
    %1602 = vmatpush1.msra.mxu0 0.0
    %1603 = vmatprep.subr.mxu0 0.0
    %1604 = vmatpush1.msra.mxu0 0.0
    %1605 = vmatprep.subr.mxu0 0.0
    %1606 = vmatpush1.msra.mxu0 0.0
    %1607 = vmatprep.subr.mxu0 0.0
    %1608 = vmatpush1.msra.mxu0 0.0
    %1609 = vmatprep.subr.mxu0 0.0
    %1610 = vmatpush1.msra.mxu0 0.0
    %1611 = vmatprep.subr.mxu0 0.0
    %1612 = vmatpush1.msra.mxu0 0.0
    %1613 = vmatprep.subr.mxu0 0.0
    %1614 = vmatpush1.msra.mxu0 0.0
    %1615 = vmatprep.subr.mxu0 0.0
    %1616 = vmatpush1.msra.mxu0 0.0
    %1617 = vmatprep.subr.mxu0 0.0
    %1618 = vmatpush1.msra.mxu0 0.0
    %1619 = vmatprep.subr.mxu0 0.0
    %1620 = vmatpush1.msra.mxu0 0.0
    %1621 = vmatprep.subr.mxu0 0.0
    %1622 = vmatpush1.msra.mxu0 0.0
    %1623 = vmatprep.subr.mxu0 0.0
    %1624 = vmatpush1.msra.mxu0 0.0
    %1625 = vmatprep.subr.mxu0 0.0
    %1626 = vmatpush1.msra.mxu0 0.0
    %1627 = vmatprep.subr.mxu0 0.0
    %1628 = vmatpush1.msra.mxu0 0.0
    %1629 = vmatprep.subr.mxu0 0.0
    %1630 = vmatpush1.msra.mxu0 0.0
    %1631 = vmatprep.subr.mxu0 0.0
    %1632 = vmatpush1.msra.mxu0 0.0
    %1633 = vmatprep.subr.mxu0 0.0
    %1634 = vmatpush1.msra.mxu0 0.0
    %1635 = vmatprep.subr.mxu0 0.0
    %1636 = vmatpush1.msra.mxu0 0.0
    %1637 = vmatprep.subr.mxu0 0.0
    %1638 = vmatpush1.msra.mxu0 0.0
    %1639 = vmatprep.subr.mxu0 0.0
    %1640 = vmatpush1.msra.mxu0 0.0
    %1641 = vmatprep.subr.mxu0 0.0
    %1642 = vmatpush1.msra.mxu0 0.0
    %1643 = vmatprep.subr.mxu0 0.0
    %1644 = vmatpush1.msra.mxu0 0.0
    %1645 = vmatprep.subr.mxu0 0.0
    %1646 = vmatpush1.msra.mxu0 0.0
    %1647 = vmatprep.subr.mxu0 0.0
    %1648 = vmatpush1.msra.mxu0 0.0
    %1649 = vmatprep.mubr.f32.mxu0 0.0
    %1650 = vmatmul.mubr.f32.gmra.mrb[0].mxu0 %v1583
    %v1651 = vpop.f32.mrb[0].mxu0
    %v1652 = vadd.f32 0.0, %v1651
    %v1653 = vpop.f32.mrb[0].mxu0
    %1654 = vdwg.mxu0
    %1655 = vmatprep.subr.mxu0 0.0
    %1656 = vmatpush1.msra.mxu0 %v1318
    %1657 = vmatprep.subr.mxu0 0.0
    %1658 = vmatpush1.msra.mxu0 %v1319
    %1659 = vmatprep.subr.mxu0 0.0
    %1660 = vmatpush1.msra.mxu0 %v1320
    %1661 = vmatprep.subr.mxu0 0.0
    %1662 = vmatpush1.msra.mxu0 %v1321
    %1663 = vmatprep.subr.mxu0 0.0
    %1664 = vmatpush1.msra.mxu0 %v1322
    %1665 = vmatprep.subr.mxu0 0.0
    %1666 = vmatpush1.msra.mxu0 %v1323
    %1667 = vmatprep.subr.mxu0 0.0
    %1668 = vmatpush1.msra.mxu0 %v1324
    %1669 = vmatprep.subr.mxu0 0.0
    %1670 = vmatpush1.msra.mxu0 %v1325
    %1671 = vmatprep.subr.mxu0 0.0
    %1672 = vmatpush1.msra.mxu0 %v1326
    %1673 = vmatprep.subr.mxu0 0.0
    %1674 = vmatpush1.msra.mxu0 %v1327
    %1675 = vmatprep.subr.mxu0 0.0
    %1676 = vmatpush1.msra.mxu0 %v1328
    %1677 = vmatprep.subr.mxu0 0.0
    %1678 = vmatpush1.msra.mxu0 %v1329
    %1679 = vmatprep.subr.mxu0 0.0
    %1680 = vmatpush1.msra.mxu0 %v1330
    %1681 = vmatprep.subr.mxu0 0.0
    %1682 = vmatpush1.msra.mxu0 %v1331
    %1683 = vmatprep.subr.mxu0 0.0
    %1684 = vmatpush1.msra.mxu0 %v1332
    %1685 = vmatprep.subr.mxu0 0.0
    %1686 = vmatpush1.msra.mxu0 %v1333
    %1687 = vmatprep.subr.mxu0 0.0
    %1688 = vmatpush1.msra.mxu0 %v1334
    %1689 = vmatprep.subr.mxu0 0.0
    %1690 = vmatpush1.msra.mxu0 %v1335
    %1691 = vmatprep.subr.mxu0 0.0
    %1692 = vmatpush1.msra.mxu0 %v1336
    %1693 = vmatprep.subr.mxu0 0.0
    %1694 = vmatpush1.msra.mxu0 %v1337
    %1695 = vmatprep.subr.mxu0 0.0
    %1696 = vmatpush1.msra.mxu0 %v1338
    %1697 = vmatprep.subr.mxu0 0.0
    %1698 = vmatpush1.msra.mxu0 %v1339
    %1699 = vmatprep.subr.mxu0 0.0
    %1700 = vmatpush1.msra.mxu0 %v1340
    %1701 = vmatprep.subr.mxu0 0.0
    %1702 = vmatpush1.msra.mxu0 %v1341
    %1703 = vmatprep.subr.mxu0 0.0
    %1704 = vmatpush1.msra.mxu0 %v1342
    %1705 = vmatprep.subr.mxu0 0.0
    %1706 = vmatpush1.msra.mxu0 %v1343
    %1707 = vmatprep.subr.mxu0 0.0
    %1708 = vmatpush1.msra.mxu0 %v1344
    %1709 = vmatprep.subr.mxu0 0.0
    %1710 = vmatpush1.msra.mxu0 %v1345
    %1711 = vmatprep.subr.mxu0 0.0
    %1712 = vmatpush1.msra.mxu0 %v1346
    %1713 = vmatprep.subr.mxu0 0.0
    %1714 = vmatpush1.msra.mxu0 %v1347
    %1715 = vmatprep.subr.mxu0 0.0
    %1716 = vmatpush1.msra.mxu0 %v1348
    %1717 = vmatprep.subr.mxu0 0.0
    %1718 = vmatpush1.msra.mxu0 %v1349
    %1719 = vmatprep.mubr.f32.mxu0 %v1287
    %1720 = vmatmul.mubr.f32.gmra.mrb[0].mxu0 %v1286
    %v1721 = vpop.f32.mrb[0].mxu0
    %v1722 = vadd.f32 %v1652, %v1721
    %v1723 = vpop.f32.mrb[0].mxu0
    %1724 = vdwg.mxu0
    %1725 = vmatprep.subr.mxu0 0.0
    %1726 = vmatpush1.msra.mxu0 %v1350
    %1727 = vmatprep.subr.mxu0 0.0
    %1728 = vmatpush1.msra.mxu0 %v1351
    %1729 = vmatprep.subr.mxu0 0.0
    %1730 = vmatpush1.msra.mxu0 %v1352
    %1731 = vmatprep.subr.mxu0 0.0
    %1732 = vmatpush1.msra.mxu0 %v1353
    %1733 = vmatprep.subr.mxu0 0.0
    %1734 = vmatpush1.msra.mxu0 %v1354
    %1735 = vmatprep.subr.mxu0 0.0
    %1736 = vmatpush1.msra.mxu0 %v1355
    %1737 = vmatprep.subr.mxu0 0.0
    %1738 = vmatpush1.msra.mxu0 %v1356
    %1739 = vmatprep.subr.mxu0 0.0
    %1740 = vmatpush1.msra.mxu0 %v1357
    %1741 = vmatprep.subr.mxu0 0.0
    %1742 = vmatpush1.msra.mxu0 %v1358
    %1743 = vmatprep.subr.mxu0 0.0
    %1744 = vmatpush1.msra.mxu0 %v1359
    %1745 = vmatprep.subr.mxu0 0.0
    %1746 = vmatpush1.msra.mxu0 %v1360
    %1747 = vmatprep.subr.mxu0 0.0
    %1748 = vmatpush1.msra.mxu0 %v1361
    %1749 = vmatprep.subr.mxu0 0.0
    %1750 = vmatpush1.msra.mxu0 %v1362
    %1751 = vmatprep.subr.mxu0 0.0
    %1752 = vmatpush1.msra.mxu0 %v1363
    %1753 = vmatprep.subr.mxu0 0.0
    %1754 = vmatpush1.msra.mxu0 %v1364
    %1755 = vmatprep.subr.mxu0 0.0
    %1756 = vmatpush1.msra.mxu0 %v1365
    %1757 = vmatprep.subr.mxu0 0.0
    %1758 = vmatpush1.msra.mxu0 %v1366
    %1759 = vmatprep.subr.mxu0 0.0
    %1760 = vmatpush1.msra.mxu0 %v1367
    %1761 = vmatprep.subr.mxu0 0.0
    %1762 = vmatpush1.msra.mxu0 %v1368
    %1763 = vmatprep.subr.mxu0 0.0
    %1764 = vmatpush1.msra.mxu0 %v1369
    %1765 = vmatprep.subr.mxu0 0.0
    %1766 = vmatpush1.msra.mxu0 %v1370
    %1767 = vmatprep.subr.mxu0 0.0
    %1768 = vmatpush1.msra.mxu0 %v1371
    %1769 = vmatprep.subr.mxu0 0.0
    %1770 = vmatpush1.msra.mxu0 %v1372
    %1771 = vmatprep.subr.mxu0 0.0
    %1772 = vmatpush1.msra.mxu0 %v1373
    %1773 = vmatprep.subr.mxu0 0.0
    %1774 = vmatpush1.msra.mxu0 %v1374
    %1775 = vmatprep.subr.mxu0 0.0
    %1776 = vmatpush1.msra.mxu0 %v1375
    %1777 = vmatprep.subr.mxu0 0.0
    %1778 = vmatpush1.msra.mxu0 %v1376
    %1779 = vmatprep.subr.mxu0 0.0
    %1780 = vmatpush1.msra.mxu0 %v1377
    %1781 = vmatprep.subr.mxu0 0.0
    %1782 = vmatpush1.msra.mxu0 %v1378
    %1783 = vmatprep.subr.mxu0 0.0
    %1784 = vmatpush1.msra.mxu0 %v1379
    %1785 = vmatprep.subr.mxu0 0.0
    %1786 = vmatpush1.msra.mxu0 %v1380
    %1787 = vmatprep.subr.mxu0 0.0
    %1788 = vmatpush1.msra.mxu0 %v1381
    %1789 = vmatprep.mubr.f32.mxu0 %v1289
    %1790 = vmatmul.mubr.f32.gmra.mrb[0].mxu0 %v1288
    %v1791 = vpop.f32.mrb[0].mxu0
    %v1792 = vadd.f32 %v1722, %v1791
    %v1793 = vpop.f32.mrb[0].mxu0
    %1794 = vdwg.mxu0
    %1795 = vmatprep.subr.mxu0 0.0
    %1796 = vmatpush1.msra.mxu0 %v1382
    %1797 = vmatprep.subr.mxu0 0.0
    %1798 = vmatpush1.msra.mxu0 %v1383
    %1799 = vmatprep.subr.mxu0 0.0
    %1800 = vmatpush1.msra.mxu0 %v1384
    %1801 = vmatprep.subr.mxu0 0.0
    %1802 = vmatpush1.msra.mxu0 %v1385
    %1803 = vmatprep.subr.mxu0 0.0
    %1804 = vmatpush1.msra.mxu0 %v1386
    %1805 = vmatprep.subr.mxu0 0.0
    %1806 = vmatpush1.msra.mxu0 %v1387
    %1807 = vmatprep.subr.mxu0 0.0
    %1808 = vmatpush1.msra.mxu0 %v1388
    %1809 = vmatprep.subr.mxu0 0.0
    %1810 = vmatpush1.msra.mxu0 %v1389
    %1811 = vmatprep.subr.mxu0 0.0
    %1812 = vmatpush1.msra.mxu0 %v1390
    %1813 = vmatprep.subr.mxu0 0.0
    %1814 = vmatpush1.msra.mxu0 %v1391
    %1815 = vmatprep.subr.mxu0 0.0
    %1816 = vmatpush1.msra.mxu0 %v1392
    %1817 = vmatprep.subr.mxu0 0.0
    %1818 = vmatpush1.msra.mxu0 %v1393
    %1819 = vmatprep.subr.mxu0 0.0
    %1820 = vmatpush1.msra.mxu0 %v1394
    %1821 = vmatprep.subr.mxu0 0.0
    %1822 = vmatpush1.msra.mxu0 %v1395
    %1823 = vmatprep.subr.mxu0 0.0
    %1824 = vmatpush1.msra.mxu0 %v1396
    %1825 = vmatprep.subr.mxu0 0.0
    %1826 = vmatpush1.msra.mxu0 %v1397
    %1827 = vmatprep.subr.mxu0 0.0
    %1828 = vmatpush1.msra.mxu0 %v1398
    %1829 = vmatprep.subr.mxu0 0.0
    %1830 = vmatpush1.msra.mxu0 %v1399
    %1831 = vmatprep.subr.mxu0 0.0
    %1832 = vmatpush1.msra.mxu0 %v1400
    %1833 = vmatprep.subr.mxu0 0.0
    %1834 = vmatpush1.msra.mxu0 %v1401
    %1835 = vmatprep.subr.mxu0 0.0
    %1836 = vmatpush1.msra.mxu0 %v1402
    %1837 = vmatprep.subr.mxu0 0.0
    %1838 = vmatpush1.msra.mxu0 %v1403
    %1839 = vmatprep.subr.mxu0 0.0
    %1840 = vmatpush1.msra.mxu0 %v1404
    %1841 = vmatprep.subr.mxu0 0.0
    %1842 = vmatpush1.msra.mxu0 %v1405
    %1843 = vmatprep.subr.mxu0 0.0
    %1844 = vmatpush1.msra.mxu0 %v1406
    %1845 = vmatprep.subr.mxu0 0.0
    %1846 = vmatpush1.msra.mxu0 %v1407
    %1847 = vmatprep.subr.mxu0 0.0
    %1848 = vmatpush1.msra.mxu0 %v1408
    %1849 = vmatprep.subr.mxu0 0.0
    %1850 = vmatpush1.msra.mxu0 %v1409
    %1851 = vmatprep.subr.mxu0 0.0
    %1852 = vmatpush1.msra.mxu0 %v1410
    %1853 = vmatprep.subr.mxu0 0.0
    %1854 = vmatpush1.msra.mxu0 %v1411
    %1855 = vmatprep.subr.mxu0 0.0
    %1856 = vmatpush1.msra.mxu0 %v1412
    %1857 = vmatprep.subr.mxu0 0.0
    %1858 = vmatpush1.msra.mxu0 %v1413
    %1859 = vmatprep.mubr.f32.mxu0 %v1291
    %1860 = vmatmul.mubr.f32.gmra.mrb[0].mxu0 %v1290
    %v1861 = vpop.f32.mrb[0].mxu0
    %v1862 = vadd.f32 %v1792, %v1861
    %v1863 = vpop.f32.mrb[0].mxu0
    %1864 = vdwg.mxu0
    %1865 = vmatprep.subr.mxu0 0.0
    %1866 = vmatpush1.msra.mxu0 %v1414
    %1867 = vmatprep.subr.mxu0 0.0
    %1868 = vmatpush1.msra.mxu0 %v1415
    %1869 = vmatprep.subr.mxu0 0.0
    %1870 = vmatpush1.msra.mxu0 %v1416
    %1871 = vmatprep.subr.mxu0 0.0
    %1872 = vmatpush1.msra.mxu0 %v1417
    %1873 = vmatprep.subr.mxu0 0.0
    %1874 = vmatpush1.msra.mxu0 %v1418
    %1875 = vmatprep.subr.mxu0 0.0
    %1876 = vmatpush1.msra.mxu0 %v1419
    %1877 = vmatprep.subr.mxu0 0.0
    %1878 = vmatpush1.msra.mxu0 %v1420
    %1879 = vmatprep.subr.mxu0 0.0
    %1880 = vmatpush1.msra.mxu0 %v1421
    %1881 = vmatprep.subr.mxu0 0.0
    %1882 = vmatpush1.msra.mxu0 %v1422
    %1883 = vmatprep.subr.mxu0 0.0
    %1884 = vmatpush1.msra.mxu0 %v1423
    %1885 = vmatprep.subr.mxu0 0.0
    %1886 = vmatpush1.msra.mxu0 %v1424
    %1887 = vmatprep.subr.mxu0 0.0
    %1888 = vmatpush1.msra.mxu0 %v1425
    %1889 = vmatprep.subr.mxu0 0.0
    %1890 = vmatpush1.msra.mxu0 %v1426
    %1891 = vmatprep.subr.mxu0 0.0
    %1892 = vmatpush1.msra.mxu0 %v1427
    %1893 = vmatprep.subr.mxu0 0.0
    %1894 = vmatpush1.msra.mxu0 %v1428
    %1895 = vmatprep.subr.mxu0 0.0
    %1896 = vmatpush1.msra.mxu0 %v1429
    %1897 = vmatprep.subr.mxu0 0.0
    %1898 = vmatpush1.msra.mxu0 %v1430
    %1899 = vmatprep.subr.mxu0 0.0
    %1900 = vmatpush1.msra.mxu0 %v1431
    %1901 = vmatprep.subr.mxu0 0.0
    %1902 = vmatpush1.msra.mxu0 %v1432
    %1903 = vmatprep.subr.mxu0 0.0
    %1904 = vmatpush1.msra.mxu0 %v1433
    %1905 = vmatprep.subr.mxu0 0.0
    %1906 = vmatpush1.msra.mxu0 %v1434
    %1907 = vmatprep.subr.mxu0 0.0
    %1908 = vmatpush1.msra.mxu0 %v1435
    %1909 = vmatprep.subr.mxu0 0.0
    %1910 = vmatpush1.msra.mxu0 %v1436
    %1911 = vmatprep.subr.mxu0 0.0
    %1912 = vmatpush1.msra.mxu0 %v1437
    %1913 = vmatprep.subr.mxu0 0.0
    %1914 = vmatpush1.msra.mxu0 %v1438
    %1915 = vmatprep.subr.mxu0 0.0
    %1916 = vmatpush1.msra.mxu0 %v1439
    %1917 = vmatprep.subr.mxu0 0.0
    %1918 = vmatpush1.msra.mxu0 %v1440
    %1919 = vmatprep.subr.mxu0 0.0
    %1920 = vmatpush1.msra.mxu0 %v1441
    %1921 = vmatprep.subr.mxu0 0.0
    %1922 = vmatpush1.msra.mxu0 %v1442
    %1923 = vmatprep.subr.mxu0 0.0
    %1924 = vmatpush1.msra.mxu0 %v1443
    %1925 = vmatprep.subr.mxu0 0.0
    %1926 = vmatpush1.msra.mxu0 %v1444
    %1927 = vmatprep.subr.mxu0 0.0
    %1928 = vmatpush1.msra.mxu0 %v1445
    %1929 = vmatprep.mubr.f32.mxu0 %v1293
    %1930 = vmatmul.mubr.f32.gmra.mrb[0].mxu0 %v1292
    %v1931 = vpop.f32.mrb[0].mxu0
    %v1932 = vadd.f32 %v1862, %v1931
    %v1933 = vpop.f32.mrb[0].mxu0
    %1934 = vdwg.mxu0
    %1935 = vmatprep.subr.mxu0 0.0
    %1936 = vmatpush1.msra.mxu0 %v1446
    %1937 = vmatprep.subr.mxu0 0.0
    %1938 = vmatpush1.msra.mxu0 %v1447
    %1939 = vmatprep.subr.mxu0 0.0
    %1940 = vmatpush1.msra.mxu0 %v1448
    %1941 = vmatprep.subr.mxu0 0.0
    %1942 = vmatpush1.msra.mxu0 %v1449
    %1943 = vmatprep.subr.mxu0 0.0
    %1944 = vmatpush1.msra.mxu0 %v1450
    %1945 = vmatprep.subr.mxu0 0.0
    %1946 = vmatpush1.msra.mxu0 %v1451
    %1947 = vmatprep.subr.mxu0 0.0
    %1948 = vmatpush1.msra.mxu0 %v1452
    %1949 = vmatprep.subr.mxu0 0.0
    %1950 = vmatpush1.msra.mxu0 %v1453
    %1951 = vmatprep.subr.mxu0 0.0
    %1952 = vmatpush1.msra.mxu0 %v1454
    %1953 = vmatprep.subr.mxu0 0.0
    %1954 = vmatpush1.msra.mxu0 %v1455
    %1955 = vmatprep.subr.mxu0 0.0
    %1956 = vmatpush1.msra.mxu0 %v1456
    %1957 = vmatprep.subr.mxu0 0.0
    %1958 = vmatpush1.msra.mxu0 %v1457
    %1959 = vmatprep.subr.mxu0 0.0
    %1960 = vmatpush1.msra.mxu0 %v1458
    %1961 = vmatprep.subr.mxu0 0.0
    %1962 = vmatpush1.msra.mxu0 %v1459
    %1963 = vmatprep.subr.mxu0 0.0
    %1964 = vmatpush1.msra.mxu0 %v1460
    %1965 = vmatprep.subr.mxu0 0.0
    %1966 = vmatpush1.msra.mxu0 %v1461
    %1967 = vmatprep.subr.mxu0 0.0
    %1968 = vmatpush1.msra.mxu0 %v1462
    %1969 = vmatprep.subr.mxu0 0.0
    %1970 = vmatpush1.msra.mxu0 %v1463
    %1971 = vmatprep.subr.mxu0 0.0
    %1972 = vmatpush1.msra.mxu0 %v1464
    %1973 = vmatprep.subr.mxu0 0.0
    %1974 = vmatpush1.msra.mxu0 %v1465
    %1975 = vmatprep.subr.mxu0 0.0
    %1976 = vmatpush1.msra.mxu0 %v1466
    %1977 = vmatprep.subr.mxu0 0.0
    %1978 = vmatpush1.msra.mxu0 %v1467
    %1979 = vmatprep.subr.mxu0 0.0
    %1980 = vmatpush1.msra.mxu0 %v1468
    %1981 = vmatprep.subr.mxu0 0.0
    %1982 = vmatpush1.msra.mxu0 %v1469
    %1983 = vmatprep.subr.mxu0 0.0
    %1984 = vmatpush1.msra.mxu0 %v1470
    %1985 = vmatprep.subr.mxu0 0.0
    %1986 = vmatpush1.msra.mxu0 %v1471
    %1987 = vmatprep.subr.mxu0 0.0
    %1988 = vmatpush1.msra.mxu0 %v1472
    %1989 = vmatprep.subr.mxu0 0.0
    %1990 = vmatpush1.msra.mxu0 %v1473
    %1991 = vmatprep.subr.mxu0 0.0
    %1992 = vmatpush1.msra.mxu0 %v1474
    %1993 = vmatprep.subr.mxu0 0.0
    %1994 = vmatpush1.msra.mxu0 %v1475
    %1995 = vmatprep.subr.mxu0 0.0
    %1996 = vmatpush1.msra.mxu0 %v1476
    %1997 = vmatprep.subr.mxu0 0.0
    %1998 = vmatpush1.msra.mxu0 %v1477
    %1999 = vmatprep.mubr.f32.mxu0 %v1295
    %2000 = vmatmul.mubr.f32.gmra.mrb[0].mxu0 %v1294
    %v2001 = vpop.f32.mrb[0].mxu0
    %v2002 = vadd.f32 %v1932, %v2001
    %v2003 = vpop.f32.mrb[0].mxu0
    %2004 = vdwg.mxu0
    %2005 = vmatprep.subr.mxu0 0.0
    %2006 = vmatpush1.msra.mxu0 %v1478
    %2007 = vmatprep.subr.mxu0 0.0
    %2008 = vmatpush1.msra.mxu0 %v1479
    %2009 = vmatprep.subr.mxu0 0.0
    %2010 = vmatpush1.msra.mxu0 %v1480
    %2011 = vmatprep.subr.mxu0 0.0
    %2012 = vmatpush1.msra.mxu0 %v1481
    %2013 = vmatprep.subr.mxu0 0.0
    %2014 = vmatpush1.msra.mxu0 %v1482
    %2015 = vmatprep.subr.mxu0 0.0
    %2016 = vmatpush1.msra.mxu0 %v1483
    %2017 = vmatprep.subr.mxu0 0.0
    %2018 = vmatpush1.msra.mxu0 %v1484
    %2019 = vmatprep.subr.mxu0 0.0
    %2020 = vmatpush1.msra.mxu0 %v1485
    %2021 = vmatprep.subr.mxu0 0.0
    %2022 = vmatpush1.msra.mxu0 %v1486
    %2023 = vmatprep.subr.mxu0 0.0
    %2024 = vmatpush1.msra.mxu0 %v1487
    %2025 = vmatprep.subr.mxu0 0.0
    %2026 = vmatpush1.msra.mxu0 %v1488
    %2027 = vmatprep.subr.mxu0 0.0
    %2028 = vmatpush1.msra.mxu0 %v1489
    %2029 = vmatprep.subr.mxu0 0.0
    %2030 = vmatpush1.msra.mxu0 %v1490
    %2031 = vmatprep.subr.mxu0 0.0
    %2032 = vmatpush1.msra.mxu0 %v1491
    %2033 = vmatprep.subr.mxu0 0.0
    %2034 = vmatpush1.msra.mxu0 %v1492
    %2035 = vmatprep.subr.mxu0 0.0
    %2036 = vmatpush1.msra.mxu0 %v1493
    %2037 = vmatprep.subr.mxu0 0.0
    %2038 = vmatpush1.msra.mxu0 %v1494
    %2039 = vmatprep.subr.mxu0 0.0
    %2040 = vmatpush1.msra.mxu0 %v1495
    %2041 = vmatprep.subr.mxu0 0.0
    %2042 = vmatpush1.msra.mxu0 %v1496
    %2043 = vmatprep.subr.mxu0 0.0
    %2044 = vmatpush1.msra.mxu0 %v1497
    %2045 = vmatprep.subr.mxu0 0.0
    %2046 = vmatpush1.msra.mxu0 %v1498
    %2047 = vmatprep.subr.mxu0 0.0
    %2048 = vmatpush1.msra.mxu0 %v1499
    %2049 = vmatprep.subr.mxu0 0.0
    %2050 = vmatpush1.msra.mxu0 %v1500
    %2051 = vmatprep.subr.mxu0 0.0
    %2052 = vmatpush1.msra.mxu0 %v1501
    %2053 = vmatprep.subr.mxu0 0.0
    %2054 = vmatpush1.msra.mxu0 %v1502
    %2055 = vmatprep.subr.mxu0 0.0
    %2056 = vmatpush1.msra.mxu0 %v1503
    %2057 = vmatprep.subr.mxu0 0.0
    %2058 = vmatpush1.msra.mxu0 %v1504
    %2059 = vmatprep.subr.mxu0 0.0
    %2060 = vmatpush1.msra.mxu0 %v1505
    %2061 = vmatprep.subr.mxu0 0.0
    %2062 = vmatpush1.msra.mxu0 %v1506
    %2063 = vmatprep.subr.mxu0 0.0
    %2064 = vmatpush1.msra.mxu0 %v1507
    %2065 = vmatprep.subr.mxu0 0.0
    %2066 = vmatpush1.msra.mxu0 %v1508
    %2067 = vmatprep.subr.mxu0 0.0
    %2068 = vmatpush1.msra.mxu0 %v1509
    %2069 = vmatprep.mubr.f32.mxu0 %v1297
    %2070 = vmatmul.mubr.f32.gmra.mrb[0].mxu0 %v1296
    %v2071 = vpop.f32.mrb[0].mxu0
    %v2072 = vadd.f32 %v2002, %v2071
    %v2073 = vpop.f32.mrb[0].mxu0
    %2074 = vdwg.mxu0
    %2075 = vmatprep.subr.mxu0 0.0
    %2076 = vmatpush1.msra.mxu0 %v1510
    %2077 = vmatprep.subr.mxu0 0.0
    %2078 = vmatpush1.msra.mxu0 %v1511
    %2079 = vmatprep.subr.mxu0 0.0
    %2080 = vmatpush1.msra.mxu0 %v1512
    %2081 = vmatprep.subr.mxu0 0.0
    %2082 = vmatpush1.msra.mxu0 %v1513
    %2083 = vmatprep.subr.mxu0 0.0
    %2084 = vmatpush1.msra.mxu0 %v1514
    %2085 = vmatprep.subr.mxu0 0.0
    %2086 = vmatpush1.msra.mxu0 %v1515
    %2087 = vmatprep.subr.mxu0 0.0
    %2088 = vmatpush1.msra.mxu0 %v1516
    %2089 = vmatprep.subr.mxu0 0.0
    %2090 = vmatpush1.msra.mxu0 %v1517
    %2091 = vmatprep.subr.mxu0 0.0
    %2092 = vmatpush1.msra.mxu0 %v1518
    %2093 = vmatprep.subr.mxu0 0.0
    %2094 = vmatpush1.msra.mxu0 %v1519
    %2095 = vmatprep.subr.mxu0 0.0
    %2096 = vmatpush1.msra.mxu0 %v1520
    %2097 = vmatprep.subr.mxu0 0.0
    %2098 = vmatpush1.msra.mxu0 %v1521
    %2099 = vmatprep.subr.mxu0 0.0
    %2100 = vmatpush1.msra.mxu0 %v1522
    %2101 = vmatprep.subr.mxu0 0.0
    %2102 = vmatpush1.msra.mxu0 %v1523
    %2103 = vmatprep.subr.mxu0 0.0
    %2104 = vmatpush1.msra.mxu0 %v1524
    %2105 = vmatprep.subr.mxu0 0.0
    %2106 = vmatpush1.msra.mxu0 %v1525
    %2107 = vmatprep.subr.mxu0 0.0
    %2108 = vmatpush1.msra.mxu0 %v1526
    %2109 = vmatprep.subr.mxu0 0.0
    %2110 = vmatpush1.msra.mxu0 %v1527
    %2111 = vmatprep.subr.mxu0 0.0
    %2112 = vmatpush1.msra.mxu0 %v1528
    %2113 = vmatprep.subr.mxu0 0.0
    %2114 = vmatpush1.msra.mxu0 %v1529
    %2115 = vmatprep.subr.mxu0 0.0
    %2116 = vmatpush1.msra.mxu0 %v1530
    %2117 = vmatprep.subr.mxu0 0.0
    %2118 = vmatpush1.msra.mxu0 %v1531
    %2119 = vmatprep.subr.mxu0 0.0
    %2120 = vmatpush1.msra.mxu0 %v1532
    %2121 = vmatprep.subr.mxu0 0.0
    %2122 = vmatpush1.msra.mxu0 %v1533
    %2123 = vmatprep.subr.mxu0 0.0
    %2124 = vmatpush1.msra.mxu0 %v1534
    %2125 = vmatprep.subr.mxu0 0.0
    %2126 = vmatpush1.msra.mxu0 %v1535
    %2127 = vmatprep.subr.mxu0 0.0
    %2128 = vmatpush1.msra.mxu0 %v1536
    %2129 = vmatprep.subr.mxu0 0.0
    %2130 = vmatpush1.msra.mxu0 %v1537
    %2131 = vmatprep.subr.mxu0 0.0
    %2132 = vmatpush1.msra.mxu0 %v1538
    %2133 = vmatprep.subr.mxu0 0.0
    %2134 = vmatpush1.msra.mxu0 %v1539
    %2135 = vmatprep.subr.mxu0 0.0
    %2136 = vmatpush1.msra.mxu0 %v1540
    %2137 = vmatprep.subr.mxu0 0.0
    %2138 = vmatpush1.msra.mxu0 %v1541
    %2139 = vmatprep.mubr.f32.mxu0 %v1299
    %2140 = vmatmul.mubr.f32.gmra.mrb[0].mxu0 %v1298
    %v2141 = vpop.f32.mrb[0].mxu0
    %v2142 = vadd.f32 %v2072, %v2141
    %v2143 = vpop.f32.mrb[0].mxu0
    %2144 = vdwg.mxu0
    %2145 = vmatprep.subr.mxu0 0.0
    %2146 = vmatpush1.msra.mxu0 %v1542
    %2147 = vmatprep.subr.mxu0 0.0
    %2148 = vmatpush1.msra.mxu0 %v1543
    %2149 = vmatprep.subr.mxu0 0.0
    %2150 = vmatpush1.msra.mxu0 %v1544
    %2151 = vmatprep.subr.mxu0 0.0
    %2152 = vmatpush1.msra.mxu0 %v1545
    %2153 = vmatprep.subr.mxu0 0.0
    %2154 = vmatpush1.msra.mxu0 %v1546
    %2155 = vmatprep.subr.mxu0 0.0
    %2156 = vmatpush1.msra.mxu0 %v1547
    %2157 = vmatprep.subr.mxu0 0.0
    %2158 = vmatpush1.msra.mxu0 %v1548
    %2159 = vmatprep.subr.mxu0 0.0
    %2160 = vmatpush1.msra.mxu0 %v1549
    %2161 = vmatprep.subr.mxu0 0.0
    %2162 = vmatpush1.msra.mxu0 %v1550
    %2163 = vmatprep.subr.mxu0 0.0
    %2164 = vmatpush1.msra.mxu0 %v1551
    %2165 = vmatprep.subr.mxu0 0.0
    %2166 = vmatpush1.msra.mxu0 %v1552
    %2167 = vmatprep.subr.mxu0 0.0
    %2168 = vmatpush1.msra.mxu0 %v1553
    %2169 = vmatprep.subr.mxu0 0.0
    %2170 = vmatpush1.msra.mxu0 %v1554
    %2171 = vmatprep.subr.mxu0 0.0
    %2172 = vmatpush1.msra.mxu0 %v1555
    %2173 = vmatprep.subr.mxu0 0.0
    %2174 = vmatpush1.msra.mxu0 %v1556
    %2175 = vmatprep.subr.mxu0 0.0
    %2176 = vmatpush1.msra.mxu0 %v1557
    %2177 = vmatprep.subr.mxu0 0.0
    %2178 = vmatpush1.msra.mxu0 %v1558
    %2179 = vmatprep.subr.mxu0 0.0
    %2180 = vmatpush1.msra.mxu0 %v1559
    %2181 = vmatprep.subr.mxu0 0.0
    %2182 = vmatpush1.msra.mxu0 %v1560
    %2183 = vmatprep.subr.mxu0 0.0
    %2184 = vmatpush1.msra.mxu0 %v1561
    %2185 = vmatprep.subr.mxu0 0.0
    %2186 = vmatpush1.msra.mxu0 %v1562
    %2187 = vmatprep.subr.mxu0 0.0
    %2188 = vmatpush1.msra.mxu0 %v1563
    %2189 = vmatprep.subr.mxu0 0.0
    %2190 = vmatpush1.msra.mxu0 %v1564
    %2191 = vmatprep.subr.mxu0 0.0
    %2192 = vmatpush1.msra.mxu0 %v1565
    %2193 = vmatprep.subr.mxu0 0.0
    %2194 = vmatpush1.msra.mxu0 %v1566
    %2195 = vmatprep.subr.mxu0 0.0
    %2196 = vmatpush1.msra.mxu0 %v1567
    %2197 = vmatprep.subr.mxu0 0.0
    %2198 = vmatpush1.msra.mxu0 %v1568
    %2199 = vmatprep.subr.mxu0 0.0
    %2200 = vmatpush1.msra.mxu0 %v1569
    %2201 = vmatprep.subr.mxu0 0.0
    %2202 = vmatpush1.msra.mxu0 %v1570
    %2203 = vmatprep.subr.mxu0 0.0
    %2204 = vmatpush1.msra.mxu0 %v1571
    %2205 = vmatprep.subr.mxu0 0.0
    %2206 = vmatpush1.msra.mxu0 %v1572
    %2207 = vmatprep.subr.mxu0 0.0
    %2208 = vmatpush1.msra.mxu0 %v1573
    %2209 = vmatprep.mubr.f32.mxu0 %v1301
    %2210 = vmatmul.mubr.f32.gmra.mrb[0].mxu0 %v1300
    %v2211 = vpop.f32.mrb[0].mxu0
    %v2212 = vadd.f32 %v2142, %v2211
    %v2213 = vpop.f32.mrb[0].mxu0
    %2214 = vdwg.mxu0
    %v2215 = vld [vmem:[%s11] sm:$0x1]
    %v2217 = vlaneseq
    %v2218 = vshrl.u32 %v2217, 7
    %v2219 = vsub.s32 0, %v2218
    %v2220 = vrot.slane %v2215, %v2219
    %v2222 = vadd.f32 %v2212, %v2220
    %v2223 = vmax.f32 %v2222, 0.0
    %v2224 = vld [vmem:[%s12] sm:$0xff]
    %v2225 = vld [vmem:[%s12 + $0x8] sm:$0xff]
    %v2226 = vld [vmem:[%s12 + $0x10] sm:$0xff]
    %v2227 = vld [vmem:[%s12 + $0x18] sm:$0xff]
    %v2228 = vld [vmem:[%s12 + $0x20] sm:$0xff]
    %v2229 = vld [vmem:[%s12 + $0x28] sm:$0xff]
    %v2230 = vld [vmem:[%s12 + $0x30] sm:$0xff]
    %v2231 = vld [vmem:[%s12 + $0x38] sm:$0xff]
    %v2232 = vld [vmem:[%s12 + $0x40] sm:$0xff]
    %v2233 = vld [vmem:[%s12 + $0x48] sm:$0xff]
    %v2234 = vld [vmem:[%s12 + $0x50] sm:$0xff]
    %v2235 = vld [vmem:[%s12 + $0x58] sm:$0xff]
    %v2236 = vld [vmem:[%s12 + $0x60] sm:$0xff]
    %v2237 = vld [vmem:[%s12 + $0x68] sm:$0xff]
    %v2238 = vld [vmem:[%s12 + $0x70] sm:$0xff]
    %v2239 = vld [vmem:[%s12 + $0x78] sm:$0xff]
    %v2240 = vld [vmem:[%s13] sm:$0x1]
    %v2242 = vlaneseq
    %v2243 = vshrl.u32 %v2242, 7
    %v2244 = vsub.s32 0, %v2243
    %v2245 = vrot.slane %v2240, %v2244
    %2247 = vmatprep.subr.mxu0 0.0
    %2248 = vmatpush1.msra.mxu0 %v2224
    %2249 = vmatprep.subr.mxu0 0.0
    %2250 = vmatpush1.msra.mxu0 %v2225
    %2251 = vmatprep.subr.mxu0 0.0
    %2252 = vmatpush1.msra.mxu0 %v2226
    %2253 = vmatprep.subr.mxu0 0.0
    %2254 = vmatpush1.msra.mxu0 %v2227
    %2255 = vmatprep.subr.mxu0 0.0
    %2256 = vmatpush1.msra.mxu0 %v2228
    %2257 = vmatprep.subr.mxu0 0.0
    %2258 = vmatpush1.msra.mxu0 %v2229
    %2259 = vmatprep.subr.mxu0 0.0
    %2260 = vmatpush1.msra.mxu0 %v2230
    %2261 = vmatprep.subr.mxu0 0.0
    %2262 = vmatpush1.msra.mxu0 %v2231
    %2263 = vmatprep.subr.mxu0 0.0
    %2264 = vmatpush1.msra.mxu0 %v2232
    %2265 = vmatprep.subr.mxu0 0.0
    %2266 = vmatpush1.msra.mxu0 %v2233
    %2267 = vmatprep.subr.mxu0 0.0
    %2268 = vmatpush1.msra.mxu0 %v2234
    %2269 = vmatprep.subr.mxu0 0.0
    %2270 = vmatpush1.msra.mxu0 %v2235
    %2271 = vmatprep.subr.mxu0 0.0
    %2272 = vmatpush1.msra.mxu0 %v2236
    %2273 = vmatprep.subr.mxu0 0.0
    %2274 = vmatpush1.msra.mxu0 %v2237
    %2275 = vmatprep.subr.mxu0 0.0
    %2276 = vmatpush1.msra.mxu0 %v2238
    %2277 = vmatprep.subr.mxu0 0.0
    %2278 = vmatpush1.msra.mxu0 %v2239
    %2279 = vmatprep.subr.mxu0 0.0
    %2280 = vmatpush1.msra.mxu0 0.0
    %2281 = vmatprep.subr.mxu0 0.0
    %2282 = vmatpush1.msra.mxu0 0.0
    %2283 = vmatprep.subr.mxu0 0.0
    %2284 = vmatpush1.msra.mxu0 0.0
    %2285 = vmatprep.subr.mxu0 0.0
    %2286 = vmatpush1.msra.mxu0 0.0
    %2287 = vmatprep.subr.mxu0 0.0
    %2288 = vmatpush1.msra.mxu0 0.0
    %2289 = vmatprep.subr.mxu0 0.0
    %2290 = vmatpush1.msra.mxu0 0.0
    %2291 = vmatprep.subr.mxu0 0.0
    %2292 = vmatpush1.msra.mxu0 0.0
    %2293 = vmatprep.subr.mxu0 0.0
    %2294 = vmatpush1.msra.mxu0 0.0
    %2295 = vmatprep.subr.mxu0 0.0
    %2296 = vmatpush1.msra.mxu0 0.0
    %2297 = vmatprep.subr.mxu0 0.0
    %2298 = vmatpush1.msra.mxu0 0.0
    %2299 = vmatprep.subr.mxu0 0.0
    %2300 = vmatpush1.msra.mxu0 0.0
    %2301 = vmatprep.subr.mxu0 0.0
    %2302 = vmatpush1.msra.mxu0 0.0
    %2303 = vmatprep.subr.mxu0 0.0
    %2304 = vmatpush1.msra.mxu0 0.0
    %2305 = vmatprep.subr.mxu0 0.0
    %2306 = vmatpush1.msra.mxu0 0.0
    %2307 = vmatprep.subr.mxu0 0.0
    %2308 = vmatpush1.msra.mxu0 0.0
    %2309 = vmatprep.subr.mxu0 0.0
    %2310 = vmatpush1.msra.mxu0 0.0
    %2311 = vmatprep.mubr.f32.mxu0 0.0
    %2312 = vmatmul.mubr.f32.gmra.mrb[0].mxu0 %v2223
    %v2313 = vpop.f32.mrb[0].mxu0
    %v2314 = vadd.f32 %v2245, %v2313
    %v2315 = vpop.f32.mrb[0].mxu0
    %2316 = vdwg.mxu0
    %v2317 = vmax.f32 %v2314, 0.0
    %v2318 = vld [vmem:[%s14] sm:$0xff]
    %v2319 = vld [vmem:[%s14 + $0x8] sm:$0xff]
    %v2320 = vld [vmem:[%s14 + $0x10] sm:$0xff]
    %v2321 = vld [vmem:[%s14 + $0x18] sm:$0xff]
    %v2322 = vld [vmem:[%s14 + $0x20] sm:$0xff]
    %v2323 = vld [vmem:[%s14 + $0x28] sm:$0xff]
    %v2324 = vld [vmem:[%s14 + $0x30] sm:$0xff]
    %v2325 = vld [vmem:[%s14 + $0x38] sm:$0xff]
    %v2326 = vld [vmem:[%s15] sm:$0x1]
    %v2328 = vlaneseq
    %v2329 = vshrl.u32 %v2328, 7
    %v2330 = vsub.s32 0, %v2329
    %v2331 = vrot.slane %v2326, %v2330
    %v2334 = vsel %vm378, %v2317, 0
    %2336 = vmatprep.subr.mxu0 0.0
    %2337 = vmatpush1.msra.mxu0 %v2318
    %2338 = vmatprep.subr.mxu0 0.0
    %2339 = vmatpush1.msra.mxu0 %v2319
    %2340 = vmatprep.subr.mxu0 0.0
    %2341 = vmatpush1.msra.mxu0 %v2320
    %2342 = vmatprep.subr.mxu0 0.0
    %2343 = vmatpush1.msra.mxu0 %v2321
    %2344 = vmatprep.subr.mxu0 0.0
    %2345 = vmatpush1.msra.mxu0 %v2322
    %2346 = vmatprep.subr.mxu0 0.0
    %2347 = vmatpush1.msra.mxu0 %v2323
    %2348 = vmatprep.subr.mxu0 0.0
    %2349 = vmatpush1.msra.mxu0 %v2324
    %2350 = vmatprep.subr.mxu0 0.0
    %2351 = vmatpush1.msra.mxu0 %v2325
    %2352 = vmatprep.subr.mxu0 0.0
    %2353 = vmatpush1.msra.mxu0 0.0
    %2354 = vmatprep.subr.mxu0 0.0
    %2355 = vmatpush1.msra.mxu0 0.0
    %2356 = vmatprep.subr.mxu0 0.0
    %2357 = vmatpush1.msra.mxu0 0.0
    %2358 = vmatprep.subr.mxu0 0.0
    %2359 = vmatpush1.msra.mxu0 0.0
    %2360 = vmatprep.subr.mxu0 0.0
    %2361 = vmatpush1.msra.mxu0 0.0
    %2362 = vmatprep.subr.mxu0 0.0
    %2363 = vmatpush1.msra.mxu0 0.0
    %2364 = vmatprep.subr.mxu0 0.0
    %2365 = vmatpush1.msra.mxu0 0.0
    %2366 = vmatprep.subr.mxu0 0.0
    %2367 = vmatpush1.msra.mxu0 0.0
    %2368 = vmatprep.subr.mxu0 0.0
    %2369 = vmatpush1.msra.mxu0 0.0
    %2370 = vmatprep.subr.mxu0 0.0
    %2371 = vmatpush1.msra.mxu0 0.0
    %2372 = vmatprep.subr.mxu0 0.0
    %2373 = vmatpush1.msra.mxu0 0.0
    %2374 = vmatprep.subr.mxu0 0.0
    %2375 = vmatpush1.msra.mxu0 0.0
    %2376 = vmatprep.subr.mxu0 0.0
    %2377 = vmatpush1.msra.mxu0 0.0
    %2378 = vmatprep.subr.mxu0 0.0
    %2379 = vmatpush1.msra.mxu0 0.0
    %2380 = vmatprep.subr.mxu0 0.0
    %2381 = vmatpush1.msra.mxu0 0.0
    %2382 = vmatprep.subr.mxu0 0.0
    %2383 = vmatpush1.msra.mxu0 0.0
    %2384 = vmatprep.subr.mxu0 0.0
    %2385 = vmatpush1.msra.mxu0 0.0
    %2386 = vmatprep.subr.mxu0 0.0
    %2387 = vmatpush1.msra.mxu0 0.0
    %2388 = vmatprep.subr.mxu0 0.0
    %2389 = vmatpush1.msra.mxu0 0.0
    %2390 = vmatprep.subr.mxu0 0.0
    %2391 = vmatpush1.msra.mxu0 0.0
    %2392 = vmatprep.subr.mxu0 0.0
    %2393 = vmatpush1.msra.mxu0 0.0
    %2394 = vmatprep.subr.mxu0 0.0
    %2395 = vmatpush1.msra.mxu0 0.0
    %2396 = vmatprep.subr.mxu0 0.0
    %2397 = vmatpush1.msra.mxu0 0.0
    %2398 = vmatprep.subr.mxu0 0.0
    %2399 = vmatpush1.msra.mxu0 0.0
    %2400 = vmatprep.mubr.f32.mxu0 0.0
    %2401 = vmatmul.mubr.f32.gmra.mrb[0].mxu0 %v2334
    %v2402 = vpop.f32.mrb[0].mxu0
    %v2403 = vadd.f32 %v2331, %v2402
    %v2404 = vpop.f32.mrb[0].mxu0
    %2405 = vdwg.mxu0
    %v2406 = vmax.f32 %v2403, 0.0
    %v2407 = vld [vmem:[%s16] sm:$0xff]
    %v2408 = vld [vmem:[%s16 + $0x8] sm:$0xff]
    %v2409 = vld [vmem:[%s16 + $0x10] sm:$0xff]
    %v2410 = vld [vmem:[%s16 + $0x18] sm:$0xff]
    %v2411 = vld [vmem:[%s16 + $0x20] sm:$0xff]
    %v2412 = vld [vmem:[%s16 + $0x28] sm:$0xff]
    %v2413 = vld [vmem:[%s16 + $0x30] sm:$0xff]
    %v2414 = vld [vmem:[%s16 + $0x38] sm:$0xff]
    %v2415 = vld [vmem:[#allocation3] sm:$0x1]
    %v2417 = vlaneseq
    %v2418 = vshrl.u32 %v2417, 7
    %v2419 = vsub.s32 0, %v2418
    %v2420 = vrot.slane %v2415, %v2419
    %v2423 = vsel %vm378, %v2406, 0
    %2425 = vmatprep.subr.mxu0 0.0
    %2426 = vmatpush1.msra.mxu0 %v2407
    %2427 = vmatprep.subr.mxu0 0.0
    %2428 = vmatpush1.msra.mxu0 %v2408
    %2429 = vmatprep.subr.mxu0 0.0
    %2430 = vmatpush1.msra.mxu0 %v2409
    %2431 = vmatprep.subr.mxu0 0.0
    %2432 = vmatpush1.msra.mxu0 %v2410
    %2433 = vmatprep.subr.mxu0 0.0
    %2434 = vmatpush1.msra.mxu0 %v2411
    %2435 = vmatprep.subr.mxu0 0.0
    %2436 = vmatpush1.msra.mxu0 %v2412
    %2437 = vmatprep.subr.mxu0 0.0
    %2438 = vmatpush1.msra.mxu0 %v2413
    %2439 = vmatprep.subr.mxu0 0.0
    %2440 = vmatpush1.msra.mxu0 %v2414
    %2441 = vmatprep.subr.mxu0 0.0
    %2442 = vmatpush1.msra.mxu0 0.0
    %2443 = vmatprep.subr.mxu0 0.0
    %2444 = vmatpush1.msra.mxu0 0.0
    %2445 = vmatprep.subr.mxu0 0.0
    %2446 = vmatpush1.msra.mxu0 0.0
    %2447 = vmatprep.subr.mxu0 0.0
    %2448 = vmatpush1.msra.mxu0 0.0
    %2449 = vmatprep.subr.mxu0 0.0
    %2450 = vmatpush1.msra.mxu0 0.0
    %2451 = vmatprep.subr.mxu0 0.0
    %2452 = vmatpush1.msra.mxu0 0.0
    %2453 = vmatprep.subr.mxu0 0.0
    %2454 = vmatpush1.msra.mxu0 0.0
    %2455 = vmatprep.subr.mxu0 0.0
    %2456 = vmatpush1.msra.mxu0 0.0
    %2457 = vmatprep.subr.mxu0 0.0
    %2458 = vmatpush1.msra.mxu0 0.0
    %2459 = vmatprep.subr.mxu0 0.0
    %2460 = vmatpush1.msra.mxu0 0.0
    %2461 = vmatprep.subr.mxu0 0.0
    %2462 = vmatpush1.msra.mxu0 0.0
    %2463 = vmatprep.subr.mxu0 0.0
    %2464 = vmatpush1.msra.mxu0 0.0
    %2465 = vmatprep.subr.mxu0 0.0
    %2466 = vmatpush1.msra.mxu0 0.0
    %2467 = vmatprep.subr.mxu0 0.0
    %2468 = vmatpush1.msra.mxu0 0.0
    %2469 = vmatprep.subr.mxu0 0.0
    %2470 = vmatpush1.msra.mxu0 0.0
    %2471 = vmatprep.subr.mxu0 0.0
    %2472 = vmatpush1.msra.mxu0 0.0
    %2473 = vmatprep.subr.mxu0 0.0
    %2474 = vmatpush1.msra.mxu0 0.0
    %2475 = vmatprep.subr.mxu0 0.0
    %2476 = vmatpush1.msra.mxu0 0.0
    %2477 = vmatprep.subr.mxu0 0.0
    %2478 = vmatpush1.msra.mxu0 0.0
    %2479 = vmatprep.subr.mxu0 0.0
    %2480 = vmatpush1.msra.mxu0 0.0
    %2481 = vmatprep.subr.mxu0 0.0
    %2482 = vmatpush1.msra.mxu0 0.0
    %2483 = vmatprep.subr.mxu0 0.0
    %2484 = vmatpush1.msra.mxu0 0.0
    %2485 = vmatprep.subr.mxu0 0.0
    %2486 = vmatpush1.msra.mxu0 0.0
    %2487 = vmatprep.subr.mxu0 0.0
    %2488 = vmatpush1.msra.mxu0 0.0
    %2489 = vmatprep.mubr.f32.mxu0 0.0
    %2490 = vmatmul.mubr.f32.gmra.mrb[0].mxu0 %v2423
    %v2491 = vpop.f32.mrb[0].mxu0
    %v2492 = vadd.f32 %v2420, %v2491
    %v2493 = vpop.f32.mrb[0].mxu0
    %2494 = vdwg.mxu0
    %v2495 = vmul.f32 %v2492, 0.5
    %v2496 = vtanh.pop %v2495
    %v2497 = vmul.f32 %v2496, 0.5
    %v2498 = vadd.f32 %v2497, 0.5
    %2500 = vset.pattern.permute.xlu0 0
    %2501 = vperm.xlu0 %2500, %v2498
    %v2502 = vpop.permute.xlu0 %2501
    %v2504 = vmul.f32 %v1232, %v2502
    %v2505 = vsub.f32 1.0, %v2498
    %2507 = vset.pattern.permute.xlu0 0
    %2508 = vperm.xlu0 %2507, %v2505
    %v2509 = vpop.permute.xlu0 %2508
    %v2511 = vmul.f32 %v1232, %v2509
    %v2512 = vld [vmem:[%s18] sm:$0xff]
    %v2513 = vld [vmem:[%s18 + $0x8] sm:$0xff]
    %v2514 = vld [vmem:[%s19] sm:$0xff]
    %v2515 = vld [vmem:[%s19 + $0x8] sm:$0xff]
    %2517 = vrot.lane.b32.xlu0 %v2511, 112
    %v2518 = vpop.permute.xlu0 %2517
    %vm2519 = vcmask 130048
    %v2520 = vsel %vm2519, %v2518, 0
    %2522 = vmatprep.subr.mxu0 0.0
    %2523 = vmatpush1.msra.mxu0 %v2514
    %2524 = vmatprep.subr.mxu0 0.0
    %2525 = vmatpush1.msra.mxu0 %v2515
    %2526 = vmatprep.subr.mxu0 0.0
    %2527 = vmatpush1.msra.mxu0 0.0
    %2528 = vmatprep.subr.mxu0 0.0
    %2529 = vmatpush1.msra.mxu0 0.0
    %2530 = vmatprep.subr.mxu0 0.0
    %2531 = vmatpush1.msra.mxu0 0.0
    %2532 = vmatprep.subr.mxu0 0.0
    %2533 = vmatpush1.msra.mxu0 0.0
    %2534 = vmatprep.subr.mxu0 0.0
    %2535 = vmatpush1.msra.mxu0 0.0
    %2536 = vmatprep.subr.mxu0 0.0
    %2537 = vmatpush1.msra.mxu0 0.0
    %2538 = vmatprep.subr.mxu0 0.0
    %2539 = vmatpush1.msra.mxu0 0.0
    %2540 = vmatprep.subr.mxu0 0.0
    %2541 = vmatpush1.msra.mxu0 0.0
    %2542 = vmatprep.subr.mxu0 0.0
    %2543 = vmatpush1.msra.mxu0 0.0
    %2544 = vmatprep.subr.mxu0 0.0
    %2545 = vmatpush1.msra.mxu0 0.0
    %2546 = vmatprep.subr.mxu0 0.0
    %2547 = vmatpush1.msra.mxu0 0.0
    %2548 = vmatprep.subr.mxu0 0.0
    %2549 = vmatpush1.msra.mxu0 0.0
    %2550 = vmatprep.subr.mxu0 0.0
    %2551 = vmatpush1.msra.mxu0 0.0
    %2552 = vmatprep.subr.mxu0 0.0
    %2553 = vmatpush1.msra.mxu0 0.0
    %2554 = vmatprep.subr.mxu0 0.0
    %2555 = vmatpush1.msra.mxu0 0.0
    %2556 = vmatprep.subr.mxu0 0.0
    %2557 = vmatpush1.msra.mxu0 0.0
    %2558 = vmatprep.subr.mxu0 0.0
    %2559 = vmatpush1.msra.mxu0 0.0
    %2560 = vmatprep.subr.mxu0 0.0
    %2561 = vmatpush1.msra.mxu0 0.0
    %2562 = vmatprep.subr.mxu0 0.0
    %2563 = vmatpush1.msra.mxu0 0.0
    %2564 = vmatprep.subr.mxu0 0.0
    %2565 = vmatpush1.msra.mxu0 0.0
    %2566 = vmatprep.subr.mxu0 0.0
    %2567 = vmatpush1.msra.mxu0 0.0
    %2568 = vmatprep.subr.mxu0 0.0
    %2569 = vmatpush1.msra.mxu0 0.0
    %2570 = vmatprep.subr.mxu0 0.0
    %2571 = vmatpush1.msra.mxu0 0.0
    %2572 = vmatprep.subr.mxu0 0.0
    %2573 = vmatpush1.msra.mxu0 0.0
    %2574 = vmatprep.subr.mxu0 0.0
    %2575 = vmatpush1.msra.mxu0 0.0
    %2576 = vmatprep.subr.mxu0 0.0
    %2577 = vmatpush1.msra.mxu0 0.0
    %2578 = vmatprep.subr.mxu0 0.0
    %2579 = vmatpush1.msra.mxu0 0.0
    %2580 = vmatprep.subr.mxu0 0.0
    %2581 = vmatpush1.msra.mxu0 0.0
    %2582 = vmatprep.subr.mxu0 0.0
    %2583 = vmatpush1.msra.mxu0 0.0
    %2584 = vmatprep.subr.mxu0 0.0
    %2585 = vmatpush1.msra.mxu0 0.0
    %2586 = vmatprep.mubr.f32.mxu0 0.0
    %2587 = vmatmul.mubr.f32.gmra.mrb[0].mxu0 %v2520
    %v2588 = vpop.f32.mrb[0].mxu0
    %v2589 = vadd.f32 0.0, %v2588
    %v2590 = vpop.f32.mrb[0].mxu0
    %2591 = vdwg.mxu0
    %v2593 = vsel %vm2519, %v2504, 0
    %2595 = vmatprep.subr.mxu0 0.0
    %2596 = vmatpush1.msra.mxu0 %v2512
    %2597 = vmatprep.subr.mxu0 0.0
    %2598 = vmatpush1.msra.mxu0 %v2513
    %2599 = vmatprep.subr.mxu0 0.0
    %2600 = vmatpush1.msra.mxu0 0.0
    %2601 = vmatprep.subr.mxu0 0.0
    %2602 = vmatpush1.msra.mxu0 0.0
    %2603 = vmatprep.subr.mxu0 0.0
    %2604 = vmatpush1.msra.mxu0 0.0
    %2605 = vmatprep.subr.mxu0 0.0
    %2606 = vmatpush1.msra.mxu0 0.0
    %2607 = vmatprep.subr.mxu0 0.0
    %2608 = vmatpush1.msra.mxu0 0.0
    %2609 = vmatprep.subr.mxu0 0.0
    %2610 = vmatpush1.msra.mxu0 0.0
    %2611 = vmatprep.subr.mxu0 0.0
    %2612 = vmatpush1.msra.mxu0 0.0
    %2613 = vmatprep.subr.mxu0 0.0
    %2614 = vmatpush1.msra.mxu0 0.0
    %2615 = vmatprep.subr.mxu0 0.0
    %2616 = vmatpush1.msra.mxu0 0.0
    %2617 = vmatprep.subr.mxu0 0.0
    %2618 = vmatpush1.msra.mxu0 0.0
    %2619 = vmatprep.subr.mxu0 0.0
    %2620 = vmatpush1.msra.mxu0 0.0
    %2621 = vmatprep.subr.mxu0 0.0
    %2622 = vmatpush1.msra.mxu0 0.0
    %2623 = vmatprep.subr.mxu0 0.0
    %2624 = vmatpush1.msra.mxu0 0.0
    %2625 = vmatprep.subr.mxu0 0.0
    %2626 = vmatpush1.msra.mxu0 0.0
    %2627 = vmatprep.subr.mxu0 0.0
    %2628 = vmatpush1.msra.mxu0 0.0
    %2629 = vmatprep.subr.mxu0 0.0
    %2630 = vmatpush1.msra.mxu0 0.0
    %2631 = vmatprep.subr.mxu0 0.0
    %2632 = vmatpush1.msra.mxu0 0.0
    %2633 = vmatprep.subr.mxu0 0.0
    %2634 = vmatpush1.msra.mxu0 0.0
    %2635 = vmatprep.subr.mxu0 0.0
    %2636 = vmatpush1.msra.mxu0 0.0
    %2637 = vmatprep.subr.mxu0 0.0
    %2638 = vmatpush1.msra.mxu0 0.0
    %2639 = vmatprep.subr.mxu0 0.0
    %2640 = vmatpush1.msra.mxu0 0.0
    %2641 = vmatprep.subr.mxu0 0.0
    %2642 = vmatpush1.msra.mxu0 0.0
    %2643 = vmatprep.subr.mxu0 0.0
    %2644 = vmatpush1.msra.mxu0 0.0
    %2645 = vmatprep.subr.mxu0 0.0
    %2646 = vmatpush1.msra.mxu0 0.0
    %2647 = vmatprep.subr.mxu0 0.0
    %2648 = vmatpush1.msra.mxu0 0.0
    %2649 = vmatprep.subr.mxu0 0.0
    %2650 = vmatpush1.msra.mxu0 0.0
    %2651 = vmatprep.subr.mxu0 0.0
    %2652 = vmatpush1.msra.mxu0 0.0
    %2653 = vmatprep.subr.mxu0 0.0
    %2654 = vmatpush1.msra.mxu0 0.0
    %2655 = vmatprep.subr.mxu0 0.0
    %2656 = vmatpush1.msra.mxu0 0.0
    %2657 = vmatprep.subr.mxu0 0.0
    %2658 = vmatpush1.msra.mxu0 0.0
    %2659 = vmatprep.mubr.f32.mxu0 0.0
    %2660 = vmatmul.mubr.f32.gmra.mrb[0].mxu0 %v2593
    %v2661 = vpop.f32.mrb[0].mxu0
    %v2662 = vadd.f32 %v2589, %v2661
    %v2663 = vpop.f32.mrb[0].mxu0
    %2664 = vdwg.mxu0
    %v2665 = vld [vmem:[%s20] sm:$0xff]
    %v2666 = vld [vmem:[%s20 + $0x8] sm:$0xff]
    %v2667 = vld [vmem:[%s20 + $0x10] sm:$0xff]
    %v2668 = vld [vmem:[%s20 + $0x18] sm:$0xff]
    %v2669 = vld [vmem:[%s20 + $0x20] sm:$0xff]
    %v2670 = vld [vmem:[%s20 + $0x28] sm:$0xff]
    %v2671 = vld [vmem:[%s20 + $0x30] sm:$0xff]
    %v2672 = vld [vmem:[%s20 + $0x38] sm:$0xff]
    %2673 = vmatprep.subr.mxu0 0.0
    %2674 = vmatpush1.msra.mxu0 %v2665
    %2675 = vmatprep.subr.mxu0 0.0
    %2676 = vmatpush1.msra.mxu0 %v2666
    %2677 = vmatprep.subr.mxu0 0.0
    %2678 = vmatpush1.msra.mxu0 %v2667
    %2679 = vmatprep.subr.mxu0 0.0
    %2680 = vmatpush1.msra.mxu0 %v2668
    %2681 = vmatprep.subr.mxu0 0.0
    %2682 = vmatpush1.msra.mxu0 %v2669
    %2683 = vmatprep.subr.mxu0 0.0
    %2684 = vmatpush1.msra.mxu0 %v2670
    %2685 = vmatprep.subr.mxu0 0.0
    %2686 = vmatpush1.msra.mxu0 %v2671
    %2687 = vmatprep.subr.mxu0 0.0
    %2688 = vmatpush1.msra.mxu0 %v2672
    %2689 = vmatprep.subr.mxu0 0.0
    %2690 = vmatpush1.msra.mxu0 0.0
    %2691 = vmatprep.subr.mxu0 0.0
    %2692 = vmatpush1.msra.mxu0 0.0
    %2693 = vmatprep.subr.mxu0 0.0
    %2694 = vmatpush1.msra.mxu0 0.0
    %2695 = vmatprep.subr.mxu0 0.0
    %2696 = vmatpush1.msra.mxu0 0.0
    %2697 = vmatprep.subr.mxu0 0.0
    %2698 = vmatpush1.msra.mxu0 0.0
    %2699 = vmatprep.subr.mxu0 0.0
    %2700 = vmatpush1.msra.mxu0 0.0
    %2701 = vmatprep.subr.mxu0 0.0
    %2702 = vmatpush1.msra.mxu0 0.0
    %2703 = vmatprep.subr.mxu0 0.0
    %2704 = vmatpush1.msra.mxu0 0.0
    %2705 = vmatprep.subr.mxu0 0.0
    %2706 = vmatpush1.msra.mxu0 0.0
    %2707 = vmatprep.subr.mxu0 0.0
    %2708 = vmatpush1.msra.mxu0 0.0
    %2709 = vmatprep.subr.mxu0 0.0
    %2710 = vmatpush1.msra.mxu0 0.0
    %2711 = vmatprep.subr.mxu0 0.0
    %2712 = vmatpush1.msra.mxu0 0.0
    %2713 = vmatprep.subr.mxu0 0.0
    %2714 = vmatpush1.msra.mxu0 0.0
    %2715 = vmatprep.subr.mxu0 0.0
    %2716 = vmatpush1.msra.mxu0 0.0
    %2717 = vmatprep.subr.mxu0 0.0
    %2718 = vmatpush1.msra.mxu0 0.0
    %2719 = vmatprep.subr.mxu0 0.0
    %2720 = vmatpush1.msra.mxu0 0.0
    %2721 = vmatprep.subr.mxu0 0.0
    %2722 = vmatpush1.msra.mxu0 0.0
    %2723 = vmatprep.subr.mxu0 0.0
    %2724 = vmatpush1.msra.mxu0 0.0
    %2725 = vmatprep.subr.mxu0 0.0
    %2726 = vmatpush1.msra.mxu0 0.0
    %2727 = vmatprep.subr.mxu0 0.0
    %2728 = vmatpush1.msra.mxu0 0.0
    %2729 = vmatprep.subr.mxu0 0.0
    %2730 = vmatpush1.msra.mxu0 0.0
    %2731 = vmatprep.subr.mxu0 0.0
    %2732 = vmatpush1.msra.mxu0 0.0
    %2733 = vmatprep.subr.mxu0 0.0
    %2734 = vmatpush1.msra.mxu0 0.0
    %2735 = vmatprep.subr.mxu0 0.0
    %2736 = vmatpush1.msra.mxu0 0.0
    %2737 = vmatprep.mubr.f32.mxu0 0.0
    %2738 = vmatmul.mubr.f32.gmra.mrb[0].mxu0 %v2423
    %v2739 = vpop.f32.mrb[0].mxu0
    %v2740 = vadd.f32 0.0, %v2739
    %v2741 = vpop.f32.mrb[0].mxu0
    %2742 = vdwg.mxu0
    %v2743 = vadd.f32 %v2662, %v2740
    %v2744 = vld [vmem:[%s21] sm:$0x1]
    %v2746 = vlaneseq
    %v2747 = vshrl.u32 %v2746, 7
    %v2748 = vsub.s32 0, %v2747
    %v2749 = vrot.slane %v2744, %v2748
    %v2751 = vadd.f32 %v2743, %v2749
    %v2752 = vmax.f32 %v2751, 0.0
    %v2753 = vld [vmem:[%s22] sm:$0xff]
    %v2754 = vld [vmem:[%s22 + $0x8] sm:$0xff]
    %v2755 = vld [vmem:[%s22 + $0x10] sm:$0xff]
    %v2756 = vld [vmem:[%s22 + $0x18] sm:$0xff]
    %v2757 = vld [vmem:[%s22 + $0x20] sm:$0xff]
    %v2758 = vld [vmem:[%s22 + $0x28] sm:$0xff]
    %v2759 = vld [vmem:[%s22 + $0x30] sm:$0xff]
    %v2760 = vld [vmem:[%s22 + $0x38] sm:$0xff]
    %v2761 = vld [vmem:[#allocation4] sm:$0x1]
    %v2763 = vlaneseq
    %v2764 = vshrl.u32 %v2763, 7
    %v2765 = vsub.s32 0, %v2764
    %v2766 = vrot.slane %v2761, %v2765
    %v2769 = vsel %vm378, %v2752, 0
    %2771 = vmatprep.subr.mxu0 0.0
    %2772 = vmatpush1.msra.mxu0 %v2753
    %2773 = vmatprep.subr.mxu0 0.0
    %2774 = vmatpush1.msra.mxu0 %v2754
    %2775 = vmatprep.subr.mxu0 0.0
    %2776 = vmatpush1.msra.mxu0 %v2755
    %2777 = vmatprep.subr.mxu0 0.0
    %2778 = vmatpush1.msra.mxu0 %v2756
    %2779 = vmatprep.subr.mxu0 0.0
    %2780 = vmatpush1.msra.mxu0 %v2757
    %2781 = vmatprep.subr.mxu0 0.0
    %2782 = vmatpush1.msra.mxu0 %v2758
    %2783 = vmatprep.subr.mxu0 0.0
    %2784 = vmatpush1.msra.mxu0 %v2759
    %2785 = vmatprep.subr.mxu0 0.0
    %2786 = vmatpush1.msra.mxu0 %v2760
    %2787 = vmatprep.subr.mxu0 0.0
    %2788 = vmatpush1.msra.mxu0 0.0
    %2789 = vmatprep.subr.mxu0 0.0
    %2790 = vmatpush1.msra.mxu0 0.0
    %2791 = vmatprep.subr.mxu0 0.0
    %2792 = vmatpush1.msra.mxu0 0.0
    %2793 = vmatprep.subr.mxu0 0.0
    %2794 = vmatpush1.msra.mxu0 0.0
    %2795 = vmatprep.subr.mxu0 0.0
    %2796 = vmatpush1.msra.mxu0 0.0
    %2797 = vmatprep.subr.mxu0 0.0
    %2798 = vmatpush1.msra.mxu0 0.0
    %2799 = vmatprep.subr.mxu0 0.0
    %2800 = vmatpush1.msra.mxu0 0.0
    %2801 = vmatprep.subr.mxu0 0.0
    %2802 = vmatpush1.msra.mxu0 0.0
    %2803 = vmatprep.subr.mxu0 0.0
    %2804 = vmatpush1.msra.mxu0 0.0
    %2805 = vmatprep.subr.mxu0 0.0
    %2806 = vmatpush1.msra.mxu0 0.0
    %2807 = vmatprep.subr.mxu0 0.0
    %2808 = vmatpush1.msra.mxu0 0.0
    %2809 = vmatprep.subr.mxu0 0.0
    %2810 = vmatpush1.msra.mxu0 0.0
    %2811 = vmatprep.subr.mxu0 0.0
    %2812 = vmatpush1.msra.mxu0 0.0
    %2813 = vmatprep.subr.mxu0 0.0
    %2814 = vmatpush1.msra.mxu0 0.0
    %2815 = vmatprep.subr.mxu0 0.0
    %2816 = vmatpush1.msra.mxu0 0.0
    %2817 = vmatprep.subr.mxu0 0.0
    %2818 = vmatpush1.msra.mxu0 0.0
    %2819 = vmatprep.subr.mxu0 0.0
    %2820 = vmatpush1.msra.mxu0 0.0
    %2821 = vmatprep.subr.mxu0 0.0
    %2822 = vmatpush1.msra.mxu0 0.0
    %2823 = vmatprep.subr.mxu0 0.0
    %2824 = vmatpush1.msra.mxu0 0.0
    %2825 = vmatprep.subr.mxu0 0.0
    %2826 = vmatpush1.msra.mxu0 0.0
    %2827 = vmatprep.subr.mxu0 0.0
    %2828 = vmatpush1.msra.mxu0 0.0
    %2829 = vmatprep.subr.mxu0 0.0
    %2830 = vmatpush1.msra.mxu0 0.0
    %2831 = vmatprep.subr.mxu0 0.0
    %2832 = vmatpush1.msra.mxu0 0.0
    %2833 = vmatprep.subr.mxu0 0.0
    %2834 = vmatpush1.msra.mxu0 0.0
    %2835 = vmatprep.mubr.f32.mxu0 0.0
    %2836 = vmatmul.mubr.f32.gmra.mrb[0].mxu0 %v2769
    %v2837 = vpop.f32.mrb[0].mxu0
    %v2838 = vadd.f32 %v2766, %v2837
    %v2839 = vpop.f32.mrb[0].mxu0
    %2840 = vdwg.mxu0
    %v2841 = vmul.f32 %v2838, 0.5
    %v2842 = vtanh.pop %v2841
    %v2843 = vmul.f32 %v2842, 0.5
    %v2844 = vadd.f32 %v2843, 0.5
    %vm2845 = vcmask 7168
    %2846 = vst.msk [vmem:[%s24] sm:$0xff] %vm2845, %v2844
    // Predicated region
    $region114: #{tpu_custom_call.1} parent=1 // pred_check
      _
    $region115: #{tpu_custom_call.1} parent=1 // pred_check_branch
      %2848 = sbr.rel (0) target = $region117
    $region116: #{tpu_custom_call.1} parent=1 // pred_region
      _
    $region117: #{tpu_custom_call.1} parent=1 // pred_fallthru
      _
    // Predicated region
    $region118: #{tpu_custom_call.1} parent=1 // pred_check
      _
    $region119: #{tpu_custom_call.1} parent=1 // pred_check_branch
      %2850 = sbr.rel (0) target = $region121
    $region120: #{tpu_custom_call.1} parent=1 // pred_region
      _
    $region121: #{tpu_custom_call.1} parent=1 // pred_fallthru
      _
    %2851 = vsyncpa [#allocation6], 1
    %2852 = vsyncpa [#allocation8], 1
    %2853 = vsyncpa [#allocation11], 1

</llo_original>
